<compile_context>
chip_gen: v6e
topology: v6e:2x2x1
jax: 0.10.0
libtpu: 0.0.40
codegen_flags: <defaults>
</compile_context>

<pallas_src>
import jax
import jax.numpy as jnp
from jax import lax
from jax.experimental import pallas as pl
from jax.experimental.pallas import tpu as pltpu

EPS = 1e-5
LANES = 128


# --------------------------------------------------------------------------
# small helpers
# --------------------------------------------------------------------------
def _round_up(v, m):
    return (v + m - 1) // m * m


def _pad2(w, rows, cols):
    return jnp.pad(w, ((0, rows - w.shape[0]), (0, cols - w.shape[1])))


def _pad_vec(v, c):
    return jnp.pad(v, (0, c - v.shape[0]))


def _device_tuning():
    """(row-tile cap, vmem_limit_bytes) picked from the TPU generation."""
    try:
        info = pltpu.get_tpu_info()
        vmem_cap = int(getattr(info, "vmem_capacity_bytes", 64 * 1024 * 1024))
    except Exception:  # conservative fallback if the query is unavailable
        vmem_cap = 64 * 1024 * 1024
    if vmem_cap <= 64 * 1024 * 1024:          # v7x-class TensorCore (64 MiB)
        return 512, min(40 * 1024 * 1024, (vmem_cap * 3) // 4)
    return 2048, min(96 * 1024 * 1024, (vmem_cap * 3) // 4)   # v5e / v6e


def _row_tiling(rows, cap):
    """Pick (row_tile, padded_rows).

    Prefer an exact multiple-of-16 divisor of `rows` (zero-copy path; 16 keeps
    bf16 blocks sublane-aligned).  Otherwise pad `rows` up to a tile multiple;
    the wrapper corrects the BN3 statistics for the padded rows analytically.
    """
    cap = max(16, (cap // 16) * 16)
    best = None
    t = 16
    while t <= min(rows, cap):
        if rows % t == 0:
            best = t
        t += 16
    if best is not None and best >= min(cap, 256):
        return best, rows
    tm = min(cap, _round_up(rows, 16))
    return tm, _round_up(rows, tm)


def _bn_scale_bias(stats, count, gamma, beta, sum_corr=None, sq_corr=None):
    """Fold batch stats + affine params into a single (scale, bias) pair.

    Note: variance via E[x^2] - E[x]^2 in f32; conv outputs are ~zero-mean so
    cancellation is mild (see review), and stats come from f32 accumulators.
    """
    s = jnp.sum(stats[:, 0, :], axis=0)
    sq = jnp.sum(stats[:, 1, :], axis=0)
    if sum_corr is not None:
        s = s - sum_corr
        sq = sq - sq_corr
    mean = s / count
    var = jnp.maximum(sq / count - mean * mean, 0.0)
    scale = gamma * lax.rsqrt(var + EPS)
    bias = beta - mean * scale
    return scale.reshape(1, -1), bias.reshape(1, -1)


def _write_stats(stats_ref, y_f32):
    """Per-tile per-channel [sum; sum_sq] from the f32 accumulator -> (1,2,C)."""
    s = jnp.sum(y_f32, axis=0, keepdims=True)
    sq = jnp.sum(y_f32 * y_f32, axis=0, keepdims=True)
    stats_ref[0] = jnp.concatenate([s, sq], axis=0)


# --------------------------------------------------------------------------
# kernels
# --------------------------------------------------------------------------
def _conv1x1_kernel(x_ref, w_ref, y_ref, stats_ref):
    # stage 1: 1x1 conv (channel matmul, bf16 operands, f32 accum) + BN1 stats
    acc = jnp.dot(x_ref[...], w_ref[...], preferred_element_type=jnp.float32)
    y_ref[...] = acc.astype(y_ref.dtype)          # bf16 activation store
    _write_stats(stats_ref, acc)


def _bn_relu_conv3x3_kernel(scale_ref, bias_ref, y1_ref, w2_ref, y2_ref, stats_ref):
    # stage 2: apply BN1 (fused scale/bias) + ReLU, then 3x3 conv (pad=1) as
    # three grouped-dh matmuls of K = 3*P accumulated in f32, + BN2 stats.
    h = jnp.maximum(
        y1_ref[0].astype(jnp.float32) * scale_ref[0] + bias_ref[0], 0.0)  # (H,W,P)
    H, W, P = h.shape

    # Edge masks for the W(+/-1) taps: tiny (1, W, 1) 0/1 constants.
    ones = jnp.ones((1, W - 1, 1), jnp.float32)
    zcol = jnp.zeros((1, 1, 1), jnp.float32)
    not_first = jnp.concatenate([zcol, ones], axis=1)   # kills column j == 0
    not_last = jnp.concatenate([ones, zcol], axis=1)    # kills column j == W-1

    # W(+/-1) taps via XLU roll, masked, then bf16 (dw = 0, 1, 2 order).
    h_m1 = (pltpu.roll(h, shift=1, axis=1) * not_first).astype(jnp.bfloat16)
    h_p1 = (pltpu.roll(h, shift=W - 1, axis=1) * not_last).astype(jnp.bfloat16)
    hcat = jnp.concatenate([h_m1, h.astype(jnp.bfloat16), h_p1], axis=-1)  # (H,W,3P)

    # H(+/-1) taps are free leading-dim offsets into a zero-row-padded copy.
    zrow = jnp.zeros((1, W, 3 * P), jnp.bfloat16)
    padded = jnp.concatenate([zrow, hcat, zrow], axis=0)                   # (H+2,W,3P)

    acc = jnp.zeros((H * W, P), jnp.float32)
    for dh in range(3):                      # 3 matmuls, K = 3*P, f32 accumulate
        lhs = padded[dh:dh + H].reshape(H * W, 3 * P)
        acc = acc + jnp.dot(lhs, w2_ref[dh], preferred_element_type=jnp.float32)

    y2_ref[0] = acc.reshape(H, W, P).astype(y2_ref.dtype)   # bf16 store
    _write_stats(stats_ref, acc)


def _bn_relu_conv1x1_kernel(scale_ref, bias_ref, h_ref, w_ref, y_ref, stats_ref):
    # stage 3: apply BN2 + ReLU, 1x1 conv to 4*planes, BN3 partial stats.
    h = jnp.maximum(
        h_ref[...].astype(jnp.float32) * scale_ref[0] + bias_ref[0], 0.0)
    acc = jnp.dot(h.astype(jnp.bfloat16), w_ref[...],
                  preferred_element_type=jnp.float32)
    y_ref[...] = acc.astype(y_ref.dtype)          # bf16 activation store
    _write_stats(stats_ref, acc)


def _bn_add_relu_kernel(scale_ref, bias_ref, y_ref, x_ref, out_ref):
    # stage 4: apply BN3, residual add (identity), final ReLU.
    out_ref[...] = jnp.maximum(
        y_ref[...].astype(jnp.float32) * scale_ref[0] + bias_ref[0]
        + x_ref[...].astype(jnp.float32), 0.0)


# --------------------------------------------------------------------------
# forward pass
# --------------------------------------------------------------------------
def bottleneck_forward_nhwc(x_nhwc, params, *, row_tile=None):
    """Bottleneck forward on NHWC input.

    row_tile: rows (of the flattened N*H*W axis) per grid step for the 1x1 /
    elementwise stages.  Default is generation-aware (2048 on 128-MiB-VMEM
    v5e/v6e, 512 on 64-MiB-VMEM v7x).  The 3x3 stage tiles per image.
    """
    N, H, W, Cin = x_nhwc.shape
    P = params["w1"].shape[1]
    Cout = params["w3"].shape[1]
    # stride=1, downsample=None => identity residual requires inplanes == 4*planes
    assert Cin == Cout == 4 * P, "identity residual requires inplanes == planes*4"

    f32, bf16 = jnp.float32, jnp.bfloat16
    Cp = _round_up(Cin, LANES)     # padded residual/in/out channels (equal)
    Pp = _round_up(P, LANES)       # padded bottleneck width
    R = N * H * W

    default_cap, vmem_limit = _device_tuning()
    cap = default_cap if row_tile is None else row_tile
    tm, Rp = _row_tiling(R, cap)
    nt = Rp // tm
    n_pad = Rp - R

    # ---- bf16 lane-padded activations / pre-cast bf16 weights / f32 BN params
    x2d = jnp.pad(x_nhwc.reshape(R, Cin),
                  ((0, n_pad), (0, Cp - Cin))).astype(bf16)          # (Rp, Cp)
    w1p = _pad2(params["w1"], Cp, Pp).astype(bf16)                   # (Cp, Pp)
    w2p = jnp.pad(params["w2"],
                  ((0, 0), (0, 0), (0, Pp - P), (0, Pp - P))
                  ).reshape(3, 3 * Pp, Pp).astype(bf16)              # per-dh slabs
    w3p = _pad2(params["w3"], Pp, Cp).astype(bf16)                   # (Pp, Cp)
    g1, b1 = _pad_vec(params["g1"], Pp), _pad_vec(params["b1"], Pp)
    g2, b2 = _pad_vec(params["g2"], Pp), _pad_vec(params["b2"], Pp)
    g3, b3 = _pad_vec(params["g3"], Cp), _pad_vec(params["b3"], Cp)

    cparams = pltpu.CompilerParams(dimension_semantics=("parallel",),
                                   vmem_limit_bytes=int(vmem_limit))

    # ---- stage 1: conv1x1 + BN1 partial stats (row-tiled grid) ----
    y1, s1 = pl.pallas_call(
        _conv1x1_kernel,
        grid=(nt,),
        in_specs=[
            pl.BlockSpec((tm, Cp), lambda i: (i, 0)),
            pl.BlockSpec((Cp, Pp), lambda i: (0, 0)),
        ],
        out_specs=(
            pl.BlockSpec((tm, Pp), lambda i: (i, 0)),
            pl.BlockSpec((1, 2, Pp), lambda i: (i, 0, 0)),
        ),
        out_shape=(
            jax.ShapeDtypeStruct((Rp, Pp), bf16),
            jax.ShapeDtypeStruct((nt, 2, Pp), f32),
        ),
        compiler_params=cparams,
    )(x2d, w1p)
    # padded rows are zero => contribute nothing; count stays R
    scale1, bias1 = _bn_scale_bias(s1, R, g1, b1)

    # ---- stage 2: BN1+ReLU + conv3x3 (per-image grid, grouped-dh matmuls) ----
    y1_img = y1[:R].reshape(N, H, W, Pp)
    y2, s2 = pl.pallas_call(
        _bn_relu_conv3x3_kernel,
        grid=(N,),
        in_specs=[
            pl.BlockSpec((1, Pp), lambda n: (0, 0)),
            pl.BlockSpec((1, Pp), lambda n: (0, 0)),
            pl.BlockSpec((1, H, W, Pp), lambda n: (n, 0, 0, 0)),
            pl.BlockSpec((3, 3 * Pp, Pp), lambda n: (0, 0, 0)),
        ],
        out_specs=(
            pl.BlockSpec((1, H, W, Pp), lambda n: (n, 0, 0, 0)),
            pl.BlockSpec((1, 2, Pp), lambda n: (n, 0, 0)),
        ),
        out_shape=(
            jax.ShapeDtypeStruct((N, H, W, Pp), bf16),
            jax.ShapeDtypeStruct((N, 2, Pp), f32),
        ),
        compiler_params=cparams,
    )(scale1, bias1, y1_img, w2p)
    scale2, bias2 = _bn_scale_bias(s2, R, g2, b2)

    # ---- stage 3: BN2+ReLU + conv1x1 (row-tiled grid) ----
    y2_2d = y2.reshape(R, Pp)
    if n_pad:
        y2_2d = jnp.pad(y2_2d, ((0, n_pad), (0, 0)))
    y3, s3 = pl.pallas_call(
        _bn_relu_conv1x1_kernel,
        grid=(nt,),
        in_specs=[
            pl.BlockSpec((1, Pp), lambda i: (0, 0)),
            pl.BlockSpec((1, Pp), lambda i: (0, 0)),
            pl.BlockSpec((tm, Pp), lambda i: (i, 0)),
            pl.BlockSpec((Pp, Cp), lambda i: (0, 0)),
        ],
        out_specs=(
            pl.BlockSpec((tm, Cp), lambda i: (i, 0)),
            pl.BlockSpec((1, 2, Cp), lambda i: (i, 0, 0)),
        ),
        out_shape=(
            jax.ShapeDtypeStruct((Rp, Cp), bf16),
            jax.ShapeDtypeStruct((nt, 2, Cp), f32),
        ),
        compiler_params=cparams,
    )(scale2, bias2, y2_2d, w3p)

    sum_corr = sq_corr = None
    if n_pad:
        # Padded (zero) y2 rows pass BN2+ReLU as max(bias2, 0) and then the 1x1
        # conv -> a constant per-channel row; subtract its exact contribution
        # from the BN3 statistics so the batch stats only cover the R real rows.
        h_pad = jnp.maximum(bias2[0], 0.0).astype(bf16)
        y_pad = jnp.dot(h_pad, w3p, preferred_element_type=f32)      # (Cp,)
        sum_corr = n_pad * y_pad
        sq_corr = n_pad * y_pad * y_pad
    scale3, bias3 = _bn_scale_bias(s3, R, g3, b3, sum_corr, sq_corr)

    # ---- stage 4: BN3 + residual add + ReLU (row-tiled grid) ----
    out2d = pl.pallas_call(
        _bn_add_relu_kernel,
        grid=(nt,),
        in_specs=[
            pl.BlockSpec((1, Cp), lambda i: (0, 0)),
            pl.BlockSpec((1, Cp), lambda i: (0, 0)),
            pl.BlockSpec((tm, Cp), lambda i: (i, 0)),
            pl.BlockSpec((tm, Cp), lambda i: (i, 0)),
        ],
        out_specs=pl.BlockSpec((tm, Cp), lambda i: (i, 0)),
        out_shape=jax.ShapeDtypeStruct((Rp, Cp), f32),
        compiler_params=cparams,
    )(scale3, bias3, y3, x2d)

    return out2d[:R, :Cout].reshape(N, H, W, Cout)


def bottleneck_forward_nchw(x_nchw, params, *, row_tile=None):
    """PyTorch-layout shim.  Keep models NHWC end-to-end to avoid these two
    transposes; they exist only to match the nn.Module's NCHW interface."""
    x = jnp.transpose(x_nchw, (0, 2, 3, 1))
    out = bottleneck_forward_nhwc(x, params, row_tile=row_tile)
    return jnp.transpose(out, (0, 3, 1, 2))


# --------------------------------------------------------------------------
# pure-JAX reference (lax.conv) used only to validate the kernels
# --------------------------------------------------------------------------
def bottleneck_ref(x_nchw, params, matmul_dtype=jnp.float32):
    x = jnp.transpose(x_nchw, (0, 2, 3, 1))
    dn = ('NHWC', 'HWIO', 'NHWC')

    def conv(h, w):
        return lax.conv_general_dilated(
            h.astype(matmul_dtype), w.astype(matmul_dtype), (1, 1), 'SAME',
            dimension_numbers=dn, preferred_element_type=jnp.float32)

    def bn(y, g, b):
        m = jnp.mean(y, axis=(0, 1, 2), keepdims=True)
        v = jnp.mean((y - m) ** 2, axis=(0, 1, 2), keepdims=True)
        return (y - m) * lax.rsqrt(v + EPS) * g.reshape(1, 1, 1, -1) \
            + b.reshape(1, 1, 1, -1)

    w1 = params["w1"].reshape(1, 1, *params["w1"].shape)
    w3 = params["w3"].reshape(1, 1, *params["w3"].shape)
    h = jax.nn.relu(bn(conv(x, w1), params["g1"], params["b1"]))
    h = jax.nn.relu(bn(conv(h, params["w2"]), params["g2"], params["b2"]))
    h = bn(conv(h, w3), params["g3"], params["b3"])
    return jnp.transpose(jax.nn.relu(h + x), (0, 3, 1, 2))


def make_params(key, inplanes, planes):
    expansion = 4
    ks = jax.random.split(key, 9)
    f32 = jnp.float32
    return {
        # conv weights stored channels-last / HWIO for the NHWC kernel
        "w1": 0.1 * jax.random.normal(ks[0], (inplanes, planes), f32),
        "w2": 0.1 * jax.random.normal(ks[1], (3, 3, planes, planes), f32),
        "w3": 0.1 * jax.random.normal(ks[2], (planes, planes * expansion), f32),
        "g1": 1.0 + 0.1 * jax.random.normal(ks[3], (planes,), f32),
        "b1": 0.1 * jax.random.normal(ks[4], (planes,), f32),
        "g2": 1.0 + 0.1 * jax.random.normal(ks[5], (planes,), f32),
        "b2": 0.1 * jax.random.normal(ks[6], (planes,), f32),
        "g3": 1.0 + 0.1 * jax.random.normal(ks[7], (planes * expansion,), f32),
        "b3": 0.1 * jax.random.normal(ks[8], (planes * expansion,), f32),
    }


def _assert_close(out, ref, tol, tag):
    # normalized max error (bf16 activation storage makes per-element atol
    # comparisons against an f32-activation reference too brittle)
    denom = float(jnp.max(jnp.abs(ref))) + 1e-6
    err = float(jnp.max(jnp.abs(out - ref))) / denom
    assert err < tol, f"{tag}: normalized max error {err} >= {tol}"


if __name__ == "__main__":
    key = jax.random.PRNGKey(0)
    k_x, k_p = jax.random.split(key)

    planes = 4
    inplanes = planes * 4          # downsample=None => residual requires this
    N, H, W = 2, 16, 16

    x_nchw = jax.random.normal(k_x, (N, inplanes, H, W), jnp.float32)
    params = make_params(k_p, inplanes, planes)

    fwd = jax.jit(bottleneck_forward_nchw, static_argnames=("row_tile",))

    # --- case 1: exact-divisor row tiling (multi-step grids, no padding) ---
    out = jax.block_until_ready(fwd(x_nchw, params, row_tile=128))
    assert out.shape == (N, inplanes, H, W)
    _assert_close(out, bottleneck_ref(x_nchw, params, jnp.bfloat16), 3e-2, "bf16 ref")
    _assert_close(out, bottleneck_ref(x_nchw, params, jnp.float32), 1e-1, "f32 ref")

    # --- case 2: awkward row count -> padded-row fallback + BN3 correction ---
    x2 = jax.random.normal(k_x, (1, inplanes, 24, 16), jnp.float32)
    out2 = jax.block_until_ready(fwd(x2, params, row_tile=160))  # 384 rows, tile 160
    assert out2.shape == (1, inplanes, 24, 16)
    _assert_close(out2, bottleneck_ref(x2, params, jnp.bfloat16), 3e-2, "bf16 ref (pad)")

    print("KERNEL_OK")
</pallas_src>

<mosaic_0001>
module attributes {stable_mosaic.version = 11 : i64} {
  func.func @_bn_relu_conv3x3_kernel(%arg0: i32, %arg1: memref<1x128xf32, #tpu.memory_space<vmem>>, %arg2: memref<1x128xf32, #tpu.memory_space<vmem>>, %arg3: memref<1x16x16x128xbf16, #tpu.memory_space<vmem>>, %arg4: memref<3x384x128xbf16, #tpu.memory_space<vmem>>, %arg5: memref<1x16x16x128xbf16, #tpu.memory_space<vmem>>, %arg6: memref<1x2x128xf32, #tpu.memory_space<vmem>>) attributes {dimension_semantics = [#tpu.dimension_semantics<parallel>], iteration_bounds = array<i64: 2>, scalar_prefetch = 0 : i64, scratch_operands = 0 : i64, tpu.core_type = #tpu.core_type<tc>, window_params = [{pipeline_mode = #tpu.pipeline_mode<synchronous>, transform_indices = @transform_0, window_bounds = array<i64: 1, 128>}, {pipeline_mode = #tpu.pipeline_mode<synchronous>, transform_indices = @transform_1, window_bounds = array<i64: 1, 128>}, {transform_indices = @transform_2, window_bounds = array<i64: 1, 16, 16, 128>}, {pipeline_mode = #tpu.pipeline_mode<synchronous>, transform_indices = @transform_3, window_bounds = array<i64: 3, 384, 128>}, {transform_indices = @transform_4, window_bounds = array<i64: 1, 16, 16, 128>}, {transform_indices = @transform_5, window_bounds = array<i64: 1, 2, 128>}]} {
    %c0 = arith.constant 0 : index
    %c0_0 = arith.constant 0 : index
    %c0_1 = arith.constant 0 : index
    %c0_2 = arith.constant 0 : index
    %0 = vector.load %arg3[%c0, %c0_0, %c0_1, %c0_2] : memref<1x16x16x128xbf16, #tpu.memory_space<vmem>>, vector<1x16x16x128xbf16>
    %1 = vector.shape_cast %0 : vector<1x16x16x128xbf16> to vector<16x16x128xbf16>
    %2 = arith.extf %1 : vector<16x16x128xbf16> to vector<16x16x128xf32>
    %c0_3 = arith.constant 0 : index
    %c0_4 = arith.constant 0 : index
    %3 = vector.load %arg1[%c0_3, %c0_4] : memref<1x128xf32, #tpu.memory_space<vmem>>, vector<1x128xf32>
    %4 = vector.shape_cast %3 : vector<1x128xf32> to vector<128xf32>
    %5 = vector.shape_cast %4 : vector<128xf32> to vector<1x1x128xf32>
    %6 = vector.broadcast %5 : vector<1x1x128xf32> to vector<16x16x128xf32>
    %7 = arith.mulf %2, %6 : vector<16x16x128xf32>
    %c0_5 = arith.constant 0 : index
    %c0_6 = arith.constant 0 : index
    %8 = vector.load %arg2[%c0_5, %c0_6] : memref<1x128xf32, #tpu.memory_space<vmem>>, vector<1x128xf32>
    %9 = vector.shape_cast %8 : vector<1x128xf32> to vector<128xf32>
    %10 = vector.shape_cast %9 : vector<128xf32> to vector<1x1x128xf32>
    %11 = vector.broadcast %10 : vector<1x1x128xf32> to vector<16x16x128xf32>
    %12 = arith.addf %7, %11 : vector<16x16x128xf32>
    %cst = arith.constant 0.000000e+00 : f32
    %13 = vector.broadcast %cst : f32 to vector<16x16x128xf32>
    %14 = arith.maximumf %12, %13 : vector<16x16x128xf32>
    %cst_7 = arith.constant 1.000000e+00 : f32
    %15 = vector.broadcast %cst_7 : f32 to vector<1x15x1xf32>
    %cst_8 = arith.constant 0.000000e+00 : f32
    %16 = vector.broadcast %cst_8 : f32 to vector<1x1x1xf32>
    %17 = tpu.concatenate %16, %15 in 1 : vector<1x1x1xf32>, vector<1x15x1xf32> -> vector<1x16x1xf32>
    %18 = tpu.concatenate %15, %16 in 1 : vector<1x15x1xf32>, vector<1x1x1xf32> -> vector<1x16x1xf32>
    %c1_i32 = arith.constant 1 : i32
    %19 = tpu.dynamic_rotate %14 by %c1_i32 dim 1 : vector<16x16x128xf32>, i32 -> vector<16x16x128xf32>
    %20 = vector.broadcast %17 : vector<1x16x1xf32> to vector<16x16x128xf32>
    %21 = arith.mulf %19, %20 : vector<16x16x128xf32>
    %22 = arith.truncf %21 : vector<16x16x128xf32> to vector<16x16x128xbf16>
    %c15_i32 = arith.constant 15 : i32
    %23 = tpu.dynamic_rotate %14 by %c15_i32 dim 1 : vector<16x16x128xf32>, i32 -> vector<16x16x128xf32>
    %24 = vector.broadcast %18 : vector<1x16x1xf32> to vector<16x16x128xf32>
    %25 = arith.mulf %23, %24 : vector<16x16x128xf32>
    %26 = arith.truncf %25 : vector<16x16x128xf32> to vector<16x16x128xbf16>
    %27 = arith.truncf %14 : vector<16x16x128xf32> to vector<16x16x128xbf16>
    %28 = tpu.concatenate %22, %27, %26 in 2 : vector<16x16x128xbf16>, vector<16x16x128xbf16>, vector<16x16x128xbf16> -> vector<16x16x384xbf16>
    %cst_9 = arith.constant 0.000000e+00 : bf16
    %29 = vector.broadcast %cst_9 : bf16 to vector<1x16x384xbf16>
    %30 = tpu.concatenate %29, %28, %29 in 0 : vector<1x16x384xbf16>, vector<16x16x384xbf16>, vector<1x16x384xbf16> -> vector<18x16x384xbf16>
    %cst_10 = arith.constant 0.000000e+00 : f32
    %31 = vector.broadcast %cst_10 : f32 to vector<256x128xf32>
    %32 = vector.extract_strided_slice %30 {offsets = [0, 0, 0], sizes = [16, 16, 384], strides = [1, 1, 1]} : vector<18x16x384xbf16> to vector<16x16x384xbf16>
    %33 = vector.shape_cast %32 : vector<16x16x384xbf16> to vector<256x384xbf16>
    %c0_11 = arith.constant 0 : index
    %c0_12 = arith.constant 0 : index
    %c0_13 = arith.constant 0 : index
    %34 = vector.load %arg4[%c0_11, %c0_12, %c0_13] : memref<3x384x128xbf16, #tpu.memory_space<vmem>>, vector<1x384x128xbf16>
    %35 = vector.shape_cast %34 : vector<1x384x128xbf16> to vector<384x128xbf16>
    %cst_14 = arith.constant dense<0.000000e+00> : vector<256x128xf32>
    %36 = tpu.matmul %33, %35, %cst_14 {dimension_numbers = #tpu.dot_dimension_numbers<[1], [0], [0], [1], [0, 0, 1, 1], [], []>} : vector<256x384xbf16>, vector<384x128xbf16>, vector<256x128xf32> -> vector<256x128xf32>
    %37 = arith.addf %31, %36 : vector<256x128xf32>
    %38 = vector.extract_strided_slice %30 {offsets = [1, 0, 0], sizes = [16, 16, 384], strides = [1, 1, 1]} : vector<18x16x384xbf16> to vector<16x16x384xbf16>
    %39 = vector.shape_cast %38 : vector<16x16x384xbf16> to vector<256x384xbf16>
    %c1 = arith.constant 1 : index
    %c0_15 = arith.constant 0 : index
    %c0_16 = arith.constant 0 : index
    %40 = vector.load %arg4[%c1, %c0_15, %c0_16] : memref<3x384x128xbf16, #tpu.memory_space<vmem>>, vector<1x384x128xbf16>
    %41 = vector.shape_cast %40 : vector<1x384x128xbf16> to vector<384x128xbf16>
    %cst_17 = arith.constant dense<0.000000e+00> : vector<256x128xf32>
    %42 = tpu.matmul %39, %41, %cst_17 {dimension_numbers = #tpu.dot_dimension_numbers<[1], [0], [0], [1], [0, 0, 1, 1], [], []>} : vector<256x384xbf16>, vector<384x128xbf16>, vector<256x128xf32> -> vector<256x128xf32>
    %43 = arith.addf %37, %42 : vector<256x128xf32>
    %44 = vector.extract_strided_slice %30 {offsets = [2, 0, 0], sizes = [16, 16, 384], strides = [1, 1, 1]} : vector<18x16x384xbf16> to vector<16x16x384xbf16>
    %45 = vector.shape_cast %44 : vector<16x16x384xbf16> to vector<256x384xbf16>
    %c2 = arith.constant 2 : index
    %c0_18 = arith.constant 0 : index
    %c0_19 = arith.constant 0 : index
    %46 = vector.load %arg4[%c2, %c0_18, %c0_19] : memref<3x384x128xbf16, #tpu.memory_space<vmem>>, vector<1x384x128xbf16>
    %47 = vector.shape_cast %46 : vector<1x384x128xbf16> to vector<384x128xbf16>
    %cst_20 = arith.constant dense<0.000000e+00> : vector<256x128xf32>
    %48 = tpu.matmul %45, %47, %cst_20 {dimension_numbers = #tpu.dot_dimension_numbers<[1], [0], [0], [1], [0, 0, 1, 1], [], []>} : vector<256x384xbf16>, vector<384x128xbf16>, vector<256x128xf32> -> vector<256x128xf32>
    %49 = arith.addf %43, %48 : vector<256x128xf32>
    %50 = vector.shape_cast %49 : vector<256x128xf32> to vector<16x16x128xf32>
    %51 = arith.truncf %50 : vector<16x16x128xf32> to vector<16x16x128xbf16>
    %c0_21 = arith.constant 0 : index
    %c0_22 = arith.constant 0 : index
    %c0_23 = arith.constant 0 : index
    %c0_24 = arith.constant 0 : index
    %52 = vector.load %arg5[%c0_21, %c0_22, %c0_23, %c0_24] : memref<1x16x16x128xbf16, #tpu.memory_space<vmem>>, vector<1x16x16x128xbf16>
    %53 = vector.shape_cast %52 : vector<1x16x16x128xbf16> to vector<16x16x128xbf16>
    %54 = vector.shape_cast %51 : vector<16x16x128xbf16> to vector<1x16x16x128xbf16>
    tpu.vector_store %arg5[%c0_21, %c0_22, %c0_23, %c0_24], %54 {strides = array<i32>} : memref<1x16x16x128xbf16, #tpu.memory_space<vmem>>, vector<1x16x16x128xbf16>,
    %cst_25 = arith.constant dense<0.000000e+00> : vector<128xf32>
    %55 = vector.multi_reduction <add>, %49, %cst_25 [0] : vector<256x128xf32> to vector<128xf32>
    %56 = vector.shape_cast %55 : vector<128xf32> to vector<1x128xf32>
    %57 = arith.mulf %49, %49 : vector<256x128xf32>
    %cst_26 = arith.constant dense<0.000000e+00> : vector<128xf32>
    %58 = vector.multi_reduction <add>, %57, %cst_26 [0] : vector<256x128xf32> to vector<128xf32>
    %59 = vector.shape_cast %58 : vector<128xf32> to vector<1x128xf32>
    %60 = tpu.concatenate %56, %59 in 0 : vector<1x128xf32>, vector<1x128xf32> -> vector<2x128xf32>
    %c0_27 = arith.constant 0 : index
    %c0_28 = arith.constant 0 : index
    %c0_29 = arith.constant 0 : index
    %61 = vector.load %arg6[%c0_27, %c0_28, %c0_29] : memref<1x2x128xf32, #tpu.memory_space<vmem>>, vector<1x2x128xf32>
    %62 = vector.shape_cast %61 : vector<1x2x128xf32> to vector<2x128xf32>
    %63 = vector.shape_cast %60 : vector<2x128xf32> to vector<1x2x128xf32>
    tpu.vector_store %arg6[%c0_27, %c0_28, %c0_29], %63 {strides = array<i32>} : memref<1x2x128xf32, #tpu.memory_space<vmem>>, vector<1x2x128xf32>,
    return
  }
  func.func @transform_0(%arg0: i32) -> (i32, i32) {
    %c0_i32 = arith.constant 0 : i32
    %c0_i32_0 = arith.constant 0 : i32
    %c0_i32_1 = arith.constant 0 : i32
    return %c0_i32, %c0_i32_0 : i32, i32
  }
  func.func @transform_1(%arg0: i32) -> (i32, i32) {
    %c0_i32 = arith.constant 0 : i32
    %c0_i32_0 = arith.constant 0 : i32
    %c0_i32_1 = arith.constant 0 : i32
    return %c0_i32, %c0_i32_0 : i32, i32
  }
  func.func @transform_2(%arg0: i32) -> (i32, i32, i32, i32) {
    %c0_i32 = arith.constant 0 : i32
    %c0_i32_0 = arith.constant 0 : i32
    %c0_i32_1 = arith.constant 0 : i32
    %c0_i32_2 = arith.constant 0 : i32
    return %arg0, %c0_i32, %c0_i32_0, %c0_i32_1 : i32, i32, i32, i32
  }
  func.func @transform_3(%arg0: i32) -> (i32, i32, i32) {
    %c0_i32 = arith.constant 0 : i32
    %c0_i32_0 = arith.constant 0 : i32
    %c0_i32_1 = arith.constant 0 : i32
    %c0_i32_2 = arith.constant 0 : i32
    return %c0_i32, %c0_i32_0, %c0_i32_1 : i32, i32, i32
  }
  func.func @transform_4(%arg0: i32) -> (i32, i32, i32, i32) {
    %c0_i32 = arith.constant 0 : i32
    %c0_i32_0 = arith.constant 0 : i32
    %c0_i32_1 = arith.constant 0 : i32
    %c0_i32_2 = arith.constant 0 : i32
    return %arg0, %c0_i32, %c0_i32_0, %c0_i32_1 : i32, i32, i32, i32
  }
  func.func @transform_5(%arg0: i32) -> (i32, i32, i32) {
    %c0_i32 = arith.constant 0 : i32
    %c0_i32_0 = arith.constant 0 : i32
    %c0_i32_1 = arith.constant 0 : i32
    return %arg0, %c0_i32, %c0_i32_0 : i32, i32, i32
  }
}

module attributes {stable_mosaic.version = 11 : i64} {
  func.func @_conv1x1_kernel(%arg0: i32, %arg1: memref<128x128xbf16, #tpu.memory_space<vmem>>, %arg2: memref<128x128xbf16, #tpu.memory_space<vmem>>, %arg3: memref<128x128xbf16, #tpu.memory_space<vmem>>, %arg4: memref<1x2x128xf32, #tpu.memory_space<vmem>>) attributes {dimension_semantics = [#tpu.dimension_semantics<parallel>], iteration_bounds = array<i64: 4>, scalar_prefetch = 0 : i64, scratch_operands = 0 : i64, tpu.core_type = #tpu.core_type<tc>, window_params = [{transform_indices = @transform_0, window_bounds = array<i64: 128, 128>}, {pipeline_mode = #tpu.pipeline_mode<synchronous>, transform_indices = @transform_1, window_bounds = array<i64: 128, 128>}, {transform_indices = @transform_2, window_bounds = array<i64: 128, 128>}, {transform_indices = @transform_3, window_bounds = array<i64: 1, 2, 128>}]} {
    %c0 = arith.constant 0 : index
    %c0_0 = arith.constant 0 : index
    %0 = vector.load %arg1[%c0, %c0_0] : memref<128x128xbf16, #tpu.memory_space<vmem>>, vector<128x128xbf16>
    %c0_1 = arith.constant 0 : index
    %c0_2 = arith.constant 0 : index
    %1 = vector.load %arg2[%c0_1, %c0_2] : memref<128x128xbf16, #tpu.memory_space<vmem>>, vector<128x128xbf16>
    %cst = arith.constant dense<0.000000e+00> : vector<128x128xf32>
    %2 = tpu.matmul %0, %1, %cst {dimension_numbers = #tpu.dot_dimension_numbers<[1], [0], [0], [1], [0, 0, 1, 1], [], []>} : vector<128x128xbf16>, vector<128x128xbf16>, vector<128x128xf32> -> vector<128x128xf32>
    %3 = arith.truncf %2 : vector<128x128xf32> to vector<128x128xbf16>
    %c0_3 = arith.constant 0 : index
    %c0_4 = arith.constant 0 : index
    %4 = vector.load %arg3[%c0_3, %c0_4] : memref<128x128xbf16, #tpu.memory_space<vmem>>, vector<128x128xbf16>
    tpu.vector_store %arg3[%c0_3, %c0_4], %3 {strides = array<i32>} : memref<128x128xbf16, #tpu.memory_space<vmem>>, vector<128x128xbf16>,
    %cst_5 = arith.constant dense<0.000000e+00> : vector<128xf32>
    %5 = vector.multi_reduction <add>, %2, %cst_5 [0] : vector<128x128xf32> to vector<128xf32>
    %6 = vector.shape_cast %5 : vector<128xf32> to vector<1x128xf32>
    %7 = arith.mulf %2, %2 : vector<128x128xf32>
    %cst_6 = arith.constant dense<0.000000e+00> : vector<128xf32>
    %8 = vector.multi_reduction <add>, %7, %cst_6 [0] : vector<128x128xf32> to vector<128xf32>
    %9 = vector.shape_cast %8 : vector<128xf32> to vector<1x128xf32>
    %10 = tpu.concatenate %6, %9 in 0 : vector<1x128xf32>, vector<1x128xf32> -> vector<2x128xf32>
    %c0_7 = arith.constant 0 : index
    %c0_8 = arith.constant 0 : index
    %c0_9 = arith.constant 0 : index
    %11 = vector.load %arg4[%c0_7, %c0_8, %c0_9] : memref<1x2x128xf32, #tpu.memory_space<vmem>>, vector<1x2x128xf32>
    %12 = vector.shape_cast %11 : vector<1x2x128xf32> to vector<2x128xf32>
    %13 = vector.shape_cast %10 : vector<2x128xf32> to vector<1x2x128xf32>
    tpu.vector_store %arg4[%c0_7, %c0_8, %c0_9], %13 {strides = array<i32>} : memref<1x2x128xf32, #tpu.memory_space<vmem>>, vector<1x2x128xf32>,
    return
  }
  func.func @transform_0(%arg0: i32) -> (i32, i32) {
    %c0_i32 = arith.constant 0 : i32
    %c0_i32_0 = arith.constant 0 : i32
    return %arg0, %c0_i32 : i32, i32
  }
  func.func @transform_1(%arg0: i32) -> (i32, i32) {
    %c0_i32 = arith.constant 0 : i32
    %c0_i32_0 = arith.constant 0 : i32
    %c0_i32_1 = arith.constant 0 : i32
    return %c0_i32, %c0_i32_0 : i32, i32
  }
  func.func @transform_2(%arg0: i32) -> (i32, i32) {
    %c0_i32 = arith.constant 0 : i32
    %c0_i32_0 = arith.constant 0 : i32
    return %arg0, %c0_i32 : i32, i32
  }
  func.func @transform_3(%arg0: i32) -> (i32, i32, i32) {
    %c0_i32 = arith.constant 0 : i32
    %c0_i32_0 = arith.constant 0 : i32
    %c0_i32_1 = arith.constant 0 : i32
    return %arg0, %c0_i32, %c0_i32_0 : i32, i32, i32
  }
}

module attributes {stable_mosaic.version = 11 : i64} {
  func.func @_bn_add_relu_kernel(%arg0: i32, %arg1: memref<1x128xf32, #tpu.memory_space<vmem>>, %arg2: memref<1x128xf32, #tpu.memory_space<vmem>>, %arg3: memref<128x128xbf16, #tpu.memory_space<vmem>>, %arg4: memref<128x128xbf16, #tpu.memory_space<vmem>>, %arg5: memref<128x128xf32, #tpu.memory_space<vmem>>) attributes {dimension_semantics = [#tpu.dimension_semantics<parallel>], iteration_bounds = array<i64: 4>, scalar_prefetch = 0 : i64, scratch_operands = 0 : i64, tpu.core_type = #tpu.core_type<tc>, window_params = [{pipeline_mode = #tpu.pipeline_mode<synchronous>, transform_indices = @transform_0, window_bounds = array<i64: 1, 128>}, {pipeline_mode = #tpu.pipeline_mode<synchronous>, transform_indices = @transform_1, window_bounds = array<i64: 1, 128>}, {transform_indices = @transform_2, window_bounds = array<i64: 128, 128>}, {transform_indices = @transform_3, window_bounds = array<i64: 128, 128>}, {transform_indices = @transform_4, window_bounds = array<i64: 128, 128>}]} {
    %c0 = arith.constant 0 : index
    %c0_0 = arith.constant 0 : index
    %0 = vector.load %arg3[%c0, %c0_0] : memref<128x128xbf16, #tpu.memory_space<vmem>>, vector<128x128xbf16>
    %1 = arith.extf %0 : vector<128x128xbf16> to vector<128x128xf32>
    %c0_1 = arith.constant 0 : index
    %c0_2 = arith.constant 0 : index
    %2 = vector.load %arg1[%c0_1, %c0_2] : memref<1x128xf32, #tpu.memory_space<vmem>>, vector<1x128xf32>
    %3 = vector.shape_cast %2 : vector<1x128xf32> to vector<128xf32>
    %4 = vector.shape_cast %3 : vector<128xf32> to vector<1x128xf32>
    %5 = vector.broadcast %4 : vector<1x128xf32> to vector<128x128xf32>
    %6 = arith.mulf %1, %5 : vector<128x128xf32>
    %c0_3 = arith.constant 0 : index
    %c0_4 = arith.constant 0 : index
    %7 = vector.load %arg2[%c0_3, %c0_4] : memref<1x128xf32, #tpu.memory_space<vmem>>, vector<1x128xf32>
    %8 = vector.shape_cast %7 : vector<1x128xf32> to vector<128xf32>
    %9 = vector.shape_cast %8 : vector<128xf32> to vector<1x128xf32>
    %10 = vector.broadcast %9 : vector<1x128xf32> to vector<128x128xf32>
    %11 = arith.addf %6, %10 : vector<128x128xf32>
    %c0_5 = arith.constant 0 : index
    %c0_6 = arith.constant 0 : index
    %12 = vector.load %arg4[%c0_5, %c0_6] : memref<128x128xbf16, #tpu.memory_space<vmem>>, vector<128x128xbf16>
    %13 = arith.extf %12 : vector<128x128xbf16> to vector<128x128xf32>
    %14 = arith.addf %11, %13 : vector<128x128xf32>
    %cst = arith.constant 0.000000e+00 : f32
    %15 = vector.broadcast %cst : f32 to vector<128x128xf32>
    %16 = arith.maximumf %14, %15 : vector<128x128xf32>
    %c0_7 = arith.constant 0 : index
    %c0_8 = arith.constant 0 : index
    %17 = vector.load %arg5[%c0_7, %c0_8] : memref<128x128xf32, #tpu.memory_space<vmem>>, vector<128x128xf32>
    tpu.vector_store %arg5[%c0_7, %c0_8], %16 {strides = array<i32>} : memref<128x128xf32, #tpu.memory_space<vmem>>, vector<128x128xf32>,
    return
  }
  func.func @transform_0(%arg0: i32) -> (i32, i32) {
    %c0_i32 = arith.constant 0 : i32
    %c0_i32_0 = arith.constant 0 : i32
    %c0_i32_1 = arith.constant 0 : i32
    return %c0_i32, %c0_i32_0 : i32, i32
  }
  func.func @transform_1(%arg0: i32) -> (i32, i32) {
    %c0_i32 = arith.constant 0 : i32
    %c0_i32_0 = arith.constant 0 : i32
    %c0_i32_1 = arith.constant 0 : i32
    return %c0_i32, %c0_i32_0 : i32, i32
  }
  func.func @transform_2(%arg0: i32) -> (i32, i32) {
    %c0_i32 = arith.constant 0 : i32
    %c0_i32_0 = arith.constant 0 : i32
    return %arg0, %c0_i32 : i32, i32
  }
  func.func @transform_3(%arg0: i32) -> (i32, i32) {
    %c0_i32 = arith.constant 0 : i32
    %c0_i32_0 = arith.constant 0 : i32
    return %arg0, %c0_i32 : i32, i32
  }
  func.func @transform_4(%arg0: i32) -> (i32, i32) {
    %c0_i32 = arith.constant 0 : i32
    %c0_i32_0 = arith.constant 0 : i32
    return %arg0, %c0_i32 : i32, i32
  }
}

module attributes {stable_mosaic.version = 11 : i64} {
  func.func @_bn_relu_conv1x1_kernel(%arg0: i32, %arg1: memref<1x128xf32, #tpu.memory_space<vmem>>, %arg2: memref<1x128xf32, #tpu.memory_space<vmem>>, %arg3: memref<128x128xbf16, #tpu.memory_space<vmem>>, %arg4: memref<128x128xbf16, #tpu.memory_space<vmem>>, %arg5: memref<128x128xbf16, #tpu.memory_space<vmem>>, %arg6: memref<1x2x128xf32, #tpu.memory_space<vmem>>) attributes {dimension_semantics = [#tpu.dimension_semantics<parallel>], iteration_bounds = array<i64: 4>, scalar_prefetch = 0 : i64, scratch_operands = 0 : i64, tpu.core_type = #tpu.core_type<tc>, window_params = [{pipeline_mode = #tpu.pipeline_mode<synchronous>, transform_indices = @transform_0, window_bounds = array<i64: 1, 128>}, {pipeline_mode = #tpu.pipeline_mode<synchronous>, transform_indices = @transform_1, window_bounds = array<i64: 1, 128>}, {transform_indices = @transform_2, window_bounds = array<i64: 128, 128>}, {pipeline_mode = #tpu.pipeline_mode<synchronous>, transform_indices = @transform_3, window_bounds = array<i64: 128, 128>}, {transform_indices = @transform_4, window_bounds = array<i64: 128, 128>}, {transform_indices = @transform_5, window_bounds = array<i64: 1, 2, 128>}]} {
    %c0 = arith.constant 0 : index
    %c0_0 = arith.constant 0 : index
    %0 = vector.load %arg3[%c0, %c0_0] : memref<128x128xbf16, #tpu.memory_space<vmem>>, vector<128x128xbf16>
    %1 = arith.extf %0 : vector<128x128xbf16> to vector<128x128xf32>
    %c0_1 = arith.constant 0 : index
    %c0_2 = arith.constant 0 : index
    %2 = vector.load %arg1[%c0_1, %c0_2] : memref<1x128xf32, #tpu.memory_space<vmem>>, vector<1x128xf32>
    %3 = vector.shape_cast %2 : vector<1x128xf32> to vector<128xf32>
    %4 = vector.shape_cast %3 : vector<128xf32> to vector<1x128xf32>
    %5 = vector.broadcast %4 : vector<1x128xf32> to vector<128x128xf32>
    %6 = arith.mulf %1, %5 : vector<128x128xf32>
    %c0_3 = arith.constant 0 : index
    %c0_4 = arith.constant 0 : index
    %7 = vector.load %arg2[%c0_3, %c0_4] : memref<1x128xf32, #tpu.memory_space<vmem>>, vector<1x128xf32>
    %8 = vector.shape_cast %7 : vector<1x128xf32> to vector<128xf32>
    %9 = vector.shape_cast %8 : vector<128xf32> to vector<1x128xf32>
    %10 = vector.broadcast %9 : vector<1x128xf32> to vector<128x128xf32>
    %11 = arith.addf %6, %10 : vector<128x128xf32>
    %cst = arith.constant 0.000000e+00 : f32
    %12 = vector.broadcast %cst : f32 to vector<128x128xf32>
    %13 = arith.maximumf %11, %12 : vector<128x128xf32>
    %14 = arith.truncf %13 : vector<128x128xf32> to vector<128x128xbf16>
    %c0_5 = arith.constant 0 : index
    %c0_6 = arith.constant 0 : index
    %15 = vector.load %arg4[%c0_5, %c0_6] : memref<128x128xbf16, #tpu.memory_space<vmem>>, vector<128x128xbf16>
    %cst_7 = arith.constant dense<0.000000e+00> : vector<128x128xf32>
    %16 = tpu.matmul %14, %15, %cst_7 {dimension_numbers = #tpu.dot_dimension_numbers<[1], [0], [0], [1], [0, 0, 1, 1], [], []>} : vector<128x128xbf16>, vector<128x128xbf16>, vector<128x128xf32> -> vector<128x128xf32>
    %17 = arith.truncf %16 : vector<128x128xf32> to vector<128x128xbf16>
    %c0_8 = arith.constant 0 : index
    %c0_9 = arith.constant 0 : index
    %18 = vector.load %arg5[%c0_8, %c0_9] : memref<128x128xbf16, #tpu.memory_space<vmem>>, vector<128x128xbf16>
    tpu.vector_store %arg5[%c0_8, %c0_9], %17 {strides = array<i32>} : memref<128x128xbf16, #tpu.memory_space<vmem>>, vector<128x128xbf16>,
    %cst_10 = arith.constant dense<0.000000e+00> : vector<128xf32>
    %19 = vector.multi_reduction <add>, %16, %cst_10 [0] : vector<128x128xf32> to vector<128xf32>
    %20 = vector.shape_cast %19 : vector<128xf32> to vector<1x128xf32>
    %21 = arith.mulf %16, %16 : vector<128x128xf32>
    %cst_11 = arith.constant dense<0.000000e+00> : vector<128xf32>
    %22 = vector.multi_reduction <add>, %21, %cst_11 [0] : vector<128x128xf32> to vector<128xf32>
    %23 = vector.shape_cast %22 : vector<128xf32> to vector<1x128xf32>
    %24 = tpu.concatenate %20, %23 in 0 : vector<1x128xf32>, vector<1x128xf32> -> vector<2x128xf32>
    %c0_12 = arith.constant 0 : index
    %c0_13 = arith.constant 0 : index
    %c0_14 = arith.constant 0 : index
    %25 = vector.load %arg6[%c0_12, %c0_13, %c0_14] : memref<1x2x128xf32, #tpu.memory_space<vmem>>, vector<1x2x128xf32>
    %26 = vector.shape_cast %25 : vector<1x2x128xf32> to vector<2x128xf32>
    %27 = vector.shape_cast %24 : vector<2x128xf32> to vector<1x2x128xf32>
    tpu.vector_store %arg6[%c0_12, %c0_13, %c0_14], %27 {strides = array<i32>} : memref<1x2x128xf32, #tpu.memory_space<vmem>>, vector<1x2x128xf32>,
    return
  }
  func.func @transform_0(%arg0: i32) -> (i32, i32) {
    %c0_i32 = arith.constant 0 : i32
    %c0_i32_0 = arith.constant 0 : i32
    %c0_i32_1 = arith.constant 0 : i32
    return %c0_i32, %c0_i32_0 : i32, i32
  }
  func.func @transform_1(%arg0: i32) -> (i32, i32) {
    %c0_i32 = arith.constant 0 : i32
    %c0_i32_0 = arith.constant 0 : i32
    %c0_i32_1 = arith.constant 0 : i32
    return %c0_i32, %c0_i32_0 : i32, i32
  }
  func.func @transform_2(%arg0: i32) -> (i32, i32) {
    %c0_i32 = arith.constant 0 : i32
    %c0_i32_0 = arith.constant 0 : i32
    return %arg0, %c0_i32 : i32, i32
  }
  func.func @transform_3(%arg0: i32) -> (i32, i32) {
    %c0_i32 = arith.constant 0 : i32
    %c0_i32_0 = arith.constant 0 : i32
    %c0_i32_1 = arith.constant 0 : i32
    return %c0_i32, %c0_i32_0 : i32, i32
  }
  func.func @transform_4(%arg0: i32) -> (i32, i32) {
    %c0_i32 = arith.constant 0 : i32
    %c0_i32_0 = arith.constant 0 : i32
    return %arg0, %c0_i32 : i32, i32
  }
  func.func @transform_5(%arg0: i32) -> (i32, i32, i32) {
    %c0_i32 = arith.constant 0 : i32
    %c0_i32_0 = arith.constant 0 : i32
    %c0_i32_1 = arith.constant 0 : i32
    return %arg0, %c0_i32, %c0_i32_0 : i32, i32, i32
  }
}

</mosaic_0001>

<llo_original>
// kernel: bottleneck_forward_nchw.7
$region0: #{bottleneck_forward_nchw.7}
  #allocation0 [shape = 'u32[]', space=smem, size = 0x4, offset = 0x4, fixed_abs, tag = 'smem constant byte address 0x4 - core index']
  #allocation1 [shape = 'u32[144,128]{1,0:T(1,128)}', space=vmem, size = 0x12000, scoped, tag = 'internal scratch']
  %s0 = inlined_call_operand.vmem [shape: f32[1,128], index: 0, kind: input, shape index: {}]
  %s1 = inlined_call_operand.vmem [shape: f32[1,128], index: 1, kind: input, shape index: {}]
  %s2 = inlined_call_operand.vmem [shape: bf16[512,128], index: 2, kind: input, shape index: {}]
  %s3 = inlined_call_operand.vmem [shape: bf16[512,128], index: 3, kind: input, shape index: {}]
  %s4 = inlined_call_operand.vmem [shape: f32[512,128], index: 4, kind: output, shape index: {}]
  %s5 = sld [smem:[#allocation0]]
  $region49: #{bottleneck_forward_nchw.7} parent=0
    _
  %s7 = ssub.s32 1, %s5
  %s8 = scalar_select 0, %s7, %s5
  loop: start=0, step=1, limit=6
  $region2: #{bottleneck_forward_nchw.7} parent=0 // loop_pre_header
    _
  $region3: #{bottleneck_forward_nchw.7} parent=0 // loop_header
    %s10 = sphi 0, %s14
    %p11 = scmp.ge.s32.totalorder %s10, 6
    %s18 = sphi 0, %s18
    %s20 = sphi 0, %s18
    %s21 = sphi 0, %s20
    %s35 = sphi 0, %s21
    %s39 = sphi 0, %s39
    %s41 = sphi 0, %s39
    %s42 = sphi 0, %s41
    %s56 = sphi 0, %s42
    %s62 = sphi 0, %s64
    %s65 = sphi 0, %s62
    %s66 = sphi 0, %s65
    %s82 = sphi 0, %s66
    %s88 = sphi 0, %s90
    %s91 = sphi 0, %s88
    %s92 = sphi 0, %s91
    %s108 = sphi 0, %s92
    %s114 = sphi 0, %s116
    %s117 = sphi 0, %s114
    %s118 = sphi 0, %s117
    %s134 = sphi 0, %s118
  $region4: #{bottleneck_forward_nchw.7} parent=0 // loop_header_branch
    %13 = sbr.rel (%p11) target = $region8
  $region5: #{bottleneck_forward_nchw.7} parent=0 // loop_body
    %s15 = ssub.s32 %s10, 1
    %s16 = ssub.s32 %s10, 2
    %s17 = sadd.s32 %s10, 1
    %s19 = sadd.s32 %s18, 1
    %p22 = scmp.eq.s32.totalorder %s10, 3
    %p23 = scmp.ne.s32.totalorder %s18, %s20
    %p24 = scmp.eq.s32.totalorder %s10, 0
    %p25 = por %p23, %p24
    %p26 = scmp.ne.s32.totalorder %s18, %s20
    %p27 = scmp.eq.s32.totalorder %s15, 3
    %p28 = por %p26, %p27
    %p29 = scmp.ne.s32.totalorder %s20, %s21
    %p30 = scmp.eq.s32.totalorder %s15, 0
    %p31 = por %p29, %p30
    %p32 = scmp.ne.s32.totalorder %s20, %s21
    %p33 = scmp.eq.s32.totalorder %s16, 3
    %p34 = por %p32, %p33
    %p36 = scmp.ne.s32.totalorder %s21, %s35
    %p37 = scmp.eq.s32.totalorder %s16, 0
    %p38 = por %p36, %p37
    %s40 = sadd.s32 %s39, 1
    %p43 = scmp.eq.s32.totalorder %s10, 3
    %p44 = scmp.ne.s32.totalorder %s39, %s41
    %p45 = scmp.eq.s32.totalorder %s10, 0
    %p46 = por %p44, %p45
    %p47 = scmp.ne.s32.totalorder %s39, %s41
    %p48 = scmp.eq.s32.totalorder %s15, 3
    %p49 = por %p47, %p48
    %p50 = scmp.ne.s32.totalorder %s41, %s42
    %p51 = scmp.eq.s32.totalorder %s15, 0
    %p52 = por %p50, %p51
    %p53 = scmp.ne.s32.totalorder %s41, %s42
    %p54 = scmp.eq.s32.totalorder %s16, 3
    %p55 = por %p53, %p54
    %p57 = scmp.ne.s32.totalorder %s42, %s56
    %p58 = scmp.eq.s32.totalorder %s16, 0
    %p59 = por %p57, %p58
    %s60 = ssub.s32 %s10, %s17
    %p61 = scmp.eq.s32.totalorder %s60, 0
    %s63 = sadd.s32 %s62, 1
    %s64 = scalar_select %p61, %s62, %s63
    %p67 = pneg %p61
    %p68 = scmp.eq.s32.totalorder %s10, 3
    %p69 = por %p67, %p68
    %p70 = scmp.ne.s32.totalorder %s62, %s65
    %p71 = scmp.eq.s32.totalorder %s10, 0
    %p72 = por %p70, %p71
    %p73 = scmp.ne.s32.totalorder %s62, %s65
    %p74 = scmp.eq.s32.totalorder %s15, 3
    %p75 = por %p73, %p74
    %p76 = scmp.ne.s32.totalorder %s65, %s66
    %p77 = scmp.eq.s32.totalorder %s15, 0
    %p78 = por %p76, %p77
    %p79 = scmp.ne.s32.totalorder %s65, %s66
    %p80 = scmp.eq.s32.totalorder %s16, 3
    %p81 = por %p79, %p80
    %p83 = scmp.ne.s32.totalorder %s66, %s82
    %p84 = scmp.eq.s32.totalorder %s16, 0
    %p85 = por %p83, %p84
    %s86 = ssub.s32 %s10, %s17
    %p87 = scmp.eq.s32.totalorder %s86, 0
    %s89 = sadd.s32 %s88, 1
    %s90 = scalar_select %p87, %s88, %s89
    %p93 = pneg %p87
    %p94 = scmp.eq.s32.totalorder %s10, 3
    %p95 = por %p93, %p94
    %p96 = scmp.ne.s32.totalorder %s88, %s91
    %p97 = scmp.eq.s32.totalorder %s10, 0
    %p98 = por %p96, %p97
    %p99 = scmp.ne.s32.totalorder %s88, %s91
    %p100 = scmp.eq.s32.totalorder %s15, 3
    %p101 = por %p99, %p100
    %p102 = scmp.ne.s32.totalorder %s91, %s92
    %p103 = scmp.eq.s32.totalorder %s15, 0
    %p104 = por %p102, %p103
    %p105 = scmp.ne.s32.totalorder %s91, %s92
    %p106 = scmp.eq.s32.totalorder %s16, 3
    %p107 = por %p105, %p106
    %p109 = scmp.ne.s32.totalorder %s92, %s108
    %p110 = scmp.eq.s32.totalorder %s16, 0
    %p111 = por %p109, %p110
    %s112 = ssub.s32 %s10, %s17
    %p113 = scmp.eq.s32.totalorder %s112, 0
    %s115 = sadd.s32 %s114, 1
    %s116 = scalar_select %p113, %s114, %s115
    %p119 = pneg %p113
    %p120 = scmp.eq.s32.totalorder %s10, 3
    %p121 = por %p119, %p120
    %p122 = scmp.ne.s32.totalorder %s114, %s117
    %p123 = scmp.eq.s32.totalorder %s10, 0
    %p124 = por %p122, %p123
    %p125 = scmp.ne.s32.totalorder %s114, %s117
    %p126 = scmp.eq.s32.totalorder %s15, 3
    %p127 = por %p125, %p126
    %p128 = scmp.ne.s32.totalorder %s117, %s118
    %p129 = scmp.eq.s32.totalorder %s15, 0
    %p130 = por %p128, %p129
    %p131 = scmp.ne.s32.totalorder %s117, %s118
    %p132 = scmp.eq.s32.totalorder %s16, 3
    %p133 = por %p131, %p132
    %p135 = scmp.ne.s32.totalorder %s118, %s134
    %p136 = scmp.eq.s32.totalorder %s16, 0
    %p137 = por %p135, %p136
    %p138 = scmp.le.s32.totalorder 1, %s10
    %p139 = scmp.lt.s32.totalorder %s10, 5
    %p140 = pnand %p138, %p139
    %p141 = pneg %p140
    // Predicated region
    $region9: #{bottleneck_forward_nchw.7} parent=5 // pred_check
      _
    $region10: #{bottleneck_forward_nchw.7} parent=5 // pred_check_branch
      %143 = sbr.rel (%p140) target = $region12
    $region11: #{bottleneck_forward_nchw.7} parent=5 // pred_region
      %s144 = ssub.s32 %s10, 1
      // Predicated region
      $region13: #{bottleneck_forward_nchw.7} parent=11 // pred_check
        %p145 = pneg %p31
      $region14: #{bottleneck_forward_nchw.7} parent=11 // pred_check_branch
        %147 = sbr.rel (%p145) target = $region16
      $region15: #{bottleneck_forward_nchw.7} parent=11 // pred_region
        _
      $region16: #{bottleneck_forward_nchw.7} parent=11 // pred_fallthru
        _
      // Predicated region
      $region17: #{bottleneck_forward_nchw.7} parent=11 // pred_check
        %p148 = pneg %p52
      $region18: #{bottleneck_forward_nchw.7} parent=11 // pred_check_branch
        %150 = sbr.rel (%p148) target = $region20
      $region19: #{bottleneck_forward_nchw.7} parent=11 // pred_region
        _
      $region20: #{bottleneck_forward_nchw.7} parent=11 // pred_fallthru
        _
    $region12: #{bottleneck_forward_nchw.7} parent=5 // pred_fallthru
      _
    %p151 = scmp.lt.s32.totalorder %s10, 4
    // Predicated region
    $region21: #{bottleneck_forward_nchw.7} parent=5 // pred_check
      %p152 = pneg %p151
    $region22: #{bottleneck_forward_nchw.7} parent=5 // pred_check_branch
      %154 = sbr.rel (%p152) target = $region24
    $region23: #{bottleneck_forward_nchw.7} parent=5 // pred_region
      // Predicated region
      $region25: #{bottleneck_forward_nchw.7} parent=23 // pred_check
        %p155 = pneg %p72
      $region26: #{bottleneck_forward_nchw.7} parent=23 // pred_check_branch
        %157 = sbr.rel (%p155) target = $region28
      $region27: #{bottleneck_forward_nchw.7} parent=23 // pred_region
        %s158 = smul.u32 16, %s10
        %p159 = scmp.lt.s32.totalorder %s158, 63
        %s160 = scalar_select %p159, %s158, 63
        %s161 = smul.addr %s160, 4
        %s162 = scalar_lea.vmem %s2, %s161
        %s163 = smul.u32 16, %s10
      $region28: #{bottleneck_forward_nchw.7} parent=23 // pred_fallthru
        _
      // Predicated region
      $region29: #{bottleneck_forward_nchw.7} parent=23 // pred_check
        %p164 = pneg %p98
      $region30: #{bottleneck_forward_nchw.7} parent=23 // pred_check_branch
        %166 = sbr.rel (%p164) target = $region32
      $region31: #{bottleneck_forward_nchw.7} parent=23 // pred_region
        %s167 = smul.u32 16, %s10
        %p168 = scmp.lt.s32.totalorder %s167, 63
        %s169 = scalar_select %p168, %s167, 63
        %s170 = smul.addr %s169, 4
        %s171 = scalar_lea.vmem %s3, %s170
        %s172 = smul.u32 16, %s10
      $region32: #{bottleneck_forward_nchw.7} parent=23 // pred_fallthru
        _
    $region24: #{bottleneck_forward_nchw.7} parent=5 // pred_fallthru
      _
    %p173 = scmp.le.s32.totalorder 1, %s10
    %p174 = scmp.lt.s32.totalorder %s10, 5
    %p175 = pnand %p173, %p174
    %p176 = pneg %p175
    // Predicated region
    $region33: #{bottleneck_forward_nchw.7} parent=5 // pred_check
      _
    $region34: #{bottleneck_forward_nchw.7} parent=5 // pred_check_branch
      %178 = sbr.rel (%p175) target = $region36
    $region35: #{bottleneck_forward_nchw.7} parent=5 // pred_region
      %s179 = ssub.s32 %s10, 1
      %p180 = pneg %p31
      %p181 = pneg %p28
      %p182 = pneg %p52
      %p183 = pneg %p49
      %s184 = smul.u32 16, %s15
      %p185 = scmp.lt.s32.totalorder %s184, 63
      %s186 = scalar_select %p185, %s184, 63
      %s187 = smul.addr %s186, 4
      %s188 = scalar_lea.vmem %s2, %s187
      %p189 = pneg %p78
      %p190 = pneg %p75
      %s191 = smul.u32 16, %s15
      %p192 = scmp.lt.s32.totalorder %s191, 63
      %s193 = scalar_select %p192, %s191, 63
      %s194 = smul.addr %s193, 4
      %s195 = scalar_lea.vmem %s3, %s194
      %p196 = pneg %p104
      %p197 = pneg %p101
      %p198 = pneg %p130
      %p199 = pneg %p127
      %s200 = smul.u32 16, %s15
      %p201 = scmp.lt.s32.totalorder %s200, 63
      %s202 = scalar_select %p201, %s200, 63
      %s203 = smul.addr %s202, 8
      %s204 = scalar_lea.vmem %s4, %s203
      %s205 = smul.u32 16, %s15
      %p206 = scmp.lt.s32.totalorder %s205, 63
      %s207 = scalar_select %p206, %s205, 63
      %s208 = smul.addr %s207, 4
      %s209 = scalar_lea.vmem %s2, %s208
      %s210 = smul.u32 16, %s15
      %s211 = smul.u32 16, %s15
      %p212 = scmp.lt.s32.totalorder %s211, 63
      %s213 = scalar_select %p212, %s211, 63
      %s214 = smul.addr %s213, 4
      %s215 = scalar_lea.vmem %s3, %s214
      %s216 = smul.u32 16, %s15
      %s217 = smul.u32 16, %s15
      %p218 = scmp.lt.s32.totalorder %s217, 63
      %s219 = scalar_select %p218, %s217, 63
      %s220 = smul.addr %s219, 8
      %s221 = scalar_lea.vmem %s4, %s220
      %s222 = smul.u32 16, %s15
      %v223 = vld [vmem:[%s209] sm:$0xf]
      %v224 = vld [vmem:[%s209 + $0x4] sm:$0xf]
      %v225 = vld [vmem:[%s209 + $0x8] sm:$0xf]
      %v226 = vld [vmem:[%s209 + $0xc] sm:$0xf]
      %v227 = vld [vmem:[%s209 + $0x10] sm:$0xf]
      %v228 = vld [vmem:[%s209 + $0x14] sm:$0xf]
      %v229 = vld [vmem:[%s209 + $0x18] sm:$0xf]
      %v230 = vld [vmem:[%s209 + $0x1c] sm:$0xf]
      %v231 = vld [vmem:[%s209 + $0x20] sm:$0xf]
      %v232 = vld [vmem:[%s209 + $0x24] sm:$0xf]
      %v233 = vld [vmem:[%s209 + $0x28] sm:$0xf]
      %v234 = vld [vmem:[%s209 + $0x2c] sm:$0xf]
      %v235 = vld [vmem:[%s209 + $0x30] sm:$0xf]
      %v236 = vld [vmem:[%s209 + $0x34] sm:$0xf]
      %v237 = vld [vmem:[%s209 + $0x38] sm:$0xf]
      %v238 = vld [vmem:[%s209 + $0x3c] sm:$0xf]
      %v239 = vunpack.c.l.bf16 %v223
      %v240 = vunpack.c.l.bf16 %v224
      %v241 = vunpack.c.l.bf16 %v225
      %v242 = vunpack.c.l.bf16 %v226
      %v243 = vunpack.c.l.bf16 %v227
      %v244 = vunpack.c.l.bf16 %v228
      %v245 = vunpack.c.l.bf16 %v229
      %v246 = vunpack.c.l.bf16 %v230
      %v247 = vunpack.c.l.bf16 %v231
      %v248 = vunpack.c.l.bf16 %v232
      %v249 = vunpack.c.l.bf16 %v233
      %v250 = vunpack.c.l.bf16 %v234
      %v251 = vunpack.c.l.bf16 %v235
      %v252 = vunpack.c.l.bf16 %v236
      %v253 = vunpack.c.l.bf16 %v237
      %v254 = vunpack.c.l.bf16 %v238
      %v255 = vld [vmem:[%s0] sm:$0x1]
      %v257 = vlaneseq
      %v258 = vshrl.u32 %v257, 7
      %v259 = vsub.s32 0, %v258
      %v260 = vrot.slane %v255, %v259
      %v262 = vmul.f32 %v239, %v260
      %v263 = vmul.f32 %v240, %v260
      %v264 = vmul.f32 %v241, %v260
      %v265 = vmul.f32 %v242, %v260
      %v266 = vmul.f32 %v243, %v260
      %v267 = vmul.f32 %v244, %v260
      %v268 = vmul.f32 %v245, %v260
      %v269 = vmul.f32 %v246, %v260
      %v270 = vmul.f32 %v247, %v260
      %v271 = vmul.f32 %v248, %v260
      %v272 = vmul.f32 %v249, %v260
      %v273 = vmul.f32 %v250, %v260
      %v274 = vmul.f32 %v251, %v260
      %v275 = vmul.f32 %v252, %v260
      %v276 = vmul.f32 %v253, %v260
      %v277 = vmul.f32 %v254, %v260
      %v278 = vld [vmem:[%s1] sm:$0x1]
      %v280 = vlaneseq
      %v281 = vshrl.u32 %v280, 7
      %v282 = vsub.s32 0, %v281
      %v283 = vrot.slane %v278, %v282
      %v285 = vadd.f32 %v262, %v283
      %v286 = vadd.f32 %v263, %v283
      %v287 = vadd.f32 %v264, %v283
      %v288 = vadd.f32 %v265, %v283
      %v289 = vadd.f32 %v266, %v283
      %v290 = vadd.f32 %v267, %v283
      %v291 = vadd.f32 %v268, %v283
      %v292 = vadd.f32 %v269, %v283
      %v293 = vadd.f32 %v270, %v283
      %v294 = vadd.f32 %v271, %v283
      %v295 = vadd.f32 %v272, %v283
      %v296 = vadd.f32 %v273, %v283
      %v297 = vadd.f32 %v274, %v283
      %v298 = vadd.f32 %v275, %v283
      %v299 = vadd.f32 %v276, %v283
      %v300 = vadd.f32 %v277, %v283
      %v301 = vld [vmem:[%s215] sm:$0xf]
      %v302 = vld [vmem:[%s215 + $0x4] sm:$0xf]
      %v303 = vld [vmem:[%s215 + $0x8] sm:$0xf]
      %v304 = vld [vmem:[%s215 + $0xc] sm:$0xf]
      %v305 = vld [vmem:[%s215 + $0x10] sm:$0xf]
      %v306 = vld [vmem:[%s215 + $0x14] sm:$0xf]
      %v307 = vld [vmem:[%s215 + $0x18] sm:$0xf]
      %v308 = vld [vmem:[%s215 + $0x1c] sm:$0xf]
      %v309 = vld [vmem:[%s215 + $0x20] sm:$0xf]
      %v310 = vld [vmem:[%s215 + $0x24] sm:$0xf]
      %v311 = vld [vmem:[%s215 + $0x28] sm:$0xf]
      %v312 = vld [vmem:[%s215 + $0x2c] sm:$0xf]
      %v313 = vld [vmem:[%s215 + $0x30] sm:$0xf]
      %v314 = vld [vmem:[%s215 + $0x34] sm:$0xf]
      %v315 = vld [vmem:[%s215 + $0x38] sm:$0xf]
      %v316 = vld [vmem:[%s215 + $0x3c] sm:$0xf]
      %v317 = vunpack.c.l.bf16 %v301
      %v318 = vunpack.c.l.bf16 %v302
      %v319 = vunpack.c.l.bf16 %v303
      %v320 = vunpack.c.l.bf16 %v304
      %v321 = vunpack.c.l.bf16 %v305
      %v322 = vunpack.c.l.bf16 %v306
      %v323 = vunpack.c.l.bf16 %v307
      %v324 = vunpack.c.l.bf16 %v308
      %v325 = vunpack.c.l.bf16 %v309
      %v326 = vunpack.c.l.bf16 %v310
      %v327 = vunpack.c.l.bf16 %v311
      %v328 = vunpack.c.l.bf16 %v312
      %v329 = vunpack.c.l.bf16 %v313
      %v330 = vunpack.c.l.bf16 %v314
      %v331 = vunpack.c.l.bf16 %v315
      %v332 = vunpack.c.l.bf16 %v316
      %v333 = vadd.f32 %v285, %v317
      %v334 = vadd.f32 %v286, %v318
      %v335 = vadd.f32 %v287, %v319
      %v336 = vadd.f32 %v288, %v320
      %v337 = vadd.f32 %v289, %v321
      %v338 = vadd.f32 %v290, %v322
      %v339 = vadd.f32 %v291, %v323
      %v340 = vadd.f32 %v292, %v324
      %v341 = vadd.f32 %v293, %v325
      %v342 = vadd.f32 %v294, %v326
      %v343 = vadd.f32 %v295, %v327
      %v344 = vadd.f32 %v296, %v328
      %v345 = vadd.f32 %v297, %v329
      %v346 = vadd.f32 %v298, %v330
      %v347 = vadd.f32 %v299, %v331
      %v348 = vadd.f32 %v300, %v332
      %v349 = vmax.f32 %v333, 0.0
      %v350 = vmax.f32 %v334, 0.0
      %v351 = vmax.f32 %v335, 0.0
      %v352 = vmax.f32 %v336, 0.0
      %v353 = vmax.f32 %v337, 0.0
      %v354 = vmax.f32 %v338, 0.0
      %v355 = vmax.f32 %v339, 0.0
      %v356 = vmax.f32 %v340, 0.0
      %v357 = vmax.f32 %v341, 0.0
      %v358 = vmax.f32 %v342, 0.0
      %v359 = vmax.f32 %v343, 0.0
      %v360 = vmax.f32 %v344, 0.0
      %v361 = vmax.f32 %v345, 0.0
      %v362 = vmax.f32 %v346, 0.0
      %v363 = vmax.f32 %v347, 0.0
      %v364 = vmax.f32 %v348, 0.0
      %365 = vst [vmem:[%s221] sm:$0xff] %v349
      %366 = vst [vmem:[%s221 + $0x8] sm:$0xff] %v350
      %367 = vst [vmem:[%s221 + $0x10] sm:$0xff] %v351
      %368 = vst [vmem:[%s221 + $0x18] sm:$0xff] %v352
      %369 = vst [vmem:[%s221 + $0x20] sm:$0xff] %v353
      %370 = vst [vmem:[%s221 + $0x28] sm:$0xff] %v354
      %371 = vst [vmem:[%s221 + $0x30] sm:$0xff] %v355
      %372 = vst [vmem:[%s221 + $0x38] sm:$0xff] %v356
      %373 = vst [vmem:[%s221 + $0x40] sm:$0xff] %v357
      %374 = vst [vmem:[%s221 + $0x48] sm:$0xff] %v358
      %375 = vst [vmem:[%s221 + $0x50] sm:$0xff] %v359
      %376 = vst [vmem:[%s221 + $0x58] sm:$0xff] %v360
      %377 = vst [vmem:[%s221 + $0x60] sm:$0xff] %v361
      %378 = vst [vmem:[%s221 + $0x68] sm:$0xff] %v362
      %379 = vst [vmem:[%s221 + $0x70] sm:$0xff] %v363
      %380 = vst [vmem:[%s221 + $0x78] sm:$0xff] %v364
      %s381 = smul.u32 16, %s15
      %p382 = scmp.lt.s32.totalorder %s381, 63
      %s383 = scalar_select %p382, %s381, 63
      %s384 = smul.addr %s383, 8
      %s385 = scalar_lea.vmem %s4, %s384
      // Predicated region
      $region37: #{bottleneck_forward_nchw.7} parent=35 // pred_check
        %p386 = pneg %p127
      $region38: #{bottleneck_forward_nchw.7} parent=35 // pred_check_branch
        %388 = sbr.rel (%p386) target = $region40
      $region39: #{bottleneck_forward_nchw.7} parent=35 // pred_region
        %s389 = smul.u32 16, %s15
      $region40: #{bottleneck_forward_nchw.7} parent=35 // pred_fallthru
        _
    $region36: #{bottleneck_forward_nchw.7} parent=5 // pred_fallthru
      _
    %p390 = scmp.le.s32.totalorder 2, %s10
    // Predicated region
    $region41: #{bottleneck_forward_nchw.7} parent=5 // pred_check
      %p391 = pneg %p390
    $region42: #{bottleneck_forward_nchw.7} parent=5 // pred_check_branch
      %393 = sbr.rel (%p391) target = $region44
    $region43: #{bottleneck_forward_nchw.7} parent=5 // pred_region
      %s394 = ssub.s32 %s10, 2
      // Predicated region
      $region45: #{bottleneck_forward_nchw.7} parent=43 // pred_check
        %p395 = pneg %p133
      $region46: #{bottleneck_forward_nchw.7} parent=43 // pred_check_branch
        %397 = sbr.rel (%p395) target = $region48
      $region47: #{bottleneck_forward_nchw.7} parent=43 // pred_region
        %s398 = smul.u32 16, %s16
        %p399 = scmp.lt.s32.totalorder %s398, 63
        %s400 = scalar_select %p399, %s398, 63
        %s401 = smul.addr %s400, 8
        %s402 = scalar_lea.vmem %s4, %s401
      $region48: #{bottleneck_forward_nchw.7} parent=43 // pred_fallthru
        _
    $region44: #{bottleneck_forward_nchw.7} parent=5 // pred_fallthru
      _
  $region6: #{bottleneck_forward_nchw.7} parent=0 // loop_footer
    %s14 = sadd.s32 1, %s10
  $region7: #{bottleneck_forward_nchw.7} parent=0 // loop_footer_branch
    %9 = sbr.rel target = $region3
  $region8: #{bottleneck_forward_nchw.7} parent=0 // loop_exit
    _

// kernel: bottleneck_forward_nchw.4
$region0: #{bottleneck_forward_nchw.4}
  #allocation0 [shape = 'u32[]', space=smem, size = 0x4, offset = 0x4, fixed_abs, tag = 'smem constant byte address 0x4 - core index']
  #allocation1 [shape = 'u32[144,128]{1,0:T(1,128)}', space=vmem, size = 0x12000, scoped, tag = 'internal scratch']
  %s0 = inlined_call_operand.vmem [shape: bf16[512,128], index: 0, kind: input, shape index: {}]
  %s1 = inlined_call_operand.vmem [shape: bf16[128,128], index: 1, kind: input, shape index: {}]
  %s2 = inlined_call_operand.vmem [shape: bf16[512,128], index: 2, kind: output, shape index: {0}]
  %s3 = inlined_call_operand.vmem [shape: f32[4,2,128], index: 3, kind: output, shape index: {1}]
  %4 = xla_tuple %s2, %s3
  %s5 = sld [smem:[#allocation0]]
  $region49: #{bottleneck_forward_nchw.4} parent=0
    _
  %s7 = ssub.s32 1, %s5
  %s8 = scalar_select 0, %s7, %s5
  loop: start=0, step=1, limit=6
  $region2: #{bottleneck_forward_nchw.4} parent=0 // loop_pre_header
    _
  $region3: #{bottleneck_forward_nchw.4} parent=0 // loop_header
    %s10 = sphi 0, %s14
    %p11 = scmp.ge.s32.totalorder %s10, 6
    %s20 = sphi 0, %s22
    %s23 = sphi 0, %s20
    %s24 = sphi 0, %s23
    %s40 = sphi 0, %s24
    %s44 = sphi 0, %s44
    %s46 = sphi 0, %s44
    %s47 = sphi 0, %s46
    %s61 = sphi 0, %s47
    %s67 = sphi 0, %s69
    %s70 = sphi 0, %s67
    %s71 = sphi 0, %s70
    %s87 = sphi 0, %s71
    %s93 = sphi 0, %s95
    %s96 = sphi 0, %s93
    %s97 = sphi 0, %s96
    %s113 = sphi 0, %s97
  $region4: #{bottleneck_forward_nchw.4} parent=0 // loop_header_branch
    %13 = sbr.rel (%p11) target = $region8
  $region5: #{bottleneck_forward_nchw.4} parent=0 // loop_body
    %s15 = ssub.s32 %s10, 1
    %s16 = ssub.s32 %s10, 2
    %s17 = sadd.s32 %s10, 1
    %s18 = ssub.s32 %s10, %s17
    %p19 = scmp.eq.s32.totalorder %s18, 0
    %s21 = sadd.s32 %s20, 1
    %s22 = scalar_select %p19, %s20, %s21
    %p25 = pneg %p19
    %p26 = scmp.eq.s32.totalorder %s10, 3
    %p27 = por %p25, %p26
    %p28 = scmp.ne.s32.totalorder %s20, %s23
    %p29 = scmp.eq.s32.totalorder %s10, 0
    %p30 = por %p28, %p29
    %p31 = scmp.ne.s32.totalorder %s20, %s23
    %p32 = scmp.eq.s32.totalorder %s15, 3
    %p33 = por %p31, %p32
    %p34 = scmp.ne.s32.totalorder %s23, %s24
    %p35 = scmp.eq.s32.totalorder %s15, 0
    %p36 = por %p34, %p35
    %p37 = scmp.ne.s32.totalorder %s23, %s24
    %p38 = scmp.eq.s32.totalorder %s16, 3
    %p39 = por %p37, %p38
    %p41 = scmp.ne.s32.totalorder %s24, %s40
    %p42 = scmp.eq.s32.totalorder %s16, 0
    %p43 = por %p41, %p42
    %s45 = sadd.s32 %s44, 1
    %p48 = scmp.eq.s32.totalorder %s10, 3
    %p49 = scmp.ne.s32.totalorder %s44, %s46
    %p50 = scmp.eq.s32.totalorder %s10, 0
    %p51 = por %p49, %p50
    %p52 = scmp.ne.s32.totalorder %s44, %s46
    %p53 = scmp.eq.s32.totalorder %s15, 3
    %p54 = por %p52, %p53
    %p55 = scmp.ne.s32.totalorder %s46, %s47
    %p56 = scmp.eq.s32.totalorder %s15, 0
    %p57 = por %p55, %p56
    %p58 = scmp.ne.s32.totalorder %s46, %s47
    %p59 = scmp.eq.s32.totalorder %s16, 3
    %p60 = por %p58, %p59
    %p62 = scmp.ne.s32.totalorder %s47, %s61
    %p63 = scmp.eq.s32.totalorder %s16, 0
    %p64 = por %p62, %p63
    %s65 = ssub.s32 %s10, %s17
    %p66 = scmp.eq.s32.totalorder %s65, 0
    %s68 = sadd.s32 %s67, 1
    %s69 = scalar_select %p66, %s67, %s68
    %p72 = pneg %p66
    %p73 = scmp.eq.s32.totalorder %s10, 3
    %p74 = por %p72, %p73
    %p75 = scmp.ne.s32.totalorder %s67, %s70
    %p76 = scmp.eq.s32.totalorder %s10, 0
    %p77 = por %p75, %p76
    %p78 = scmp.ne.s32.totalorder %s67, %s70
    %p79 = scmp.eq.s32.totalorder %s15, 3
    %p80 = por %p78, %p79
    %p81 = scmp.ne.s32.totalorder %s70, %s71
    %p82 = scmp.eq.s32.totalorder %s15, 0
    %p83 = por %p81, %p82
    %p84 = scmp.ne.s32.totalorder %s70, %s71
    %p85 = scmp.eq.s32.totalorder %s16, 3
    %p86 = por %p84, %p85
    %p88 = scmp.ne.s32.totalorder %s71, %s87
    %p89 = scmp.eq.s32.totalorder %s16, 0
    %p90 = por %p88, %p89
    %s91 = ssub.s32 %s10, %s17
    %p92 = scmp.eq.s32.totalorder %s91, 0
    %s94 = sadd.s32 %s93, 1
    %s95 = scalar_select %p92, %s93, %s94
    %p98 = pneg %p92
    %p99 = scmp.eq.s32.totalorder %s10, 3
    %p100 = por %p98, %p99
    %p101 = scmp.ne.s32.totalorder %s93, %s96
    %p102 = scmp.eq.s32.totalorder %s10, 0
    %p103 = por %p101, %p102
    %p104 = scmp.ne.s32.totalorder %s93, %s96
    %p105 = scmp.eq.s32.totalorder %s15, 3
    %p106 = por %p104, %p105
    %p107 = scmp.ne.s32.totalorder %s96, %s97
    %p108 = scmp.eq.s32.totalorder %s15, 0
    %p109 = por %p107, %p108
    %p110 = scmp.ne.s32.totalorder %s96, %s97
    %p111 = scmp.eq.s32.totalorder %s16, 3
    %p112 = por %p110, %p111
    %p114 = scmp.ne.s32.totalorder %s97, %s113
    %p115 = scmp.eq.s32.totalorder %s16, 0
    %p116 = por %p114, %p115
    %p117 = scmp.le.s32.totalorder 1, %s10
    %p118 = scmp.lt.s32.totalorder %s10, 5
    %p119 = pnand %p117, %p118
    %p120 = pneg %p119
    // Predicated region
    $region9: #{bottleneck_forward_nchw.4} parent=5 // pred_check
      _
    $region10: #{bottleneck_forward_nchw.4} parent=5 // pred_check_branch
      %122 = sbr.rel (%p119) target = $region12
    $region11: #{bottleneck_forward_nchw.4} parent=5 // pred_region
      %s123 = ssub.s32 %s10, 1
      // Predicated region
      $region13: #{bottleneck_forward_nchw.4} parent=11 // pred_check
        %p124 = pneg %p57
      $region14: #{bottleneck_forward_nchw.4} parent=11 // pred_check_branch
        %126 = sbr.rel (%p124) target = $region16
      $region15: #{bottleneck_forward_nchw.4} parent=11 // pred_region
        _
      $region16: #{bottleneck_forward_nchw.4} parent=11 // pred_fallthru
        _
    $region12: #{bottleneck_forward_nchw.4} parent=5 // pred_fallthru
      _
    %p127 = scmp.lt.s32.totalorder %s10, 4
    // Predicated region
    $region17: #{bottleneck_forward_nchw.4} parent=5 // pred_check
      %p128 = pneg %p127
    $region18: #{bottleneck_forward_nchw.4} parent=5 // pred_check_branch
      %130 = sbr.rel (%p128) target = $region20
    $region19: #{bottleneck_forward_nchw.4} parent=5 // pred_region
      // Predicated region
      $region21: #{bottleneck_forward_nchw.4} parent=19 // pred_check
        %p131 = pneg %p30
      $region22: #{bottleneck_forward_nchw.4} parent=19 // pred_check_branch
        %133 = sbr.rel (%p131) target = $region24
      $region23: #{bottleneck_forward_nchw.4} parent=19 // pred_region
        %s134 = smul.u32 16, %s10
        %p135 = scmp.lt.s32.totalorder %s134, 63
        %s136 = scalar_select %p135, %s134, 63
        %s137 = smul.addr %s136, 4
        %s138 = scalar_lea.vmem %s0, %s137
        %s139 = smul.u32 16, %s10
      $region24: #{bottleneck_forward_nchw.4} parent=19 // pred_fallthru
        _
    $region20: #{bottleneck_forward_nchw.4} parent=5 // pred_fallthru
      _
    %p140 = scmp.le.s32.totalorder 1, %s10
    %p141 = scmp.lt.s32.totalorder %s10, 5
    %p142 = pnand %p140, %p141
    %p143 = pneg %p142
    // Predicated region
    $region25: #{bottleneck_forward_nchw.4} parent=5 // pred_check
      _
    $region26: #{bottleneck_forward_nchw.4} parent=5 // pred_check_branch
      %145 = sbr.rel (%p142) target = $region28
    $region27: #{bottleneck_forward_nchw.4} parent=5 // pred_region
      %s146 = ssub.s32 %s10, 1
      %s147 = smul.u32 16, %s15
      %p148 = scmp.lt.s32.totalorder %s147, 63
      %s149 = scalar_select %p148, %s147, 63
      %s150 = smul.addr %s149, 4
      %s151 = scalar_lea.vmem %s0, %s150
      %p152 = pneg %p36
      %p153 = pneg %p33
      %p154 = pneg %p57
      %p155 = pneg %p54
      %p156 = pneg %p83
      %p157 = pneg %p80
      %s158 = smul.u32 16, %s15
      %p159 = scmp.lt.s32.totalorder %s158, 63
      %s160 = scalar_select %p159, %s158, 63
      %s161 = smul.addr %s160, 4
      %s162 = scalar_lea.vmem %s2, %s161
      %p163 = pneg %p109
      %p164 = pneg %p106
      %p165 = scmp.lt.s32.totalorder %s15, 3
      %s166 = scalar_select %p165, %s15, 3
      %s167 = smul.addr %s166, 2
      %s168 = scalar_lea.vmem %s3, %s167
      %s169 = smul.u32 16, %s15
      %p170 = scmp.lt.s32.totalorder %s169, 63
      %s171 = scalar_select %p170, %s169, 63
      %s172 = smul.addr %s171, 4
      %s173 = scalar_lea.vmem %s0, %s172
      %s174 = smul.u32 16, %s15
      %s175 = smul.u32 16, %s15
      %p176 = scmp.lt.s32.totalorder %s175, 63
      %s177 = scalar_select %p176, %s175, 63
      %s178 = smul.addr %s177, 4
      %s179 = scalar_lea.vmem %s2, %s178
      %s180 = smul.u32 16, %s15
      %p181 = scmp.lt.s32.totalorder %s15, 3
      %s182 = scalar_select %p181, %s15, 3
      %s183 = smul.addr %s182, 2
      %s184 = scalar_lea.vmem %s3, %s183
      %v186 = vld [vmem:[%s173] sm:$0xf]
      %v187 = vld [vmem:[%s173 + $0x4] sm:$0xf]
      %v188 = vld [vmem:[%s173 + $0x8] sm:$0xf]
      %v189 = vld [vmem:[%s173 + $0xc] sm:$0xf]
      %v190 = vld [vmem:[%s173 + $0x10] sm:$0xf]
      %v191 = vld [vmem:[%s173 + $0x14] sm:$0xf]
      %v192 = vld [vmem:[%s173 + $0x18] sm:$0xf]
      %v193 = vld [vmem:[%s173 + $0x1c] sm:$0xf]
      %v194 = vld [vmem:[%s173 + $0x20] sm:$0xf]
      %v195 = vld [vmem:[%s173 + $0x24] sm:$0xf]
      %v196 = vld [vmem:[%s173 + $0x28] sm:$0xf]
      %v197 = vld [vmem:[%s173 + $0x2c] sm:$0xf]
      %v198 = vld [vmem:[%s173 + $0x30] sm:$0xf]
      %v199 = vld [vmem:[%s173 + $0x34] sm:$0xf]
      %v200 = vld [vmem:[%s173 + $0x38] sm:$0xf]
      %v201 = vld [vmem:[%s173 + $0x3c] sm:$0xf]
      %v202 = vld [vmem:[%s1] sm:$0xf]
      %v203 = vld [vmem:[%s1 + $0x4] sm:$0xf]
      %v204 = vld [vmem:[%s1 + $0x8] sm:$0xf]
      %v205 = vld [vmem:[%s1 + $0xc] sm:$0xf]
      %v206 = vld [vmem:[%s1 + $0x10] sm:$0xf]
      %v207 = vld [vmem:[%s1 + $0x14] sm:$0xf]
      %v208 = vld [vmem:[%s1 + $0x18] sm:$0xf]
      %v209 = vld [vmem:[%s1 + $0x1c] sm:$0xf]
      %v210 = vld [vmem:[%s1 + $0x20] sm:$0xf]
      %v211 = vld [vmem:[%s1 + $0x24] sm:$0xf]
      %v212 = vld [vmem:[%s1 + $0x28] sm:$0xf]
      %v213 = vld [vmem:[%s1 + $0x2c] sm:$0xf]
      %v214 = vld [vmem:[%s1 + $0x30] sm:$0xf]
      %v215 = vld [vmem:[%s1 + $0x34] sm:$0xf]
      %v216 = vld [vmem:[%s1 + $0x38] sm:$0xf]
      %v217 = vld [vmem:[%s1 + $0x3c] sm:$0xf]
      %v234 = vunpack.c.l.b16 %v186
      %v235 = vunpack.c.l.b16 %v187
      %v236 = vunpack.c.l.b16 %v188
      %v237 = vunpack.c.l.b16 %v189
      %v238 = vunpack.c.l.b16 %v190
      %v239 = vunpack.c.l.b16 %v191
      %v240 = vunpack.c.l.b16 %v192
      %v241 = vunpack.c.l.b16 %v193
      %v242 = vunpack.c.l.b16 %v194
      %v243 = vunpack.c.l.b16 %v195
      %v244 = vunpack.c.l.b16 %v196
      %v245 = vunpack.c.l.b16 %v197
      %v246 = vunpack.c.l.b16 %v198
      %v247 = vunpack.c.l.b16 %v199
      %v248 = vunpack.c.l.b16 %v200
      %v249 = vunpack.c.l.b16 %v201
      %v250 = vpack.c.b16 %v235, %v234
      %v251 = vpack.c.b16 %v237, %v236
      %v252 = vpack.c.b16 %v239, %v238
      %v253 = vpack.c.b16 %v241, %v240
      %v254 = vpack.c.b16 %v243, %v242
      %v255 = vpack.c.b16 %v245, %v244
      %v256 = vpack.c.b16 %v247, %v246
      %v257 = vpack.c.b16 %v249, %v248
      %v282 = vunpack.c.l.b16 %v202
      %v283 = vunpack.c.l.b16 %v203
      %v284 = vunpack.c.l.b16 %v204
      %v285 = vunpack.c.l.b16 %v205
      %v286 = vunpack.c.l.b16 %v206
      %v287 = vunpack.c.l.b16 %v207
      %v288 = vunpack.c.l.b16 %v208
      %v289 = vunpack.c.l.b16 %v209
      %v290 = vunpack.c.l.b16 %v210
      %v291 = vunpack.c.l.b16 %v211
      %v292 = vunpack.c.l.b16 %v212
      %v293 = vunpack.c.l.b16 %v213
      %v294 = vunpack.c.l.b16 %v214
      %v295 = vunpack.c.l.b16 %v215
      %v296 = vunpack.c.l.b16 %v216
      %v297 = vunpack.c.l.b16 %v217
      %v298 = vpack.c.b16 %v283, %v282
      %v299 = vpack.c.b16 %v285, %v284
      %v300 = vpack.c.b16 %v287, %v286
      %v301 = vpack.c.b16 %v289, %v288
      %v302 = vpack.c.b16 %v291, %v290
      %v303 = vpack.c.b16 %v293, %v292
      %v304 = vpack.c.b16 %v295, %v294
      %v305 = vpack.c.b16 %v297, %v296
      %314 = vmatprep.subr.bf16.mxu0 0
      %315 = vmatpush1.bf16.msra.mxu0 %v305
      %316 = vmatprep.subr.bf16.mxu0 0
      %317 = vmatpush1.bf16.msra.mxu0 %v304
      %318 = vmatprep.subr.bf16.mxu0 0
      %319 = vmatpush1.bf16.msra.mxu0 %v303
      %320 = vmatprep.subr.bf16.mxu0 0
      %321 = vmatpush1.bf16.msra.mxu0 %v302
      %322 = vmatprep.subr.bf16.mxu0 0
      %323 = vmatpush1.bf16.msra.mxu0 %v301
      %324 = vmatprep.subr.bf16.mxu0 0
      %325 = vmatpush1.bf16.msra.mxu0 %v300
      %326 = vmatprep.subr.bf16.mxu0 0
      %327 = vmatpush1.bf16.msra.mxu0 %v299
      %328 = vmatprep.subr.bf16.mxu0 0
      %329 = vmatpush1.bf16.msra.mxu0 %v298
      %330 = vmatprep.subr.bf16.mxu0 0
      %331 = vmatpush2.bf16.msra.mxu0 0
      %332 = vmatprep.subr.bf16.mxu0 0
      %333 = vmatpush2.bf16.msra.mxu0 0
      %334 = vmatprep.subr.bf16.mxu0 0
      %335 = vmatpush2.bf16.msra.mxu0 0
      %336 = vmatprep.subr.bf16.mxu0 0
      %337 = vmatpush2.bf16.msra.mxu0 0
      %338 = vmatprep.subr.bf16.mxu0 0
      %339 = vmatpush2.bf16.msra.mxu0 0
      %340 = vmatprep.subr.bf16.mxu0 0
      %341 = vmatpush2.bf16.msra.mxu0 0
      %342 = vmatprep.subr.bf16.mxu0 0
      %343 = vmatpush2.bf16.msra.mxu0 0
      %344 = vmatprep.subr.bf16.mxu0 0
      %345 = vmatpush2.bf16.msra.mxu0 0
      %346 = vmatprep.mubr.bf16.mxu0 0
      %347 = vmatmul.mubr.bf16.gmra.mxu0 %v250
      %v348 = vpop.f32.mrf.mxu0
      %v349 = vadd.f32 0.0, %v348
      %v350 = vpop.f32.mrf.mxu0
      %v351 = vpop.f32.mrf.mxu0
      %v352 = vadd.f32 0.0, %v351
      %v353 = vpop.f32.mrf.mxu0
      %354 = vmatprep.mubr.bf16.mxu0 0
      %355 = vmatmul.mubr.bf16.gmra.mxu0 %v251
      %v356 = vpop.f32.mrf.mxu0
      %v357 = vadd.f32 0.0, %v356
      %v358 = vpop.f32.mrf.mxu0
      %v359 = vpop.f32.mrf.mxu0
      %v360 = vadd.f32 0.0, %v359
      %v361 = vpop.f32.mrf.mxu0
      %362 = vmatprep.mubr.bf16.mxu0 0
      %363 = vmatmul.mubr.bf16.gmra.mxu0 %v252
      %v364 = vpop.f32.mrf.mxu0
      %v365 = vadd.f32 0.0, %v364
      %v366 = vpop.f32.mrf.mxu0
      %v367 = vpop.f32.mrf.mxu0
      %v368 = vadd.f32 0.0, %v367
      %v369 = vpop.f32.mrf.mxu0
      %370 = vmatprep.mubr.bf16.mxu0 0
      %371 = vmatmul.mubr.bf16.gmra.mxu0 %v253
      %v372 = vpop.f32.mrf.mxu0
      %v373 = vadd.f32 0.0, %v372
      %v374 = vpop.f32.mrf.mxu0
      %v375 = vpop.f32.mrf.mxu0
      %v376 = vadd.f32 0.0, %v375
      %v377 = vpop.f32.mrf.mxu0
      %378 = vmatprep.mubr.bf16.mxu0 0
      %379 = vmatmul.mubr.bf16.gmra.mxu0 %v254
      %v380 = vpop.f32.mrf.mxu0
      %v381 = vadd.f32 0.0, %v380
      %v382 = vpop.f32.mrf.mxu0
      %v383 = vpop.f32.mrf.mxu0
      %v384 = vadd.f32 0.0, %v383
      %v385 = vpop.f32.mrf.mxu0
      %386 = vmatprep.mubr.bf16.mxu0 0
      %387 = vmatmul.mubr.bf16.gmra.mxu0 %v255
      %v388 = vpop.f32.mrf.mxu0
      %v389 = vadd.f32 0.0, %v388
      %v390 = vpop.f32.mrf.mxu0
      %v391 = vpop.f32.mrf.mxu0
      %v392 = vadd.f32 0.0, %v391
      %v393 = vpop.f32.mrf.mxu0
      %394 = vmatprep.mubr.bf16.mxu0 0
      %395 = vmatmul.mubr.bf16.gmra.mxu0 %v256
      %v396 = vpop.f32.mrf.mxu0
      %v397 = vadd.f32 0.0, %v396
      %v398 = vpop.f32.mrf.mxu0
      %v399 = vpop.f32.mrf.mxu0
      %v400 = vadd.f32 0.0, %v399
      %v401 = vpop.f32.mrf.mxu0
      %402 = vmatprep.mubr.bf16.mxu0 0
      %403 = vmatmul.mubr.bf16.gmra.mxu0 %v257
      %v404 = vpop.f32.mrf.mxu0
      %v405 = vadd.f32 0.0, %v404
      %v406 = vpop.f32.mrf.mxu0
      %v407 = vpop.f32.mrf.mxu0
      %v408 = vadd.f32 0.0, %v407
      %v409 = vpop.f32.mrf.mxu0
      %410 = vdwg.mxu0
      %v411 = vpack.c.bf16 %v352, %v349
      %v412 = vpack.c.bf16 %v360, %v357
      %v413 = vpack.c.bf16 %v368, %v365
      %v414 = vpack.c.bf16 %v376, %v373
      %v415 = vpack.c.bf16 %v384, %v381
      %v416 = vpack.c.bf16 %v392, %v389
      %v417 = vpack.c.bf16 %v400, %v397
      %v418 = vpack.c.bf16 %v408, %v405
      %v427 = vunpack.c.l.b16 %v411
      %v428 = vunpack.c.h.b16 %v411
      %v429 = vunpack.c.l.b16 %v412
      %v430 = vunpack.c.h.b16 %v412
      %v431 = vunpack.c.l.b16 %v413
      %v432 = vunpack.c.h.b16 %v413
      %v433 = vunpack.c.l.b16 %v414
      %v434 = vunpack.c.h.b16 %v414
      %v435 = vunpack.c.l.b16 %v415
      %v436 = vunpack.c.h.b16 %v415
      %v437 = vunpack.c.l.b16 %v416
      %v438 = vunpack.c.h.b16 %v416
      %v439 = vunpack.c.l.b16 %v417
      %v440 = vunpack.c.h.b16 %v417
      %v441 = vunpack.c.l.b16 %v418
      %v442 = vunpack.c.h.b16 %v418
      %v443 = vpack.c.b16 %v427, %v427
      %v444 = vpack.c.b16 %v428, %v428
      %v445 = vpack.c.b16 %v429, %v429
      %v446 = vpack.c.b16 %v430, %v430
      %v447 = vpack.c.b16 %v431, %v431
      %v448 = vpack.c.b16 %v432, %v432
      %v449 = vpack.c.b16 %v433, %v433
      %v450 = vpack.c.b16 %v434, %v434
      %v451 = vpack.c.b16 %v435, %v435
      %v452 = vpack.c.b16 %v436, %v436
      %v453 = vpack.c.b16 %v437, %v437
      %v454 = vpack.c.b16 %v438, %v438
      %v455 = vpack.c.b16 %v439, %v439
      %v456 = vpack.c.b16 %v440, %v440
      %v457 = vpack.c.b16 %v441, %v441
      %v458 = vpack.c.b16 %v442, %v442
      %475 = vst [vmem:[%s179] sm:$0xf] %v443
      %476 = vst [vmem:[%s179 + $0x4] sm:$0xf] %v444
      %477 = vst [vmem:[%s179 + $0x8] sm:$0xf] %v445
      %478 = vst [vmem:[%s179 + $0xc] sm:$0xf] %v446
      %479 = vst [vmem:[%s179 + $0x10] sm:$0xf] %v447
      %480 = vst [vmem:[%s179 + $0x14] sm:$0xf] %v448
      %481 = vst [vmem:[%s179 + $0x18] sm:$0xf] %v449
      %482 = vst [vmem:[%s179 + $0x1c] sm:$0xf] %v450
      %483 = vst [vmem:[%s179 + $0x20] sm:$0xf] %v451
      %484 = vst [vmem:[%s179 + $0x24] sm:$0xf] %v452
      %485 = vst [vmem:[%s179 + $0x28] sm:$0xf] %v453
      %486 = vst [vmem:[%s179 + $0x2c] sm:$0xf] %v454
      %487 = vst [vmem:[%s179 + $0x30] sm:$0xf] %v455
      %488 = vst [vmem:[%s179 + $0x34] sm:$0xf] %v456
      %489 = vst [vmem:[%s179 + $0x38] sm:$0xf] %v457
      %490 = vst [vmem:[%s179 + $0x3c] sm:$0xf] %v458
      %v491 = vadd.f32 %v349, %v352
      %v492 = vadd.f32 %v491, %v357
      %v493 = vadd.f32 %v492, %v360
      %v494 = vadd.f32 %v493, %v365
      %v495 = vadd.f32 %v494, %v368
      %v496 = vadd.f32 %v495, %v373
      %v497 = vadd.f32 %v496, %v376
      %v498 = vadd.f32 %v497, %v381
      %v499 = vadd.f32 %v498, %v384
      %v500 = vadd.f32 %v499, %v389
      %v501 = vadd.f32 %v500, %v392
      %v502 = vadd.f32 %v501, %v397
      %v503 = vadd.f32 %v502, %v400
      %v504 = vadd.f32 %v503, %v405
      %v505 = vadd.f32 %v504, %v408
      %v506 = vrot.slane %v505, 4
      %v507 = vadd.f32 %v505, %v506
      %v508 = vrot.slane %v507, 2
      %v509 = vadd.f32 %v507, %v508
      %v510 = vrot.slane %v509, 1
      %v511 = vadd.f32 %v509, %v510
      %v512 = vmul.f32 %v349, %v349
      %v513 = vmul.f32 %v352, %v352
      %v514 = vmul.f32 %v357, %v357
      %v515 = vmul.f32 %v360, %v360
      %v516 = vmul.f32 %v365, %v365
      %v517 = vmul.f32 %v368, %v368
      %v518 = vmul.f32 %v373, %v373
      %v519 = vmul.f32 %v376, %v376
      %v520 = vmul.f32 %v381, %v381
      %v521 = vmul.f32 %v384, %v384
      %v522 = vmul.f32 %v389, %v389
      %v523 = vmul.f32 %v392, %v392
      %v524 = vmul.f32 %v397, %v397
      %v525 = vmul.f32 %v400, %v400
      %v526 = vmul.f32 %v405, %v405
      %v527 = vmul.f32 %v408, %v408
      %v528 = vadd.f32 %v512, %v513
      %v529 = vadd.f32 %v528, %v514
      %v530 = vadd.f32 %v529, %v515
      %v531 = vadd.f32 %v530, %v516
      %v532 = vadd.f32 %v531, %v517
      %v533 = vadd.f32 %v532, %v518
      %v534 = vadd.f32 %v533, %v519
      %v535 = vadd.f32 %v534, %v520
      %v536 = vadd.f32 %v535, %v521
      %v537 = vadd.f32 %v536, %v522
      %v538 = vadd.f32 %v537, %v523
      %v539 = vadd.f32 %v538, %v524
      %v540 = vadd.f32 %v539, %v525
      %v541 = vadd.f32 %v540, %v526
      %v542 = vadd.f32 %v541, %v527
      %v543 = vrot.slane %v542, 4
      %v544 = vadd.f32 %v542, %v543
      %v545 = vrot.slane %v544, 2
      %v546 = vadd.f32 %v544, %v545
      %v547 = vrot.slane %v546, 1
      %v548 = vadd.f32 %v546, %v547
      %vm549 = vcmask 1040384
      %v550 = vsel %vm549, %v511, %v548
      %551 = vst [vmem:[%s184] sm:$0x3] %v550
      %s552 = smul.u32 16, %s15
      %p553 = scmp.lt.s32.totalorder %s552, 63
      %s554 = scalar_select %p553, %s552, 63
      %s555 = smul.addr %s554, 4
      %s556 = scalar_lea.vmem %s2, %s555
      %p557 = scmp.lt.s32.totalorder %s15, 3
      %s558 = scalar_select %p557, %s15, 3
      %s559 = smul.addr %s558, 2
      %s560 = scalar_lea.vmem %s3, %s559
      // Predicated region
      $region29: #{bottleneck_forward_nchw.4} parent=27 // pred_check
        %p561 = pneg %p80
      $region30: #{bottleneck_forward_nchw.4} parent=27 // pred_check_branch
        %563 = sbr.rel (%p561) target = $region32
      $region31: #{bottleneck_forward_nchw.4} parent=27 // pred_region
        %s564 = smul.u32 16, %s15
      $region32: #{bottleneck_forward_nchw.4} parent=27 // pred_fallthru
        _
      // Predicated region
      $region33: #{bottleneck_forward_nchw.4} parent=27 // pred_check
        %p565 = pneg %p106
      $region34: #{bottleneck_forward_nchw.4} parent=27 // pred_check_branch
        %567 = sbr.rel (%p565) target = $region36
      $region35: #{bottleneck_forward_nchw.4} parent=27 // pred_region
        _
      $region36: #{bottleneck_forward_nchw.4} parent=27 // pred_fallthru
        _
    $region28: #{bottleneck_forward_nchw.4} parent=5 // pred_fallthru
      _
    %p568 = scmp.le.s32.totalorder 2, %s10
    // Predicated region
    $region37: #{bottleneck_forward_nchw.4} parent=5 // pred_check
      %p569 = pneg %p568
    $region38: #{bottleneck_forward_nchw.4} parent=5 // pred_check_branch
      %571 = sbr.rel (%p569) target = $region40
    $region39: #{bottleneck_forward_nchw.4} parent=5 // pred_region
      %s572 = ssub.s32 %s10, 2
      // Predicated region
      $region41: #{bottleneck_forward_nchw.4} parent=39 // pred_check
        %p573 = pneg %p86
      $region42: #{bottleneck_forward_nchw.4} parent=39 // pred_check_branch
        %575 = sbr.rel (%p573) target = $region44
      $region43: #{bottleneck_forward_nchw.4} parent=39 // pred_region
        %s576 = smul.u32 16, %s16
        %p577 = scmp.lt.s32.totalorder %s576, 63
        %s578 = scalar_select %p577, %s576, 63
        %s579 = smul.addr %s578, 4
        %s580 = scalar_lea.vmem %s2, %s579
      $region44: #{bottleneck_forward_nchw.4} parent=39 // pred_fallthru
        _
      // Predicated region
      $region45: #{bottleneck_forward_nchw.4} parent=39 // pred_check
        %p581 = pneg %p112
      $region46: #{bottleneck_forward_nchw.4} parent=39 // pred_check_branch
        %583 = sbr.rel (%p581) target = $region48
      $region47: #{bottleneck_forward_nchw.4} parent=39 // pred_region
        %p584 = scmp.lt.s32.totalorder %s16, 3
        %s585 = scalar_select %p584, %s16, 3
        %s586 = smul.addr %s585, 2
        %s587 = scalar_lea.vmem %s3, %s586
      $region48: #{bottleneck_forward_nchw.4} parent=39 // pred_fallthru
        _
    $region40: #{bottleneck_forward_nchw.4} parent=5 // pred_fallthru
      _
  $region6: #{bottleneck_forward_nchw.4} parent=0 // loop_footer
    %s14 = sadd.s32 1, %s10
  $region7: #{bottleneck_forward_nchw.4} parent=0 // loop_footer_branch
    %9 = sbr.rel target = $region3
  $region8: #{bottleneck_forward_nchw.4} parent=0 // loop_exit
    _

// kernel: bottleneck_forward_nchw.6
$region0: #{bottleneck_forward_nchw.6}
  #allocation0 [shape = 'u32[]', space=smem, size = 0x4, offset = 0x4, fixed_abs, tag = 'smem constant byte address 0x4 - core index']
  #allocation1 [shape = 'u32[144,128]{1,0:T(1,128)}', space=vmem, size = 0x12000, scoped, tag = 'internal scratch']
  %s0 = inlined_call_operand.vmem [shape: f32[1,128], index: 0, kind: input, shape index: {}]
  %s1 = inlined_call_operand.vmem [shape: f32[1,128], index: 1, kind: input, shape index: {}]
  %s2 = inlined_call_operand.vmem [shape: bf16[512,128], index: 2, kind: input, shape index: {}]
  %s3 = inlined_call_operand.vmem [shape: bf16[128,128], index: 3, kind: input, shape index: {}]
  %s4 = inlined_call_operand.vmem [shape: bf16[512,128], index: 4, kind: output, shape index: {0}]
  %s5 = inlined_call_operand.vmem [shape: f32[4,2,128], index: 5, kind: output, shape index: {1}]
  %6 = xla_tuple %s4, %s5
  %s7 = sld [smem:[#allocation0]]
  $region57: #{bottleneck_forward_nchw.6} parent=0
    _
  %s9 = ssub.s32 1, %s7
  %s10 = scalar_select 0, %s9, %s7
  loop: start=0, step=1, limit=6
  $region2: #{bottleneck_forward_nchw.6} parent=0 // loop_pre_header
    _
  $region3: #{bottleneck_forward_nchw.6} parent=0 // loop_header
    %s12 = sphi 0, %s16
    %p13 = scmp.ge.s32.totalorder %s12, 6
    %s20 = sphi 0, %s20
    %s22 = sphi 0, %s20
    %s23 = sphi 0, %s22
    %s37 = sphi 0, %s23
    %s41 = sphi 0, %s41
    %s43 = sphi 0, %s41
    %s44 = sphi 0, %s43
    %s58 = sphi 0, %s44
    %s64 = sphi 0, %s66
    %s67 = sphi 0, %s64
    %s68 = sphi 0, %s67
    %s84 = sphi 0, %s68
    %s88 = sphi 0, %s88
    %s90 = sphi 0, %s88
    %s91 = sphi 0, %s90
    %s105 = sphi 0, %s91
    %s111 = sphi 0, %s113
    %s114 = sphi 0, %s111
    %s115 = sphi 0, %s114
    %s131 = sphi 0, %s115
    %s137 = sphi 0, %s139
    %s140 = sphi 0, %s137
    %s141 = sphi 0, %s140
    %s157 = sphi 0, %s141
  $region4: #{bottleneck_forward_nchw.6} parent=0 // loop_header_branch
    %15 = sbr.rel (%p13) target = $region8
  $region5: #{bottleneck_forward_nchw.6} parent=0 // loop_body
    %s17 = ssub.s32 %s12, 1
    %s18 = ssub.s32 %s12, 2
    %s19 = sadd.s32 %s12, 1
    %s21 = sadd.s32 %s20, 1
    %p24 = scmp.eq.s32.totalorder %s12, 3
    %p25 = scmp.ne.s32.totalorder %s20, %s22
    %p26 = scmp.eq.s32.totalorder %s12, 0
    %p27 = por %p25, %p26
    %p28 = scmp.ne.s32.totalorder %s20, %s22
    %p29 = scmp.eq.s32.totalorder %s17, 3
    %p30 = por %p28, %p29
    %p31 = scmp.ne.s32.totalorder %s22, %s23
    %p32 = scmp.eq.s32.totalorder %s17, 0
    %p33 = por %p31, %p32
    %p34 = scmp.ne.s32.totalorder %s22, %s23
    %p35 = scmp.eq.s32.totalorder %s18, 3
    %p36 = por %p34, %p35
    %p38 = scmp.ne.s32.totalorder %s23, %s37
    %p39 = scmp.eq.s32.totalorder %s18, 0
    %p40 = por %p38, %p39
    %s42 = sadd.s32 %s41, 1
    %p45 = scmp.eq.s32.totalorder %s12, 3
    %p46 = scmp.ne.s32.totalorder %s41, %s43
    %p47 = scmp.eq.s32.totalorder %s12, 0
    %p48 = por %p46, %p47
    %p49 = scmp.ne.s32.totalorder %s41, %s43
    %p50 = scmp.eq.s32.totalorder %s17, 3
    %p51 = por %p49, %p50
    %p52 = scmp.ne.s32.totalorder %s43, %s44
    %p53 = scmp.eq.s32.totalorder %s17, 0
    %p54 = por %p52, %p53
    %p55 = scmp.ne.s32.totalorder %s43, %s44
    %p56 = scmp.eq.s32.totalorder %s18, 3
    %p57 = por %p55, %p56
    %p59 = scmp.ne.s32.totalorder %s44, %s58
    %p60 = scmp.eq.s32.totalorder %s18, 0
    %p61 = por %p59, %p60
    %s62 = ssub.s32 %s12, %s19
    %p63 = scmp.eq.s32.totalorder %s62, 0
    %s65 = sadd.s32 %s64, 1
    %s66 = scalar_select %p63, %s64, %s65
    %p69 = pneg %p63
    %p70 = scmp.eq.s32.totalorder %s12, 3
    %p71 = por %p69, %p70
    %p72 = scmp.ne.s32.totalorder %s64, %s67
    %p73 = scmp.eq.s32.totalorder %s12, 0
    %p74 = por %p72, %p73
    %p75 = scmp.ne.s32.totalorder %s64, %s67
    %p76 = scmp.eq.s32.totalorder %s17, 3
    %p77 = por %p75, %p76
    %p78 = scmp.ne.s32.totalorder %s67, %s68
    %p79 = scmp.eq.s32.totalorder %s17, 0
    %p80 = por %p78, %p79
    %p81 = scmp.ne.s32.totalorder %s67, %s68
    %p82 = scmp.eq.s32.totalorder %s18, 3
    %p83 = por %p81, %p82
    %p85 = scmp.ne.s32.totalorder %s68, %s84
    %p86 = scmp.eq.s32.totalorder %s18, 0
    %p87 = por %p85, %p86
    %s89 = sadd.s32 %s88, 1
    %p92 = scmp.eq.s32.totalorder %s12, 3
    %p93 = scmp.ne.s32.totalorder %s88, %s90
    %p94 = scmp.eq.s32.totalorder %s12, 0
    %p95 = por %p93, %p94
    %p96 = scmp.ne.s32.totalorder %s88, %s90
    %p97 = scmp.eq.s32.totalorder %s17, 3
    %p98 = por %p96, %p97
    %p99 = scmp.ne.s32.totalorder %s90, %s91
    %p100 = scmp.eq.s32.totalorder %s17, 0
    %p101 = por %p99, %p100
    %p102 = scmp.ne.s32.totalorder %s90, %s91
    %p103 = scmp.eq.s32.totalorder %s18, 3
    %p104 = por %p102, %p103
    %p106 = scmp.ne.s32.totalorder %s91, %s105
    %p107 = scmp.eq.s32.totalorder %s18, 0
    %p108 = por %p106, %p107
    %s109 = ssub.s32 %s12, %s19
    %p110 = scmp.eq.s32.totalorder %s109, 0
    %s112 = sadd.s32 %s111, 1
    %s113 = scalar_select %p110, %s111, %s112
    %p116 = pneg %p110
    %p117 = scmp.eq.s32.totalorder %s12, 3
    %p118 = por %p116, %p117
    %p119 = scmp.ne.s32.totalorder %s111, %s114
    %p120 = scmp.eq.s32.totalorder %s12, 0
    %p121 = por %p119, %p120
    %p122 = scmp.ne.s32.totalorder %s111, %s114
    %p123 = scmp.eq.s32.totalorder %s17, 3
    %p124 = por %p122, %p123
    %p125 = scmp.ne.s32.totalorder %s114, %s115
    %p126 = scmp.eq.s32.totalorder %s17, 0
    %p127 = por %p125, %p126
    %p128 = scmp.ne.s32.totalorder %s114, %s115
    %p129 = scmp.eq.s32.totalorder %s18, 3
    %p130 = por %p128, %p129
    %p132 = scmp.ne.s32.totalorder %s115, %s131
    %p133 = scmp.eq.s32.totalorder %s18, 0
    %p134 = por %p132, %p133
    %s135 = ssub.s32 %s12, %s19
    %p136 = scmp.eq.s32.totalorder %s135, 0
    %s138 = sadd.s32 %s137, 1
    %s139 = scalar_select %p136, %s137, %s138
    %p142 = pneg %p136
    %p143 = scmp.eq.s32.totalorder %s12, 3
    %p144 = por %p142, %p143
    %p145 = scmp.ne.s32.totalorder %s137, %s140
    %p146 = scmp.eq.s32.totalorder %s12, 0
    %p147 = por %p145, %p146
    %p148 = scmp.ne.s32.totalorder %s137, %s140
    %p149 = scmp.eq.s32.totalorder %s17, 3
    %p150 = por %p148, %p149
    %p151 = scmp.ne.s32.totalorder %s140, %s141
    %p152 = scmp.eq.s32.totalorder %s17, 0
    %p153 = por %p151, %p152
    %p154 = scmp.ne.s32.totalorder %s140, %s141
    %p155 = scmp.eq.s32.totalorder %s18, 3
    %p156 = por %p154, %p155
    %p158 = scmp.ne.s32.totalorder %s141, %s157
    %p159 = scmp.eq.s32.totalorder %s18, 0
    %p160 = por %p158, %p159
    %p161 = scmp.le.s32.totalorder 1, %s12
    %p162 = scmp.lt.s32.totalorder %s12, 5
    %p163 = pnand %p161, %p162
    %p164 = pneg %p163
    // Predicated region
    $region9: #{bottleneck_forward_nchw.6} parent=5 // pred_check
      _
    $region10: #{bottleneck_forward_nchw.6} parent=5 // pred_check_branch
      %166 = sbr.rel (%p163) target = $region12
    $region11: #{bottleneck_forward_nchw.6} parent=5 // pred_region
      %s167 = ssub.s32 %s12, 1
      // Predicated region
      $region13: #{bottleneck_forward_nchw.6} parent=11 // pred_check
        %p168 = pneg %p33
      $region14: #{bottleneck_forward_nchw.6} parent=11 // pred_check_branch
        %170 = sbr.rel (%p168) target = $region16
      $region15: #{bottleneck_forward_nchw.6} parent=11 // pred_region
        _
      $region16: #{bottleneck_forward_nchw.6} parent=11 // pred_fallthru
        _
      // Predicated region
      $region17: #{bottleneck_forward_nchw.6} parent=11 // pred_check
        %p171 = pneg %p54
      $region18: #{bottleneck_forward_nchw.6} parent=11 // pred_check_branch
        %173 = sbr.rel (%p171) target = $region20
      $region19: #{bottleneck_forward_nchw.6} parent=11 // pred_region
        _
      $region20: #{bottleneck_forward_nchw.6} parent=11 // pred_fallthru
        _
      // Predicated region
      $region21: #{bottleneck_forward_nchw.6} parent=11 // pred_check
        %p174 = pneg %p101
      $region22: #{bottleneck_forward_nchw.6} parent=11 // pred_check_branch
        %176 = sbr.rel (%p174) target = $region24
      $region23: #{bottleneck_forward_nchw.6} parent=11 // pred_region
        _
      $region24: #{bottleneck_forward_nchw.6} parent=11 // pred_fallthru
        _
    $region12: #{bottleneck_forward_nchw.6} parent=5 // pred_fallthru
      _
    %p177 = scmp.lt.s32.totalorder %s12, 4
    // Predicated region
    $region25: #{bottleneck_forward_nchw.6} parent=5 // pred_check
      %p178 = pneg %p177
    $region26: #{bottleneck_forward_nchw.6} parent=5 // pred_check_branch
      %180 = sbr.rel (%p178) target = $region28
    $region27: #{bottleneck_forward_nchw.6} parent=5 // pred_region
      // Predicated region
      $region29: #{bottleneck_forward_nchw.6} parent=27 // pred_check
        %p181 = pneg %p74
      $region30: #{bottleneck_forward_nchw.6} parent=27 // pred_check_branch
        %183 = sbr.rel (%p181) target = $region32
      $region31: #{bottleneck_forward_nchw.6} parent=27 // pred_region
        %s184 = smul.u32 16, %s12
        %p185 = scmp.lt.s32.totalorder %s184, 63
        %s186 = scalar_select %p185, %s184, 63
        %s187 = smul.addr %s186, 4
        %s188 = scalar_lea.vmem %s2, %s187
        %s189 = smul.u32 16, %s12
      $region32: #{bottleneck_forward_nchw.6} parent=27 // pred_fallthru
        _
    $region28: #{bottleneck_forward_nchw.6} parent=5 // pred_fallthru
      _
    %p190 = scmp.le.s32.totalorder 1, %s12
    %p191 = scmp.lt.s32.totalorder %s12, 5
    %p192 = pnand %p190, %p191
    %p193 = pneg %p192
    // Predicated region
    $region33: #{bottleneck_forward_nchw.6} parent=5 // pred_check
      _
    $region34: #{bottleneck_forward_nchw.6} parent=5 // pred_check_branch
      %195 = sbr.rel (%p192) target = $region36
    $region35: #{bottleneck_forward_nchw.6} parent=5 // pred_region
      %s196 = ssub.s32 %s12, 1
      %p197 = pneg %p33
      %p198 = pneg %p30
      %p199 = pneg %p54
      %p200 = pneg %p51
      %s201 = smul.u32 16, %s17
      %p202 = scmp.lt.s32.totalorder %s201, 63
      %s203 = scalar_select %p202, %s201, 63
      %s204 = smul.addr %s203, 4
      %s205 = scalar_lea.vmem %s2, %s204
      %p206 = pneg %p80
      %p207 = pneg %p77
      %p208 = pneg %p101
      %p209 = pneg %p98
      %p210 = pneg %p127
      %p211 = pneg %p124
      %s212 = smul.u32 16, %s17
      %p213 = scmp.lt.s32.totalorder %s212, 63
      %s214 = scalar_select %p213, %s212, 63
      %s215 = smul.addr %s214, 4
      %s216 = scalar_lea.vmem %s4, %s215
      %p217 = pneg %p153
      %p218 = pneg %p150
      %p219 = scmp.lt.s32.totalorder %s17, 3
      %s220 = scalar_select %p219, %s17, 3
      %s221 = smul.addr %s220, 2
      %s222 = scalar_lea.vmem %s5, %s221
      %s223 = smul.u32 16, %s17
      %p224 = scmp.lt.s32.totalorder %s223, 63
      %s225 = scalar_select %p224, %s223, 63
      %s226 = smul.addr %s225, 4
      %s227 = scalar_lea.vmem %s2, %s226
      %s228 = smul.u32 16, %s17
      %s229 = smul.u32 16, %s17
      %p230 = scmp.lt.s32.totalorder %s229, 63
      %s231 = scalar_select %p230, %s229, 63
      %s232 = smul.addr %s231, 4
      %s233 = scalar_lea.vmem %s4, %s232
      %s234 = smul.u32 16, %s17
      %p235 = scmp.lt.s32.totalorder %s17, 3
      %s236 = scalar_select %p235, %s17, 3
      %s237 = smul.addr %s236, 2
      %s238 = scalar_lea.vmem %s5, %s237
      %v240 = vld [vmem:[%s227] sm:$0xf]
      %v241 = vld [vmem:[%s227 + $0x4] sm:$0xf]
      %v242 = vld [vmem:[%s227 + $0x8] sm:$0xf]
      %v243 = vld [vmem:[%s227 + $0xc] sm:$0xf]
      %v244 = vld [vmem:[%s227 + $0x10] sm:$0xf]
      %v245 = vld [vmem:[%s227 + $0x14] sm:$0xf]
      %v246 = vld [vmem:[%s227 + $0x18] sm:$0xf]
      %v247 = vld [vmem:[%s227 + $0x1c] sm:$0xf]
      %v248 = vld [vmem:[%s227 + $0x20] sm:$0xf]
      %v249 = vld [vmem:[%s227 + $0x24] sm:$0xf]
      %v250 = vld [vmem:[%s227 + $0x28] sm:$0xf]
      %v251 = vld [vmem:[%s227 + $0x2c] sm:$0xf]
      %v252 = vld [vmem:[%s227 + $0x30] sm:$0xf]
      %v253 = vld [vmem:[%s227 + $0x34] sm:$0xf]
      %v254 = vld [vmem:[%s227 + $0x38] sm:$0xf]
      %v255 = vld [vmem:[%s227 + $0x3c] sm:$0xf]
      %v256 = vunpack.c.l.bf16 %v240
      %v257 = vunpack.c.l.bf16 %v241
      %v258 = vunpack.c.l.bf16 %v242
      %v259 = vunpack.c.l.bf16 %v243
      %v260 = vunpack.c.l.bf16 %v244
      %v261 = vunpack.c.l.bf16 %v245
      %v262 = vunpack.c.l.bf16 %v246
      %v263 = vunpack.c.l.bf16 %v247
      %v264 = vunpack.c.l.bf16 %v248
      %v265 = vunpack.c.l.bf16 %v249
      %v266 = vunpack.c.l.bf16 %v250
      %v267 = vunpack.c.l.bf16 %v251
      %v268 = vunpack.c.l.bf16 %v252
      %v269 = vunpack.c.l.bf16 %v253
      %v270 = vunpack.c.l.bf16 %v254
      %v271 = vunpack.c.l.bf16 %v255
      %v272 = vld [vmem:[%s0] sm:$0x1]
      %v274 = vlaneseq
      %v275 = vshrl.u32 %v274, 7
      %v276 = vsub.s32 0, %v275
      %v277 = vrot.slane %v272, %v276
      %v279 = vmul.f32 %v256, %v277
      %v280 = vmul.f32 %v257, %v277
      %v281 = vmul.f32 %v258, %v277
      %v282 = vmul.f32 %v259, %v277
      %v283 = vmul.f32 %v260, %v277
      %v284 = vmul.f32 %v261, %v277
      %v285 = vmul.f32 %v262, %v277
      %v286 = vmul.f32 %v263, %v277
      %v287 = vmul.f32 %v264, %v277
      %v288 = vmul.f32 %v265, %v277
      %v289 = vmul.f32 %v266, %v277
      %v290 = vmul.f32 %v267, %v277
      %v291 = vmul.f32 %v268, %v277
      %v292 = vmul.f32 %v269, %v277
      %v293 = vmul.f32 %v270, %v277
      %v294 = vmul.f32 %v271, %v277
      %v295 = vld [vmem:[%s1] sm:$0x1]
      %v297 = vlaneseq
      %v298 = vshrl.u32 %v297, 7
      %v299 = vsub.s32 0, %v298
      %v300 = vrot.slane %v295, %v299
      %v302 = vadd.f32 %v279, %v300
      %v303 = vadd.f32 %v280, %v300
      %v304 = vadd.f32 %v281, %v300
      %v305 = vadd.f32 %v282, %v300
      %v306 = vadd.f32 %v283, %v300
      %v307 = vadd.f32 %v284, %v300
      %v308 = vadd.f32 %v285, %v300
      %v309 = vadd.f32 %v286, %v300
      %v310 = vadd.f32 %v287, %v300
      %v311 = vadd.f32 %v288, %v300
      %v312 = vadd.f32 %v289, %v300
      %v313 = vadd.f32 %v290, %v300
      %v314 = vadd.f32 %v291, %v300
      %v315 = vadd.f32 %v292, %v300
      %v316 = vadd.f32 %v293, %v300
      %v317 = vadd.f32 %v294, %v300
      %v318 = vmax.f32 %v302, 0.0
      %v319 = vmax.f32 %v303, 0.0
      %v320 = vmax.f32 %v304, 0.0
      %v321 = vmax.f32 %v305, 0.0
      %v322 = vmax.f32 %v306, 0.0
      %v323 = vmax.f32 %v307, 0.0
      %v324 = vmax.f32 %v308, 0.0
      %v325 = vmax.f32 %v309, 0.0
      %v326 = vmax.f32 %v310, 0.0
      %v327 = vmax.f32 %v311, 0.0
      %v328 = vmax.f32 %v312, 0.0
      %v329 = vmax.f32 %v313, 0.0
      %v330 = vmax.f32 %v314, 0.0
      %v331 = vmax.f32 %v315, 0.0
      %v332 = vmax.f32 %v316, 0.0
      %v333 = vmax.f32 %v317, 0.0
      %v334 = vpack.c.bf16 %v319, %v318
      %v335 = vpack.c.bf16 %v321, %v320
      %v336 = vpack.c.bf16 %v323, %v322
      %v337 = vpack.c.bf16 %v325, %v324
      %v338 = vpack.c.bf16 %v327, %v326
      %v339 = vpack.c.bf16 %v329, %v328
      %v340 = vpack.c.bf16 %v331, %v330
      %v341 = vpack.c.bf16 %v333, %v332
      %v342 = vld [vmem:[%s3] sm:$0xf]
      %v343 = vld [vmem:[%s3 + $0x4] sm:$0xf]
      %v344 = vld [vmem:[%s3 + $0x8] sm:$0xf]
      %v345 = vld [vmem:[%s3 + $0xc] sm:$0xf]
      %v346 = vld [vmem:[%s3 + $0x10] sm:$0xf]
      %v347 = vld [vmem:[%s3 + $0x14] sm:$0xf]
      %v348 = vld [vmem:[%s3 + $0x18] sm:$0xf]
      %v349 = vld [vmem:[%s3 + $0x1c] sm:$0xf]
      %v350 = vld [vmem:[%s3 + $0x20] sm:$0xf]
      %v351 = vld [vmem:[%s3 + $0x24] sm:$0xf]
      %v352 = vld [vmem:[%s3 + $0x28] sm:$0xf]
      %v353 = vld [vmem:[%s3 + $0x2c] sm:$0xf]
      %v354 = vld [vmem:[%s3 + $0x30] sm:$0xf]
      %v355 = vld [vmem:[%s3 + $0x34] sm:$0xf]
      %v356 = vld [vmem:[%s3 + $0x38] sm:$0xf]
      %v357 = vld [vmem:[%s3 + $0x3c] sm:$0xf]
      %v374 = vunpack.c.l.b16 %v342
      %v375 = vunpack.c.l.b16 %v343
      %v376 = vunpack.c.l.b16 %v344
      %v377 = vunpack.c.l.b16 %v345
      %v378 = vunpack.c.l.b16 %v346
      %v379 = vunpack.c.l.b16 %v347
      %v380 = vunpack.c.l.b16 %v348
      %v381 = vunpack.c.l.b16 %v349
      %v382 = vunpack.c.l.b16 %v350
      %v383 = vunpack.c.l.b16 %v351
      %v384 = vunpack.c.l.b16 %v352
      %v385 = vunpack.c.l.b16 %v353
      %v386 = vunpack.c.l.b16 %v354
      %v387 = vunpack.c.l.b16 %v355
      %v388 = vunpack.c.l.b16 %v356
      %v389 = vunpack.c.l.b16 %v357
      %v390 = vpack.c.b16 %v375, %v374
      %v391 = vpack.c.b16 %v377, %v376
      %v392 = vpack.c.b16 %v379, %v378
      %v393 = vpack.c.b16 %v381, %v380
      %v394 = vpack.c.b16 %v383, %v382
      %v395 = vpack.c.b16 %v385, %v384
      %v396 = vpack.c.b16 %v387, %v386
      %v397 = vpack.c.b16 %v389, %v388
      %406 = vmatprep.subr.bf16.mxu0 0
      %407 = vmatpush1.bf16.msra.mxu0 %v397
      %408 = vmatprep.subr.bf16.mxu0 0
      %409 = vmatpush1.bf16.msra.mxu0 %v396
      %410 = vmatprep.subr.bf16.mxu0 0
      %411 = vmatpush1.bf16.msra.mxu0 %v395
      %412 = vmatprep.subr.bf16.mxu0 0
      %413 = vmatpush1.bf16.msra.mxu0 %v394
      %414 = vmatprep.subr.bf16.mxu0 0
      %415 = vmatpush1.bf16.msra.mxu0 %v393
      %416 = vmatprep.subr.bf16.mxu0 0
      %417 = vmatpush1.bf16.msra.mxu0 %v392
      %418 = vmatprep.subr.bf16.mxu0 0
      %419 = vmatpush1.bf16.msra.mxu0 %v391
      %420 = vmatprep.subr.bf16.mxu0 0
      %421 = vmatpush1.bf16.msra.mxu0 %v390
      %422 = vmatprep.subr.bf16.mxu0 0
      %423 = vmatpush2.bf16.msra.mxu0 0
      %424 = vmatprep.subr.bf16.mxu0 0
      %425 = vmatpush2.bf16.msra.mxu0 0
      %426 = vmatprep.subr.bf16.mxu0 0
      %427 = vmatpush2.bf16.msra.mxu0 0
      %428 = vmatprep.subr.bf16.mxu0 0
      %429 = vmatpush2.bf16.msra.mxu0 0
      %430 = vmatprep.subr.bf16.mxu0 0
      %431 = vmatpush2.bf16.msra.mxu0 0
      %432 = vmatprep.subr.bf16.mxu0 0
      %433 = vmatpush2.bf16.msra.mxu0 0
      %434 = vmatprep.subr.bf16.mxu0 0
      %435 = vmatpush2.bf16.msra.mxu0 0
      %436 = vmatprep.subr.bf16.mxu0 0
      %437 = vmatpush2.bf16.msra.mxu0 0
      %438 = vmatprep.mubr.bf16.mxu0 0
      %439 = vmatmul.mubr.bf16.gmra.mxu0 %v334
      %v440 = vpop.f32.mrf.mxu0
      %v441 = vadd.f32 0.0, %v440
      %v442 = vpop.f32.mrf.mxu0
      %v443 = vpop.f32.mrf.mxu0
      %v444 = vadd.f32 0.0, %v443
      %v445 = vpop.f32.mrf.mxu0
      %446 = vmatprep.mubr.bf16.mxu0 0
      %447 = vmatmul.mubr.bf16.gmra.mxu0 %v335
      %v448 = vpop.f32.mrf.mxu0
      %v449 = vadd.f32 0.0, %v448
      %v450 = vpop.f32.mrf.mxu0
      %v451 = vpop.f32.mrf.mxu0
      %v452 = vadd.f32 0.0, %v451
      %v453 = vpop.f32.mrf.mxu0
      %454 = vmatprep.mubr.bf16.mxu0 0
      %455 = vmatmul.mubr.bf16.gmra.mxu0 %v336
      %v456 = vpop.f32.mrf.mxu0
      %v457 = vadd.f32 0.0, %v456
      %v458 = vpop.f32.mrf.mxu0
      %v459 = vpop.f32.mrf.mxu0
      %v460 = vadd.f32 0.0, %v459
      %v461 = vpop.f32.mrf.mxu0
      %462 = vmatprep.mubr.bf16.mxu0 0
      %463 = vmatmul.mubr.bf16.gmra.mxu0 %v337
      %v464 = vpop.f32.mrf.mxu0
      %v465 = vadd.f32 0.0, %v464
      %v466 = vpop.f32.mrf.mxu0
      %v467 = vpop.f32.mrf.mxu0
      %v468 = vadd.f32 0.0, %v467
      %v469 = vpop.f32.mrf.mxu0
      %470 = vmatprep.mubr.bf16.mxu0 0
      %471 = vmatmul.mubr.bf16.gmra.mxu0 %v338
      %v472 = vpop.f32.mrf.mxu0
      %v473 = vadd.f32 0.0, %v472
      %v474 = vpop.f32.mrf.mxu0
      %v475 = vpop.f32.mrf.mxu0
      %v476 = vadd.f32 0.0, %v475
      %v477 = vpop.f32.mrf.mxu0
      %478 = vmatprep.mubr.bf16.mxu0 0
      %479 = vmatmul.mubr.bf16.gmra.mxu0 %v339
      %v480 = vpop.f32.mrf.mxu0
      %v481 = vadd.f32 0.0, %v480
      %v482 = vpop.f32.mrf.mxu0
      %v483 = vpop.f32.mrf.mxu0
      %v484 = vadd.f32 0.0, %v483
      %v485 = vpop.f32.mrf.mxu0
      %486 = vmatprep.mubr.bf16.mxu0 0
      %487 = vmatmul.mubr.bf16.gmra.mxu0 %v340
      %v488 = vpop.f32.mrf.mxu0
      %v489 = vadd.f32 0.0, %v488
      %v490 = vpop.f32.mrf.mxu0
      %v491 = vpop.f32.mrf.mxu0
      %v492 = vadd.f32 0.0, %v491
      %v493 = vpop.f32.mrf.mxu0
      %494 = vmatprep.mubr.bf16.mxu0 0
      %495 = vmatmul.mubr.bf16.gmra.mxu0 %v341
      %v496 = vpop.f32.mrf.mxu0
      %v497 = vadd.f32 0.0, %v496
      %v498 = vpop.f32.mrf.mxu0
      %v499 = vpop.f32.mrf.mxu0
      %v500 = vadd.f32 0.0, %v499
      %v501 = vpop.f32.mrf.mxu0
      %502 = vdwg.mxu0
      %v503 = vpack.c.bf16 %v444, %v441
      %v504 = vpack.c.bf16 %v452, %v449
      %v505 = vpack.c.bf16 %v460, %v457
      %v506 = vpack.c.bf16 %v468, %v465
      %v507 = vpack.c.bf16 %v476, %v473
      %v508 = vpack.c.bf16 %v484, %v481
      %v509 = vpack.c.bf16 %v492, %v489
      %v510 = vpack.c.bf16 %v500, %v497
      %v519 = vunpack.c.l.b16 %v503
      %v520 = vunpack.c.h.b16 %v503
      %v521 = vunpack.c.l.b16 %v504
      %v522 = vunpack.c.h.b16 %v504
      %v523 = vunpack.c.l.b16 %v505
      %v524 = vunpack.c.h.b16 %v505
      %v525 = vunpack.c.l.b16 %v506
      %v526 = vunpack.c.h.b16 %v506
      %v527 = vunpack.c.l.b16 %v507
      %v528 = vunpack.c.h.b16 %v507
      %v529 = vunpack.c.l.b16 %v508
      %v530 = vunpack.c.h.b16 %v508
      %v531 = vunpack.c.l.b16 %v509
      %v532 = vunpack.c.h.b16 %v509
      %v533 = vunpack.c.l.b16 %v510
      %v534 = vunpack.c.h.b16 %v510
      %v535 = vpack.c.b16 %v519, %v519
      %v536 = vpack.c.b16 %v520, %v520
      %v537 = vpack.c.b16 %v521, %v521
      %v538 = vpack.c.b16 %v522, %v522
      %v539 = vpack.c.b16 %v523, %v523
      %v540 = vpack.c.b16 %v524, %v524
      %v541 = vpack.c.b16 %v525, %v525
      %v542 = vpack.c.b16 %v526, %v526
      %v543 = vpack.c.b16 %v527, %v527
      %v544 = vpack.c.b16 %v528, %v528
      %v545 = vpack.c.b16 %v529, %v529
      %v546 = vpack.c.b16 %v530, %v530
      %v547 = vpack.c.b16 %v531, %v531
      %v548 = vpack.c.b16 %v532, %v532
      %v549 = vpack.c.b16 %v533, %v533
      %v550 = vpack.c.b16 %v534, %v534
      %567 = vst [vmem:[%s233] sm:$0xf] %v535
      %568 = vst [vmem:[%s233 + $0x4] sm:$0xf] %v536
      %569 = vst [vmem:[%s233 + $0x8] sm:$0xf] %v537
      %570 = vst [vmem:[%s233 + $0xc] sm:$0xf] %v538
      %571 = vst [vmem:[%s233 + $0x10] sm:$0xf] %v539
      %572 = vst [vmem:[%s233 + $0x14] sm:$0xf] %v540
      %573 = vst [vmem:[%s233 + $0x18] sm:$0xf] %v541
      %574 = vst [vmem:[%s233 + $0x1c] sm:$0xf] %v542
      %575 = vst [vmem:[%s233 + $0x20] sm:$0xf] %v543
      %576 = vst [vmem:[%s233 + $0x24] sm:$0xf] %v544
      %577 = vst [vmem:[%s233 + $0x28] sm:$0xf] %v545
      %578 = vst [vmem:[%s233 + $0x2c] sm:$0xf] %v546
      %579 = vst [vmem:[%s233 + $0x30] sm:$0xf] %v547
      %580 = vst [vmem:[%s233 + $0x34] sm:$0xf] %v548
      %581 = vst [vmem:[%s233 + $0x38] sm:$0xf] %v549
      %582 = vst [vmem:[%s233 + $0x3c] sm:$0xf] %v550
      %v583 = vadd.f32 %v441, %v444
      %v584 = vadd.f32 %v583, %v449
      %v585 = vadd.f32 %v584, %v452
      %v586 = vadd.f32 %v585, %v457
      %v587 = vadd.f32 %v586, %v460
      %v588 = vadd.f32 %v587, %v465
      %v589 = vadd.f32 %v588, %v468
      %v590 = vadd.f32 %v589, %v473
      %v591 = vadd.f32 %v590, %v476
      %v592 = vadd.f32 %v591, %v481
      %v593 = vadd.f32 %v592, %v484
      %v594 = vadd.f32 %v593, %v489
      %v595 = vadd.f32 %v594, %v492
      %v596 = vadd.f32 %v595, %v497
      %v597 = vadd.f32 %v596, %v500
      %v598 = vrot.slane %v597, 4
      %v599 = vadd.f32 %v597, %v598
      %v600 = vrot.slane %v599, 2
      %v601 = vadd.f32 %v599, %v600
      %v602 = vrot.slane %v601, 1
      %v603 = vadd.f32 %v601, %v602
      %v604 = vmul.f32 %v441, %v441
      %v605 = vmul.f32 %v444, %v444
      %v606 = vmul.f32 %v449, %v449
      %v607 = vmul.f32 %v452, %v452
      %v608 = vmul.f32 %v457, %v457
      %v609 = vmul.f32 %v460, %v460
      %v610 = vmul.f32 %v465, %v465
      %v611 = vmul.f32 %v468, %v468
      %v612 = vmul.f32 %v473, %v473
      %v613 = vmul.f32 %v476, %v476
      %v614 = vmul.f32 %v481, %v481
      %v615 = vmul.f32 %v484, %v484
      %v616 = vmul.f32 %v489, %v489
      %v617 = vmul.f32 %v492, %v492
      %v618 = vmul.f32 %v497, %v497
      %v619 = vmul.f32 %v500, %v500
      %v620 = vadd.f32 %v604, %v605
      %v621 = vadd.f32 %v620, %v606
      %v622 = vadd.f32 %v621, %v607
      %v623 = vadd.f32 %v622, %v608
      %v624 = vadd.f32 %v623, %v609
      %v625 = vadd.f32 %v624, %v610
      %v626 = vadd.f32 %v625, %v611
      %v627 = vadd.f32 %v626, %v612
      %v628 = vadd.f32 %v627, %v613
      %v629 = vadd.f32 %v628, %v614
      %v630 = vadd.f32 %v629, %v615
      %v631 = vadd.f32 %v630, %v616
      %v632 = vadd.f32 %v631, %v617
      %v633 = vadd.f32 %v632, %v618
      %v634 = vadd.f32 %v633, %v619
      %v635 = vrot.slane %v634, 4
      %v636 = vadd.f32 %v634, %v635
      %v637 = vrot.slane %v636, 2
      %v638 = vadd.f32 %v636, %v637
      %v639 = vrot.slane %v638, 1
      %v640 = vadd.f32 %v638, %v639
      %vm641 = vcmask 1040384
      %v642 = vsel %vm641, %v603, %v640
      %643 = vst [vmem:[%s238] sm:$0x3] %v642
      %s644 = smul.u32 16, %s17
      %p645 = scmp.lt.s32.totalorder %s644, 63
      %s646 = scalar_select %p645, %s644, 63
      %s647 = smul.addr %s646, 4
      %s648 = scalar_lea.vmem %s4, %s647
      %p649 = scmp.lt.s32.totalorder %s17, 3
      %s650 = scalar_select %p649, %s17, 3
      %s651 = smul.addr %s650, 2
      %s652 = scalar_lea.vmem %s5, %s651
      // Predicated region
      $region37: #{bottleneck_forward_nchw.6} parent=35 // pred_check
        %p653 = pneg %p124
      $region38: #{bottleneck_forward_nchw.6} parent=35 // pred_check_branch
        %655 = sbr.rel (%p653) target = $region40
      $region39: #{bottleneck_forward_nchw.6} parent=35 // pred_region
        %s656 = smul.u32 16, %s17
      $region40: #{bottleneck_forward_nchw.6} parent=35 // pred_fallthru
        _
      // Predicated region
      $region41: #{bottleneck_forward_nchw.6} parent=35 // pred_check
        %p657 = pneg %p150
      $region42: #{bottleneck_forward_nchw.6} parent=35 // pred_check_branch
        %659 = sbr.rel (%p657) target = $region44
      $region43: #{bottleneck_forward_nchw.6} parent=35 // pred_region
        _
      $region44: #{bottleneck_forward_nchw.6} parent=35 // pred_fallthru
        _
    $region36: #{bottleneck_forward_nchw.6} parent=5 // pred_fallthru
      _
    %p660 = scmp.le.s32.totalorder 2, %s12
    // Predicated region
    $region45: #{bottleneck_forward_nchw.6} parent=5 // pred_check
      %p661 = pneg %p660
    $region46: #{bottleneck_forward_nchw.6} parent=5 // pred_check_branch
      %663 = sbr.rel (%p661) target = $region48
    $region47: #{bottleneck_forward_nchw.6} parent=5 // pred_region
      %s664 = ssub.s32 %s12, 2
      // Predicated region
      $region49: #{bottleneck_forward_nchw.6} parent=47 // pred_check
        %p665 = pneg %p130
      $region50: #{bottleneck_forward_nchw.6} parent=47 // pred_check_branch
        %667 = sbr.rel (%p665) target = $region52
      $region51: #{bottleneck_forward_nchw.6} parent=47 // pred_region
        %s668 = smul.u32 16, %s18
        %p669 = scmp.lt.s32.totalorder %s668, 63
        %s670 = scalar_select %p669, %s668, 63
        %s671 = smul.addr %s670, 4
        %s672 = scalar_lea.vmem %s4, %s671
      $region52: #{bottleneck_forward_nchw.6} parent=47 // pred_fallthru
        _
      // Predicated region
      $region53: #{bottleneck_forward_nchw.6} parent=47 // pred_check
        %p673 = pneg %p156
      $region54: #{bottleneck_forward_nchw.6} parent=47 // pred_check_branch
        %675 = sbr.rel (%p673) target = $region56
      $region55: #{bottleneck_forward_nchw.6} parent=47 // pred_region
        %p676 = scmp.lt.s32.totalorder %s18, 3
        %s677 = scalar_select %p676, %s18, 3
        %s678 = smul.addr %s677, 2
        %s679 = scalar_lea.vmem %s5, %s678
      $region56: #{bottleneck_forward_nchw.6} parent=47 // pred_fallthru
        _
    $region48: #{bottleneck_forward_nchw.6} parent=5 // pred_fallthru
      _
  $region6: #{bottleneck_forward_nchw.6} parent=0 // loop_footer
    %s16 = sadd.s32 1, %s12
  $region7: #{bottleneck_forward_nchw.6} parent=0 // loop_footer_branch
    %11 = sbr.rel target = $region3
  $region8: #{bottleneck_forward_nchw.6} parent=0 // loop_exit
    _

// kernel: bottleneck_forward_nchw.5
$region0: #{bottleneck_forward_nchw.5}
  #allocation0 [shape = 'u32[]', space=smem, size = 0x4, offset = 0x4, fixed_abs, tag = 'smem constant byte address 0x4 - core index']
  #allocation1 [shape = 'u32[144,128]{1,0:T(1,128)}', space=vmem, size = 0x12000, scoped, tag = 'internal scratch']
  %s0 = inlined_call_operand.vmem [shape: f32[1,128], index: 0, kind: input, shape index: {}]
  %s1 = inlined_call_operand.vmem [shape: f32[1,128], index: 1, kind: input, shape index: {}]
  %s2 = inlined_call_operand.vmem [shape: bf16[2,16,16,128], index: 2, kind: input, shape index: {}]
  %s3 = inlined_call_operand.vmem [shape: bf16[3,384,128], index: 3, kind: input, shape index: {}]
  %s4 = inlined_call_operand.vmem [shape: bf16[2,16,16,128], index: 4, kind: output, shape index: {0}]
  %s5 = inlined_call_operand.vmem [shape: f32[2,2,128], index: 5, kind: output, shape index: {1}]
  %6 = xla_tuple %s4, %s5
  %s7 = sld [smem:[#allocation0]]
  $region57: #{bottleneck_forward_nchw.5} parent=0
    _
  %s9 = ssub.s32 1, %s7
  %s10 = scalar_select 0, %s9, %s7
  loop: start=0, step=1, limit=4
  $region2: #{bottleneck_forward_nchw.5} parent=0 // loop_pre_header
    _
  $region3: #{bottleneck_forward_nchw.5} parent=0 // loop_header
    %s12 = sphi 0, %s16
    %p13 = scmp.ge.s32.totalorder %s12, 4
    %s20 = sphi 0, %s20
    %s22 = sphi 0, %s20
    %s23 = sphi 0, %s22
    %s37 = sphi 0, %s23
    %s41 = sphi 0, %s41
    %s43 = sphi 0, %s41
    %s44 = sphi 0, %s43
    %s58 = sphi 0, %s44
    %s64 = sphi 0, %s66
    %s67 = sphi 0, %s64
    %s68 = sphi 0, %s67
    %s84 = sphi 0, %s68
    %s88 = sphi 0, %s88
    %s90 = sphi 0, %s88
    %s91 = sphi 0, %s90
    %s105 = sphi 0, %s91
    %s111 = sphi 0, %s113
    %s114 = sphi 0, %s111
    %s115 = sphi 0, %s114
    %s131 = sphi 0, %s115
    %s137 = sphi 0, %s139
    %s140 = sphi 0, %s137
    %s141 = sphi 0, %s140
    %s157 = sphi 0, %s141
  $region4: #{bottleneck_forward_nchw.5} parent=0 // loop_header_branch
    %15 = sbr.rel (%p13) target = $region8
  $region5: #{bottleneck_forward_nchw.5} parent=0 // loop_body
    %s17 = ssub.s32 %s12, 1
    %s18 = ssub.s32 %s12, 2
    %s19 = sadd.s32 %s12, 1
    %s21 = sadd.s32 %s20, 1
    %p24 = scmp.eq.s32.totalorder %s12, 1
    %p25 = scmp.ne.s32.totalorder %s20, %s22
    %p26 = scmp.eq.s32.totalorder %s12, 0
    %p27 = por %p25, %p26
    %p28 = scmp.ne.s32.totalorder %s20, %s22
    %p29 = scmp.eq.s32.totalorder %s17, 1
    %p30 = por %p28, %p29
    %p31 = scmp.ne.s32.totalorder %s22, %s23
    %p32 = scmp.eq.s32.totalorder %s17, 0
    %p33 = por %p31, %p32
    %p34 = scmp.ne.s32.totalorder %s22, %s23
    %p35 = scmp.eq.s32.totalorder %s18, 1
    %p36 = por %p34, %p35
    %p38 = scmp.ne.s32.totalorder %s23, %s37
    %p39 = scmp.eq.s32.totalorder %s18, 0
    %p40 = por %p38, %p39
    %s42 = sadd.s32 %s41, 1
    %p45 = scmp.eq.s32.totalorder %s12, 1
    %p46 = scmp.ne.s32.totalorder %s41, %s43
    %p47 = scmp.eq.s32.totalorder %s12, 0
    %p48 = por %p46, %p47
    %p49 = scmp.ne.s32.totalorder %s41, %s43
    %p50 = scmp.eq.s32.totalorder %s17, 1
    %p51 = por %p49, %p50
    %p52 = scmp.ne.s32.totalorder %s43, %s44
    %p53 = scmp.eq.s32.totalorder %s17, 0
    %p54 = por %p52, %p53
    %p55 = scmp.ne.s32.totalorder %s43, %s44
    %p56 = scmp.eq.s32.totalorder %s18, 1
    %p57 = por %p55, %p56
    %p59 = scmp.ne.s32.totalorder %s44, %s58
    %p60 = scmp.eq.s32.totalorder %s18, 0
    %p61 = por %p59, %p60
    %s62 = ssub.s32 %s12, %s19
    %p63 = scmp.eq.s32.totalorder %s62, 0
    %s65 = sadd.s32 %s64, 1
    %s66 = scalar_select %p63, %s64, %s65
    %p69 = pneg %p63
    %p70 = scmp.eq.s32.totalorder %s12, 1
    %p71 = por %p69, %p70
    %p72 = scmp.ne.s32.totalorder %s64, %s67
    %p73 = scmp.eq.s32.totalorder %s12, 0
    %p74 = por %p72, %p73
    %p75 = scmp.ne.s32.totalorder %s64, %s67
    %p76 = scmp.eq.s32.totalorder %s17, 1
    %p77 = por %p75, %p76
    %p78 = scmp.ne.s32.totalorder %s67, %s68
    %p79 = scmp.eq.s32.totalorder %s17, 0
    %p80 = por %p78, %p79
    %p81 = scmp.ne.s32.totalorder %s67, %s68
    %p82 = scmp.eq.s32.totalorder %s18, 1
    %p83 = por %p81, %p82
    %p85 = scmp.ne.s32.totalorder %s68, %s84
    %p86 = scmp.eq.s32.totalorder %s18, 0
    %p87 = por %p85, %p86
    %s89 = sadd.s32 %s88, 1
    %p92 = scmp.eq.s32.totalorder %s12, 1
    %p93 = scmp.ne.s32.totalorder %s88, %s90
    %p94 = scmp.eq.s32.totalorder %s12, 0
    %p95 = por %p93, %p94
    %p96 = scmp.ne.s32.totalorder %s88, %s90
    %p97 = scmp.eq.s32.totalorder %s17, 1
    %p98 = por %p96, %p97
    %p99 = scmp.ne.s32.totalorder %s90, %s91
    %p100 = scmp.eq.s32.totalorder %s17, 0
    %p101 = por %p99, %p100
    %p102 = scmp.ne.s32.totalorder %s90, %s91
    %p103 = scmp.eq.s32.totalorder %s18, 1
    %p104 = por %p102, %p103
    %p106 = scmp.ne.s32.totalorder %s91, %s105
    %p107 = scmp.eq.s32.totalorder %s18, 0
    %p108 = por %p106, %p107
    %s109 = ssub.s32 %s12, %s19
    %p110 = scmp.eq.s32.totalorder %s109, 0
    %s112 = sadd.s32 %s111, 1
    %s113 = scalar_select %p110, %s111, %s112
    %p116 = pneg %p110
    %p117 = scmp.eq.s32.totalorder %s12, 1
    %p118 = por %p116, %p117
    %p119 = scmp.ne.s32.totalorder %s111, %s114
    %p120 = scmp.eq.s32.totalorder %s12, 0
    %p121 = por %p119, %p120
    %p122 = scmp.ne.s32.totalorder %s111, %s114
    %p123 = scmp.eq.s32.totalorder %s17, 1
    %p124 = por %p122, %p123
    %p125 = scmp.ne.s32.totalorder %s114, %s115
    %p126 = scmp.eq.s32.totalorder %s17, 0
    %p127 = por %p125, %p126
    %p128 = scmp.ne.s32.totalorder %s114, %s115
    %p129 = scmp.eq.s32.totalorder %s18, 1
    %p130 = por %p128, %p129
    %p132 = scmp.ne.s32.totalorder %s115, %s131
    %p133 = scmp.eq.s32.totalorder %s18, 0
    %p134 = por %p132, %p133
    %s135 = ssub.s32 %s12, %s19
    %p136 = scmp.eq.s32.totalorder %s135, 0
    %s138 = sadd.s32 %s137, 1
    %s139 = scalar_select %p136, %s137, %s138
    %p142 = pneg %p136
    %p143 = scmp.eq.s32.totalorder %s12, 1
    %p144 = por %p142, %p143
    %p145 = scmp.ne.s32.totalorder %s137, %s140
    %p146 = scmp.eq.s32.totalorder %s12, 0
    %p147 = por %p145, %p146
    %p148 = scmp.ne.s32.totalorder %s137, %s140
    %p149 = scmp.eq.s32.totalorder %s17, 1
    %p150 = por %p148, %p149
    %p151 = scmp.ne.s32.totalorder %s140, %s141
    %p152 = scmp.eq.s32.totalorder %s17, 0
    %p153 = por %p151, %p152
    %p154 = scmp.ne.s32.totalorder %s140, %s141
    %p155 = scmp.eq.s32.totalorder %s18, 1
    %p156 = por %p154, %p155
    %p158 = scmp.ne.s32.totalorder %s141, %s157
    %p159 = scmp.eq.s32.totalorder %s18, 0
    %p160 = por %p158, %p159
    %p161 = scmp.le.s32.totalorder 1, %s12
    %p162 = scmp.lt.s32.totalorder %s12, 3
    %p163 = pnand %p161, %p162
    %p164 = pneg %p163
    // Predicated region
    $region9: #{bottleneck_forward_nchw.5} parent=5 // pred_check
      _
    $region10: #{bottleneck_forward_nchw.5} parent=5 // pred_check_branch
      %166 = sbr.rel (%p163) target = $region12
    $region11: #{bottleneck_forward_nchw.5} parent=5 // pred_region
      %s167 = ssub.s32 %s12, 1
      // Predicated region
      $region13: #{bottleneck_forward_nchw.5} parent=11 // pred_check
        %p168 = pneg %p33
      $region14: #{bottleneck_forward_nchw.5} parent=11 // pred_check_branch
        %170 = sbr.rel (%p168) target = $region16
      $region15: #{bottleneck_forward_nchw.5} parent=11 // pred_region
        _
      $region16: #{bottleneck_forward_nchw.5} parent=11 // pred_fallthru
        _
      // Predicated region
      $region17: #{bottleneck_forward_nchw.5} parent=11 // pred_check
        %p171 = pneg %p54
      $region18: #{bottleneck_forward_nchw.5} parent=11 // pred_check_branch
        %173 = sbr.rel (%p171) target = $region20
      $region19: #{bottleneck_forward_nchw.5} parent=11 // pred_region
        _
      $region20: #{bottleneck_forward_nchw.5} parent=11 // pred_fallthru
        _
      // Predicated region
      $region21: #{bottleneck_forward_nchw.5} parent=11 // pred_check
        %p174 = pneg %p101
      $region22: #{bottleneck_forward_nchw.5} parent=11 // pred_check_branch
        %176 = sbr.rel (%p174) target = $region24
      $region23: #{bottleneck_forward_nchw.5} parent=11 // pred_region
        _
      $region24: #{bottleneck_forward_nchw.5} parent=11 // pred_fallthru
        _
    $region12: #{bottleneck_forward_nchw.5} parent=5 // pred_fallthru
      _
    %p177 = scmp.lt.s32.totalorder %s12, 2
    // Predicated region
    $region25: #{bottleneck_forward_nchw.5} parent=5 // pred_check
      %p178 = pneg %p177
    $region26: #{bottleneck_forward_nchw.5} parent=5 // pred_check_branch
      %180 = sbr.rel (%p178) target = $region28
    $region27: #{bottleneck_forward_nchw.5} parent=5 // pred_region
      // Predicated region
      $region29: #{bottleneck_forward_nchw.5} parent=27 // pred_check
        %p181 = pneg %p74
      $region30: #{bottleneck_forward_nchw.5} parent=27 // pred_check_branch
        %183 = sbr.rel (%p181) target = $region32
      $region31: #{bottleneck_forward_nchw.5} parent=27 // pred_region
        %p184 = scmp.lt.s32.totalorder %s12, 1
        %s185 = scalar_select %p184, %s12, 1
        %s186 = smul.addr %s185, 32
        %s187 = smul.addr %s186, 4
        %s188 = scalar_lea.vmem %s2, %s187
      $region32: #{bottleneck_forward_nchw.5} parent=27 // pred_fallthru
        _
    $region28: #{bottleneck_forward_nchw.5} parent=5 // pred_fallthru
      _
    %p189 = scmp.le.s32.totalorder 1, %s12
    %p190 = scmp.lt.s32.totalorder %s12, 3
    %p191 = pnand %p189, %p190
    %p192 = pneg %p191
    // Predicated region
    $region33: #{bottleneck_forward_nchw.5} parent=5 // pred_check
      _
    $region34: #{bottleneck_forward_nchw.5} parent=5 // pred_check_branch
      %194 = sbr.rel (%p191) target = $region36
    $region35: #{bottleneck_forward_nchw.5} parent=5 // pred_region
      %s195 = ssub.s32 %s12, 1
      %p196 = pneg %p33
      %p197 = pneg %p30
      %p198 = pneg %p54
      %p199 = pneg %p51
      %p200 = scmp.lt.s32.totalorder %s17, 1
      %s201 = scalar_select %p200, %s17, 1
      %s202 = smul.addr %s201, 32
      %s203 = smul.addr %s202, 4
      %s204 = scalar_lea.vmem %s2, %s203
      %p205 = pneg %p80
      %p206 = pneg %p77
      %p207 = pneg %p101
      %p208 = pneg %p98
      %p209 = pneg %p127
      %p210 = pneg %p124
      %p211 = scmp.lt.s32.totalorder %s17, 1
      %s212 = scalar_select %p211, %s17, 1
      %s213 = smul.addr %s212, 32
      %s214 = smul.addr %s213, 4
      %s215 = scalar_lea.vmem %s4, %s214
      %p216 = pneg %p153
      %p217 = pneg %p150
      %p218 = scmp.lt.s32.totalorder %s17, 1
      %s219 = scalar_select %p218, %s17, 1
      %s220 = smul.addr %s219, 2
      %s221 = scalar_lea.vmem %s5, %s220
      %p222 = scmp.lt.s32.totalorder %s17, 1
      %s223 = scalar_select %p222, %s17, 1
      %s224 = smul.addr %s223, 32
      %s225 = smul.addr %s224, 4
      %s226 = scalar_lea.vmem %s2, %s225
      %p227 = scmp.lt.s32.totalorder %s17, 1
      %s228 = scalar_select %p227, %s17, 1
      %s229 = smul.addr %s228, 32
      %s230 = smul.addr %s229, 4
      %s231 = scalar_lea.vmem %s4, %s230
      %p232 = scmp.lt.s32.totalorder %s17, 1
      %s233 = scalar_select %p232, %s17, 1
      %s234 = smul.addr %s233, 2
      %s235 = scalar_lea.vmem %s5, %s234
      %v237 = vld [vmem:[%s226] sm:$0xf]
      %v238 = vld [vmem:[%s226 + $0x4] sm:$0xf]
      %v239 = vld [vmem:[%s226 + $0x8] sm:$0xf]
      %v240 = vld [vmem:[%s226 + $0xc] sm:$0xf]
      %v241 = vld [vmem:[%s226 + $0x10] sm:$0xf]
      %v242 = vld [vmem:[%s226 + $0x14] sm:$0xf]
      %v243 = vld [vmem:[%s226 + $0x18] sm:$0xf]
      %v244 = vld [vmem:[%s226 + $0x1c] sm:$0xf]
      %v245 = vld [vmem:[%s226 + $0x20] sm:$0xf]
      %v246 = vld [vmem:[%s226 + $0x24] sm:$0xf]
      %v247 = vld [vmem:[%s226 + $0x28] sm:$0xf]
      %v248 = vld [vmem:[%s226 + $0x2c] sm:$0xf]
      %v249 = vld [vmem:[%s226 + $0x30] sm:$0xf]
      %v250 = vld [vmem:[%s226 + $0x34] sm:$0xf]
      %v251 = vld [vmem:[%s226 + $0x38] sm:$0xf]
      %v252 = vld [vmem:[%s226 + $0x3c] sm:$0xf]
      %v253 = vld [vmem:[%s226 + $0x40] sm:$0xf]
      %v254 = vld [vmem:[%s226 + $0x44] sm:$0xf]
      %v255 = vld [vmem:[%s226 + $0x48] sm:$0xf]
      %v256 = vld [vmem:[%s226 + $0x4c] sm:$0xf]
      %v257 = vld [vmem:[%s226 + $0x50] sm:$0xf]
      %v258 = vld [vmem:[%s226 + $0x54] sm:$0xf]
      %v259 = vld [vmem:[%s226 + $0x58] sm:$0xf]
      %v260 = vld [vmem:[%s226 + $0x5c] sm:$0xf]
      %v261 = vld [vmem:[%s226 + $0x60] sm:$0xf]
      %v262 = vld [vmem:[%s226 + $0x64] sm:$0xf]
      %v263 = vld [vmem:[%s226 + $0x68] sm:$0xf]
      %v264 = vld [vmem:[%s226 + $0x6c] sm:$0xf]
      %v265 = vld [vmem:[%s226 + $0x70] sm:$0xf]
      %v266 = vld [vmem:[%s226 + $0x74] sm:$0xf]
      %v267 = vld [vmem:[%s226 + $0x78] sm:$0xf]
      %v268 = vld [vmem:[%s226 + $0x7c] sm:$0xf]
      %v269 = vunpack.c.l.bf16 %v237
      %v270 = vunpack.c.l.bf16 %v238
      %v271 = vunpack.c.l.bf16 %v239
      %v272 = vunpack.c.l.bf16 %v240
      %v273 = vunpack.c.l.bf16 %v241
      %v274 = vunpack.c.l.bf16 %v242
      %v275 = vunpack.c.l.bf16 %v243
      %v276 = vunpack.c.l.bf16 %v244
      %v277 = vunpack.c.l.bf16 %v245
      %v278 = vunpack.c.l.bf16 %v246
      %v279 = vunpack.c.l.bf16 %v247
      %v280 = vunpack.c.l.bf16 %v248
      %v281 = vunpack.c.l.bf16 %v249
      %v282 = vunpack.c.l.bf16 %v250
      %v283 = vunpack.c.l.bf16 %v251
      %v284 = vunpack.c.l.bf16 %v252
      %v285 = vunpack.c.l.bf16 %v253
      %v286 = vunpack.c.l.bf16 %v254
      %v287 = vunpack.c.l.bf16 %v255
      %v288 = vunpack.c.l.bf16 %v256
      %v289 = vunpack.c.l.bf16 %v257
      %v290 = vunpack.c.l.bf16 %v258
      %v291 = vunpack.c.l.bf16 %v259
      %v292 = vunpack.c.l.bf16 %v260
      %v293 = vunpack.c.l.bf16 %v261
      %v294 = vunpack.c.l.bf16 %v262
      %v295 = vunpack.c.l.bf16 %v263
      %v296 = vunpack.c.l.bf16 %v264
      %v297 = vunpack.c.l.bf16 %v265
      %v298 = vunpack.c.l.bf16 %v266
      %v299 = vunpack.c.l.bf16 %v267
      %v300 = vunpack.c.l.bf16 %v268
      %v301 = vld [vmem:[%s0] sm:$0x1]
      %v303 = vlaneseq
      %v304 = vshrl.u32 %v303, 7
      %v305 = vsub.s32 0, %v304
      %v306 = vrot.slane %v301, %v305
      %v308 = vmul.f32 %v269, %v306
      %v309 = vmul.f32 %v270, %v306
      %v310 = vmul.f32 %v271, %v306
      %v311 = vmul.f32 %v272, %v306
      %v312 = vmul.f32 %v273, %v306
      %v313 = vmul.f32 %v274, %v306
      %v314 = vmul.f32 %v275, %v306
      %v315 = vmul.f32 %v276, %v306
      %v316 = vmul.f32 %v277, %v306
      %v317 = vmul.f32 %v278, %v306
      %v318 = vmul.f32 %v279, %v306
      %v319 = vmul.f32 %v280, %v306
      %v320 = vmul.f32 %v281, %v306
      %v321 = vmul.f32 %v282, %v306
      %v322 = vmul.f32 %v283, %v306
      %v323 = vmul.f32 %v284, %v306
      %v324 = vmul.f32 %v285, %v306
      %v325 = vmul.f32 %v286, %v306
      %v326 = vmul.f32 %v287, %v306
      %v327 = vmul.f32 %v288, %v306
      %v328 = vmul.f32 %v289, %v306
      %v329 = vmul.f32 %v290, %v306
      %v330 = vmul.f32 %v291, %v306
      %v331 = vmul.f32 %v292, %v306
      %v332 = vmul.f32 %v293, %v306
      %v333 = vmul.f32 %v294, %v306
      %v334 = vmul.f32 %v295, %v306
      %v335 = vmul.f32 %v296, %v306
      %v336 = vmul.f32 %v297, %v306
      %v337 = vmul.f32 %v298, %v306
      %v338 = vmul.f32 %v299, %v306
      %v339 = vmul.f32 %v300, %v306
      %v340 = vld [vmem:[%s1] sm:$0x1]
      %v342 = vlaneseq
      %v343 = vshrl.u32 %v342, 7
      %v344 = vsub.s32 0, %v343
      %v345 = vrot.slane %v340, %v344
      %v347 = vadd.f32 %v308, %v345
      %v348 = vadd.f32 %v309, %v345
      %v349 = vadd.f32 %v310, %v345
      %v350 = vadd.f32 %v311, %v345
      %v351 = vadd.f32 %v312, %v345
      %v352 = vadd.f32 %v313, %v345
      %v353 = vadd.f32 %v314, %v345
      %v354 = vadd.f32 %v315, %v345
      %v355 = vadd.f32 %v316, %v345
      %v356 = vadd.f32 %v317, %v345
      %v357 = vadd.f32 %v318, %v345
      %v358 = vadd.f32 %v319, %v345
      %v359 = vadd.f32 %v320, %v345
      %v360 = vadd.f32 %v321, %v345
      %v361 = vadd.f32 %v322, %v345
      %v362 = vadd.f32 %v323, %v345
      %v363 = vadd.f32 %v324, %v345
      %v364 = vadd.f32 %v325, %v345
      %v365 = vadd.f32 %v326, %v345
      %v366 = vadd.f32 %v327, %v345
      %v367 = vadd.f32 %v328, %v345
      %v368 = vadd.f32 %v329, %v345
      %v369 = vadd.f32 %v330, %v345
      %v370 = vadd.f32 %v331, %v345
      %v371 = vadd.f32 %v332, %v345
      %v372 = vadd.f32 %v333, %v345
      %v373 = vadd.f32 %v334, %v345
      %v374 = vadd.f32 %v335, %v345
      %v375 = vadd.f32 %v336, %v345
      %v376 = vadd.f32 %v337, %v345
      %v377 = vadd.f32 %v338, %v345
      %v378 = vadd.f32 %v339, %v345
      %v379 = vmax.f32 %v347, 0.0
      %v380 = vmax.f32 %v348, 0.0
      %v381 = vmax.f32 %v349, 0.0
      %v382 = vmax.f32 %v350, 0.0
      %v383 = vmax.f32 %v351, 0.0
      %v384 = vmax.f32 %v352, 0.0
      %v385 = vmax.f32 %v353, 0.0
      %v386 = vmax.f32 %v354, 0.0
      %v387 = vmax.f32 %v355, 0.0
      %v388 = vmax.f32 %v356, 0.0
      %v389 = vmax.f32 %v357, 0.0
      %v390 = vmax.f32 %v358, 0.0
      %v391 = vmax.f32 %v359, 0.0
      %v392 = vmax.f32 %v360, 0.0
      %v393 = vmax.f32 %v361, 0.0
      %v394 = vmax.f32 %v362, 0.0
      %v395 = vmax.f32 %v363, 0.0
      %v396 = vmax.f32 %v364, 0.0
      %v397 = vmax.f32 %v365, 0.0
      %v398 = vmax.f32 %v366, 0.0
      %v399 = vmax.f32 %v367, 0.0
      %v400 = vmax.f32 %v368, 0.0
      %v401 = vmax.f32 %v369, 0.0
      %v402 = vmax.f32 %v370, 0.0
      %v403 = vmax.f32 %v371, 0.0
      %v404 = vmax.f32 %v372, 0.0
      %v405 = vmax.f32 %v373, 0.0
      %v406 = vmax.f32 %v374, 0.0
      %v407 = vmax.f32 %v375, 0.0
      %v408 = vmax.f32 %v376, 0.0
      %v409 = vmax.f32 %v377, 0.0
      %v410 = vmax.f32 %v378, 0.0
      %vm411 = vcmask 1040384
      %v412 = vsel %vm411, 0.0, 1.0
      %vm413 = vcmask 1046528
      %v414 = vsel %vm413, 1.0, 0.0
      %v415 = vrot.slane %v379, 7
      %v416 = vrot.slane %v381, 7
      %v417 = vrot.slane %v383, 7
      %v418 = vrot.slane %v385, 7
      %v419 = vrot.slane %v387, 7
      %v420 = vrot.slane %v389, 7
      %v421 = vrot.slane %v391, 7
      %v422 = vrot.slane %v393, 7
      %v423 = vrot.slane %v395, 7
      %v424 = vrot.slane %v397, 7
      %v425 = vrot.slane %v399, 7
      %v426 = vrot.slane %v401, 7
      %v427 = vrot.slane %v403, 7
      %v428 = vrot.slane %v405, 7
      %v429 = vrot.slane %v407, 7
      %v430 = vrot.slane %v409, 7
      %v431 = vrot.slane %v380, 7
      %v432 = vrot.slane %v382, 7
      %v433 = vrot.slane %v384, 7
      %v434 = vrot.slane %v386, 7
      %v435 = vrot.slane %v388, 7
      %v436 = vrot.slane %v390, 7
      %v437 = vrot.slane %v392, 7
      %v438 = vrot.slane %v394, 7
      %v439 = vrot.slane %v396, 7
      %v440 = vrot.slane %v398, 7
      %v441 = vrot.slane %v400, 7
      %v442 = vrot.slane %v402, 7
      %v443 = vrot.slane %v404, 7
      %v444 = vrot.slane %v406, 7
      %v445 = vrot.slane %v408, 7
      %v446 = vrot.slane %v410, 7
      %v447 = vlaneseq
      %v448 = vshrl.u32 %v447, 7
      %vm449 = vcmp.lt.s32.totalorder %v448, 1
      %v450 = vsel %vm449, %v415, %v431
      %v451 = vsel %vm449, %v416, %v432
      %v452 = vsel %vm449, %v417, %v433
      %v453 = vsel %vm449, %v418, %v434
      %v454 = vsel %vm449, %v419, %v435
      %v455 = vsel %vm449, %v420, %v436
      %v456 = vsel %vm449, %v421, %v437
      %v457 = vsel %vm449, %v422, %v438
      %v458 = vsel %vm449, %v423, %v439
      %v459 = vsel %vm449, %v424, %v440
      %v460 = vsel %vm449, %v425, %v441
      %v461 = vsel %vm449, %v426, %v442
      %v462 = vsel %vm449, %v427, %v443
      %v463 = vsel %vm449, %v428, %v444
      %v464 = vsel %vm449, %v429, %v445
      %v465 = vsel %vm449, %v430, %v446
      %v466 = vsel %vm449, %v431, %v415
      %v467 = vsel %vm449, %v432, %v416
      %v468 = vsel %vm449, %v433, %v417
      %v469 = vsel %vm449, %v434, %v418
      %v470 = vsel %vm449, %v435, %v419
      %v471 = vsel %vm449, %v436, %v420
      %v472 = vsel %vm449, %v437, %v421
      %v473 = vsel %vm449, %v438, %v422
      %v474 = vsel %vm449, %v439, %v423
      %v475 = vsel %vm449, %v440, %v424
      %v476 = vsel %vm449, %v441, %v425
      %v477 = vsel %vm449, %v442, %v426
      %v478 = vsel %vm449, %v443, %v427
      %v479 = vsel %vm449, %v444, %v428
      %v480 = vsel %vm449, %v445, %v429
      %v481 = vsel %vm449, %v446, %v430
      %483 = vset.pattern.permute.xlu0 0
      %484 = vperm.xlu0 %483, %v412
      %v485 = vpop.permute.xlu0 %484
      %488 = vset.pattern.permute.xlu0 0
      %489 = vperm.xlu0 %488, 1.0
      %v490 = vpop.permute.xlu0 %489
      %v492 = vmul.f32 %v466, %v485
      %v493 = vmul.f32 %v450, %v490
      %v494 = vmul.f32 %v467, %v485
      %v495 = vmul.f32 %v451, %v490
      %v496 = vmul.f32 %v468, %v485
      %v497 = vmul.f32 %v452, %v490
      %v498 = vmul.f32 %v469, %v485
      %v499 = vmul.f32 %v453, %v490
      %v500 = vmul.f32 %v470, %v485
      %v501 = vmul.f32 %v454, %v490
      %v502 = vmul.f32 %v471, %v485
      %v503 = vmul.f32 %v455, %v490
      %v504 = vmul.f32 %v472, %v485
      %v505 = vmul.f32 %v456, %v490
      %v506 = vmul.f32 %v473, %v485
      %v507 = vmul.f32 %v457, %v490
      %v508 = vmul.f32 %v474, %v485
      %v509 = vmul.f32 %v458, %v490
      %v510 = vmul.f32 %v475, %v485
      %v511 = vmul.f32 %v459, %v490
      %v512 = vmul.f32 %v476, %v485
      %v513 = vmul.f32 %v460, %v490
      %v514 = vmul.f32 %v477, %v485
      %v515 = vmul.f32 %v461, %v490
      %v516 = vmul.f32 %v478, %v485
      %v517 = vmul.f32 %v462, %v490
      %v518 = vmul.f32 %v479, %v485
      %v519 = vmul.f32 %v463, %v490
      %v520 = vmul.f32 %v480, %v485
      %v521 = vmul.f32 %v464, %v490
      %v522 = vmul.f32 %v481, %v485
      %v523 = vmul.f32 %v465, %v490
      %v524 = vpack.c.bf16 %v493, %v492
      %v525 = vpack.c.bf16 %v495, %v494
      %v526 = vpack.c.bf16 %v497, %v496
      %v527 = vpack.c.bf16 %v499, %v498
      %v528 = vpack.c.bf16 %v501, %v500
      %v529 = vpack.c.bf16 %v503, %v502
      %v530 = vpack.c.bf16 %v505, %v504
      %v531 = vpack.c.bf16 %v507, %v506
      %v532 = vpack.c.bf16 %v509, %v508
      %v533 = vpack.c.bf16 %v511, %v510
      %v534 = vpack.c.bf16 %v513, %v512
      %v535 = vpack.c.bf16 %v515, %v514
      %v536 = vpack.c.bf16 %v517, %v516
      %v537 = vpack.c.bf16 %v519, %v518
      %v538 = vpack.c.bf16 %v521, %v520
      %v539 = vpack.c.bf16 %v523, %v522
      %v540 = vrot.slane %v379, 1
      %v541 = vrot.slane %v381, 1
      %v542 = vrot.slane %v383, 1
      %v543 = vrot.slane %v385, 1
      %v544 = vrot.slane %v387, 1
      %v545 = vrot.slane %v389, 1
      %v546 = vrot.slane %v391, 1
      %v547 = vrot.slane %v393, 1
      %v548 = vrot.slane %v395, 1
      %v549 = vrot.slane %v397, 1
      %v550 = vrot.slane %v399, 1
      %v551 = vrot.slane %v401, 1
      %v552 = vrot.slane %v403, 1
      %v553 = vrot.slane %v405, 1
      %v554 = vrot.slane %v407, 1
      %v555 = vrot.slane %v409, 1
      %v556 = vrot.slane %v380, 1
      %v557 = vrot.slane %v382, 1
      %v558 = vrot.slane %v384, 1
      %v559 = vrot.slane %v386, 1
      %v560 = vrot.slane %v388, 1
      %v561 = vrot.slane %v390, 1
      %v562 = vrot.slane %v392, 1
      %v563 = vrot.slane %v394, 1
      %v564 = vrot.slane %v396, 1
      %v565 = vrot.slane %v398, 1
      %v566 = vrot.slane %v400, 1
      %v567 = vrot.slane %v402, 1
      %v568 = vrot.slane %v404, 1
      %v569 = vrot.slane %v406, 1
      %v570 = vrot.slane %v408, 1
      %v571 = vrot.slane %v410, 1
      %vm572 = vcmp.lt.s32.totalorder %v448, 7
      %v573 = vsel %vm572, %v540, %v556
      %v574 = vsel %vm572, %v541, %v557
      %v575 = vsel %vm572, %v542, %v558
      %v576 = vsel %vm572, %v543, %v559
      %v577 = vsel %vm572, %v544, %v560
      %v578 = vsel %vm572, %v545, %v561
      %v579 = vsel %vm572, %v546, %v562
      %v580 = vsel %vm572, %v547, %v563
      %v581 = vsel %vm572, %v548, %v564
      %v582 = vsel %vm572, %v549, %v565
      %v583 = vsel %vm572, %v550, %v566
      %v584 = vsel %vm572, %v551, %v567
      %v585 = vsel %vm572, %v552, %v568
      %v586 = vsel %vm572, %v553, %v569
      %v587 = vsel %vm572, %v554, %v570
      %v588 = vsel %vm572, %v555, %v571
      %v589 = vsel %vm572, %v556, %v540
      %v590 = vsel %vm572, %v557, %v541
      %v591 = vsel %vm572, %v558, %v542
      %v592 = vsel %vm572, %v559, %v543
      %v593 = vsel %vm572, %v560, %v544
      %v594 = vsel %vm572, %v561, %v545
      %v595 = vsel %vm572, %v562, %v546
      %v596 = vsel %vm572, %v563, %v547
      %v597 = vsel %vm572, %v564, %v548
      %v598 = vsel %vm572, %v565, %v549
      %v599 = vsel %vm572, %v566, %v550
      %v600 = vsel %vm572, %v567, %v551
      %v601 = vsel %vm572, %v568, %v552
      %v602 = vsel %vm572, %v569, %v553
      %v603 = vsel %vm572, %v570, %v554
      %v604 = vsel %vm572, %v571, %v555
      %606 = vset.pattern.permute.xlu0 0
      %607 = vperm.xlu0 %606, %v414
      %v608 = vpop.permute.xlu0 %607
      %v610 = vmul.f32 %v573, %v490
      %v611 = vmul.f32 %v589, %v608
      %v612 = vmul.f32 %v574, %v490
      %v613 = vmul.f32 %v590, %v608
      %v614 = vmul.f32 %v575, %v490
      %v615 = vmul.f32 %v591, %v608
      %v616 = vmul.f32 %v576, %v490
      %v617 = vmul.f32 %v592, %v608
      %v618 = vmul.f32 %v577, %v490
      %v619 = vmul.f32 %v593, %v608
      %v620 = vmul.f32 %v578, %v490
      %v621 = vmul.f32 %v594, %v608
      %v622 = vmul.f32 %v579, %v490
      %v623 = vmul.f32 %v595, %v608
      %v624 = vmul.f32 %v580, %v490
      %v625 = vmul.f32 %v596, %v608
      %v626 = vmul.f32 %v581, %v490
      %v627 = vmul.f32 %v597, %v608
      %v628 = vmul.f32 %v582, %v490
      %v629 = vmul.f32 %v598, %v608
      %v630 = vmul.f32 %v583, %v490
      %v631 = vmul.f32 %v599, %v608
      %v632 = vmul.f32 %v584, %v490
      %v633 = vmul.f32 %v600, %v608
      %v634 = vmul.f32 %v585, %v490
      %v635 = vmul.f32 %v601, %v608
      %v636 = vmul.f32 %v586, %v490
      %v637 = vmul.f32 %v602, %v608
      %v638 = vmul.f32 %v587, %v490
      %v639 = vmul.f32 %v603, %v608
      %v640 = vmul.f32 %v588, %v490
      %v641 = vmul.f32 %v604, %v608
      %v642 = vpack.c.bf16 %v611, %v610
      %v643 = vpack.c.bf16 %v613, %v612
      %v644 = vpack.c.bf16 %v615, %v614
      %v645 = vpack.c.bf16 %v617, %v616
      %v646 = vpack.c.bf16 %v619, %v618
      %v647 = vpack.c.bf16 %v621, %v620
      %v648 = vpack.c.bf16 %v623, %v622
      %v649 = vpack.c.bf16 %v625, %v624
      %v650 = vpack.c.bf16 %v627, %v626
      %v651 = vpack.c.bf16 %v629, %v628
      %v652 = vpack.c.bf16 %v631, %v630
      %v653 = vpack.c.bf16 %v633, %v632
      %v654 = vpack.c.bf16 %v635, %v634
      %v655 = vpack.c.bf16 %v637, %v636
      %v656 = vpack.c.bf16 %v639, %v638
      %v657 = vpack.c.bf16 %v641, %v640
      %v658 = vpack.c.bf16 %v380, %v379
      %v659 = vpack.c.bf16 %v382, %v381
      %v660 = vpack.c.bf16 %v384, %v383
      %v661 = vpack.c.bf16 %v386, %v385
      %v662 = vpack.c.bf16 %v388, %v387
      %v663 = vpack.c.bf16 %v390, %v389
      %v664 = vpack.c.bf16 %v392, %v391
      %v665 = vpack.c.bf16 %v394, %v393
      %v666 = vpack.c.bf16 %v396, %v395
      %v667 = vpack.c.bf16 %v398, %v397
      %v668 = vpack.c.bf16 %v400, %v399
      %v669 = vpack.c.bf16 %v402, %v401
      %v670 = vpack.c.bf16 %v404, %v403
      %v671 = vpack.c.bf16 %v406, %v405
      %v672 = vpack.c.bf16 %v408, %v407
      %v673 = vpack.c.bf16 %v410, %v409
      %v674 = vld [vmem:[%s3] sm:$0xf]
      %v675 = vld [vmem:[%s3 + $0x4] sm:$0xf]
      %v676 = vld [vmem:[%s3 + $0x8] sm:$0xf]
      %v677 = vld [vmem:[%s3 + $0xc] sm:$0xf]
      %v678 = vld [vmem:[%s3 + $0x10] sm:$0xf]
      %v679 = vld [vmem:[%s3 + $0x14] sm:$0xf]
      %v680 = vld [vmem:[%s3 + $0x18] sm:$0xf]
      %v681 = vld [vmem:[%s3 + $0x1c] sm:$0xf]
      %v682 = vld [vmem:[%s3 + $0x20] sm:$0xf]
      %v683 = vld [vmem:[%s3 + $0x24] sm:$0xf]
      %v684 = vld [vmem:[%s3 + $0x28] sm:$0xf]
      %v685 = vld [vmem:[%s3 + $0x2c] sm:$0xf]
      %v686 = vld [vmem:[%s3 + $0x30] sm:$0xf]
      %v687 = vld [vmem:[%s3 + $0x34] sm:$0xf]
      %v688 = vld [vmem:[%s3 + $0x38] sm:$0xf]
      %v689 = vld [vmem:[%s3 + $0x3c] sm:$0xf]
      %v690 = vld [vmem:[%s3 + $0x40] sm:$0xf]
      %v691 = vld [vmem:[%s3 + $0x44] sm:$0xf]
      %v692 = vld [vmem:[%s3 + $0x48] sm:$0xf]
      %v693 = vld [vmem:[%s3 + $0x4c] sm:$0xf]
      %v694 = vld [vmem:[%s3 + $0x50] sm:$0xf]
      %v695 = vld [vmem:[%s3 + $0x54] sm:$0xf]
      %v696 = vld [vmem:[%s3 + $0x58] sm:$0xf]
      %v697 = vld [vmem:[%s3 + $0x5c] sm:$0xf]
      %v698 = vld [vmem:[%s3 + $0x60] sm:$0xf]
      %v699 = vld [vmem:[%s3 + $0x64] sm:$0xf]
      %v700 = vld [vmem:[%s3 + $0x68] sm:$0xf]
      %v701 = vld [vmem:[%s3 + $0x6c] sm:$0xf]
      %v702 = vld [vmem:[%s3 + $0x70] sm:$0xf]
      %v703 = vld [vmem:[%s3 + $0x74] sm:$0xf]
      %v704 = vld [vmem:[%s3 + $0x78] sm:$0xf]
      %v705 = vld [vmem:[%s3 + $0x7c] sm:$0xf]
      %v706 = vld [vmem:[%s3 + $0x80] sm:$0xf]
      %v707 = vld [vmem:[%s3 + $0x84] sm:$0xf]
      %v708 = vld [vmem:[%s3 + $0x88] sm:$0xf]
      %v709 = vld [vmem:[%s3 + $0x8c] sm:$0xf]
      %v710 = vld [vmem:[%s3 + $0x90] sm:$0xf]
      %v711 = vld [vmem:[%s3 + $0x94] sm:$0xf]
      %v712 = vld [vmem:[%s3 + $0x98] sm:$0xf]
      %v713 = vld [vmem:[%s3 + $0x9c] sm:$0xf]
      %v714 = vld [vmem:[%s3 + $0xa0] sm:$0xf]
      %v715 = vld [vmem:[%s3 + $0xa4] sm:$0xf]
      %v716 = vld [vmem:[%s3 + $0xa8] sm:$0xf]
      %v717 = vld [vmem:[%s3 + $0xac] sm:$0xf]
      %v718 = vld [vmem:[%s3 + $0xb0] sm:$0xf]
      %v719 = vld [vmem:[%s3 + $0xb4] sm:$0xf]
      %v720 = vld [vmem:[%s3 + $0xb8] sm:$0xf]
      %v721 = vld [vmem:[%s3 + $0xbc] sm:$0xf]
      %s722 = scalar_lea.vmem %s3, 192
      %v723 = vld [vmem:[%s722] sm:$0xf]
      %v724 = vld [vmem:[%s722 + $0x4] sm:$0xf]
      %v725 = vld [vmem:[%s722 + $0x8] sm:$0xf]
      %v726 = vld [vmem:[%s722 + $0xc] sm:$0xf]
      %v727 = vld [vmem:[%s722 + $0x10] sm:$0xf]
      %v728 = vld [vmem:[%s722 + $0x14] sm:$0xf]
      %v729 = vld [vmem:[%s722 + $0x18] sm:$0xf]
      %v730 = vld [vmem:[%s722 + $0x1c] sm:$0xf]
      %v731 = vld [vmem:[%s722 + $0x20] sm:$0xf]
      %v732 = vld [vmem:[%s722 + $0x24] sm:$0xf]
      %v733 = vld [vmem:[%s722 + $0x28] sm:$0xf]
      %v734 = vld [vmem:[%s722 + $0x2c] sm:$0xf]
      %v735 = vld [vmem:[%s722 + $0x30] sm:$0xf]
      %v736 = vld [vmem:[%s722 + $0x34] sm:$0xf]
      %v737 = vld [vmem:[%s722 + $0x38] sm:$0xf]
      %v738 = vld [vmem:[%s722 + $0x3c] sm:$0xf]
      %v739 = vld [vmem:[%s722 + $0x40] sm:$0xf]
      %v740 = vld [vmem:[%s722 + $0x44] sm:$0xf]
      %v741 = vld [vmem:[%s722 + $0x48] sm:$0xf]
      %v742 = vld [vmem:[%s722 + $0x4c] sm:$0xf]
      %v743 = vld [vmem:[%s722 + $0x50] sm:$0xf]
      %v744 = vld [vmem:[%s722 + $0x54] sm:$0xf]
      %v745 = vld [vmem:[%s722 + $0x58] sm:$0xf]
      %v746 = vld [vmem:[%s722 + $0x5c] sm:$0xf]
      %v747 = vld [vmem:[%s722 + $0x60] sm:$0xf]
      %v748 = vld [vmem:[%s722 + $0x64] sm:$0xf]
      %v749 = vld [vmem:[%s722 + $0x68] sm:$0xf]
      %v750 = vld [vmem:[%s722 + $0x6c] sm:$0xf]
      %v751 = vld [vmem:[%s722 + $0x70] sm:$0xf]
      %v752 = vld [vmem:[%s722 + $0x74] sm:$0xf]
      %v753 = vld [vmem:[%s722 + $0x78] sm:$0xf]
      %v754 = vld [vmem:[%s722 + $0x7c] sm:$0xf]
      %v755 = vld [vmem:[%s722 + $0x80] sm:$0xf]
      %v756 = vld [vmem:[%s722 + $0x84] sm:$0xf]
      %v757 = vld [vmem:[%s722 + $0x88] sm:$0xf]
      %v758 = vld [vmem:[%s722 + $0x8c] sm:$0xf]
      %v759 = vld [vmem:[%s722 + $0x90] sm:$0xf]
      %v760 = vld [vmem:[%s722 + $0x94] sm:$0xf]
      %v761 = vld [vmem:[%s722 + $0x98] sm:$0xf]
      %v762 = vld [vmem:[%s722 + $0x9c] sm:$0xf]
      %v763 = vld [vmem:[%s722 + $0xa0] sm:$0xf]
      %v764 = vld [vmem:[%s722 + $0xa4] sm:$0xf]
      %v765 = vld [vmem:[%s722 + $0xa8] sm:$0xf]
      %v766 = vld [vmem:[%s722 + $0xac] sm:$0xf]
      %v767 = vld [vmem:[%s722 + $0xb0] sm:$0xf]
      %v768 = vld [vmem:[%s722 + $0xb4] sm:$0xf]
      %v769 = vld [vmem:[%s722 + $0xb8] sm:$0xf]
      %v770 = vld [vmem:[%s722 + $0xbc] sm:$0xf]
      %v819 = vunpack.c.l.b16 %v723
      %v820 = vunpack.c.l.b16 %v724
      %v821 = vunpack.c.l.b16 %v725
      %v822 = vunpack.c.l.b16 %v726
      %v823 = vunpack.c.l.b16 %v727
      %v824 = vunpack.c.l.b16 %v728
      %v825 = vunpack.c.l.b16 %v729
      %v826 = vunpack.c.l.b16 %v730
      %v827 = vunpack.c.l.b16 %v731
      %v828 = vunpack.c.l.b16 %v732
      %v829 = vunpack.c.l.b16 %v733
      %v830 = vunpack.c.l.b16 %v734
      %v831 = vunpack.c.l.b16 %v735
      %v832 = vunpack.c.l.b16 %v736
      %v833 = vunpack.c.l.b16 %v737
      %v834 = vunpack.c.l.b16 %v738
      %v835 = vunpack.c.l.b16 %v739
      %v836 = vunpack.c.l.b16 %v740
      %v837 = vunpack.c.l.b16 %v741
      %v838 = vunpack.c.l.b16 %v742
      %v839 = vunpack.c.l.b16 %v743
      %v840 = vunpack.c.l.b16 %v744
      %v841 = vunpack.c.l.b16 %v745
      %v842 = vunpack.c.l.b16 %v746
      %v843 = vunpack.c.l.b16 %v747
      %v844 = vunpack.c.l.b16 %v748
      %v845 = vunpack.c.l.b16 %v749
      %v846 = vunpack.c.l.b16 %v750
      %v847 = vunpack.c.l.b16 %v751
      %v848 = vunpack.c.l.b16 %v752
      %v849 = vunpack.c.l.b16 %v753
      %v850 = vunpack.c.l.b16 %v754
      %v851 = vunpack.c.l.b16 %v755
      %v852 = vunpack.c.l.b16 %v756
      %v853 = vunpack.c.l.b16 %v757
      %v854 = vunpack.c.l.b16 %v758
      %v855 = vunpack.c.l.b16 %v759
      %v856 = vunpack.c.l.b16 %v760
      %v857 = vunpack.c.l.b16 %v761
      %v858 = vunpack.c.l.b16 %v762
      %v859 = vunpack.c.l.b16 %v763
      %v860 = vunpack.c.l.b16 %v764
      %v861 = vunpack.c.l.b16 %v765
      %v862 = vunpack.c.l.b16 %v766
      %v863 = vunpack.c.l.b16 %v767
      %v864 = vunpack.c.l.b16 %v768
      %v865 = vunpack.c.l.b16 %v769
      %v866 = vunpack.c.l.b16 %v770
      %v867 = vpack.c.b16 %v820, %v819
      %v868 = vpack.c.b16 %v822, %v821
      %v869 = vpack.c.b16 %v824, %v823
      %v870 = vpack.c.b16 %v826, %v825
      %v871 = vpack.c.b16 %v828, %v827
      %v872 = vpack.c.b16 %v830, %v829
      %v873 = vpack.c.b16 %v832, %v831
      %v874 = vpack.c.b16 %v834, %v833
      %v875 = vpack.c.b16 %v836, %v835
      %v876 = vpack.c.b16 %v838, %v837
      %v877 = vpack.c.b16 %v840, %v839
      %v878 = vpack.c.b16 %v842, %v841
      %v879 = vpack.c.b16 %v844, %v843
      %v880 = vpack.c.b16 %v846, %v845
      %v881 = vpack.c.b16 %v848, %v847
      %v882 = vpack.c.b16 %v850, %v849
      %v883 = vpack.c.b16 %v852, %v851
      %v884 = vpack.c.b16 %v854, %v853
      %v885 = vpack.c.b16 %v856, %v855
      %v886 = vpack.c.b16 %v858, %v857
      %v887 = vpack.c.b16 %v860, %v859
      %v888 = vpack.c.b16 %v862, %v861
      %v889 = vpack.c.b16 %v864, %v863
      %v890 = vpack.c.b16 %v866, %v865
      %915 = vmatprep.subr.bf16.mxu0 0
      %916 = vmatpush1.bf16.msra.mxu0 %v874
      %917 = vmatprep.subr.bf16.mxu0 0
      %918 = vmatpush1.bf16.msra.mxu0 %v873
      %919 = vmatprep.subr.bf16.mxu0 0
      %920 = vmatpush1.bf16.msra.mxu0 %v872
      %921 = vmatprep.subr.bf16.mxu0 0
      %922 = vmatpush1.bf16.msra.mxu0 %v871
      %923 = vmatprep.subr.bf16.mxu0 0
      %924 = vmatpush1.bf16.msra.mxu0 %v870
      %925 = vmatprep.subr.bf16.mxu0 0
      %926 = vmatpush1.bf16.msra.mxu0 %v869
      %927 = vmatprep.subr.bf16.mxu0 0
      %928 = vmatpush1.bf16.msra.mxu0 %v868
      %929 = vmatprep.subr.bf16.mxu0 0
      %930 = vmatpush1.bf16.msra.mxu0 %v867
      %931 = vmatprep.subr.bf16.mxu0 0
      %932 = vmatpush2.bf16.msra.mxu0 %v882
      %933 = vmatprep.subr.bf16.mxu0 0
      %934 = vmatpush2.bf16.msra.mxu0 %v881
      %935 = vmatprep.subr.bf16.mxu0 0
      %936 = vmatpush2.bf16.msra.mxu0 %v880
      %937 = vmatprep.subr.bf16.mxu0 0
      %938 = vmatpush2.bf16.msra.mxu0 %v879
      %939 = vmatprep.subr.bf16.mxu0 0
      %940 = vmatpush2.bf16.msra.mxu0 %v878
      %941 = vmatprep.subr.bf16.mxu0 0
      %942 = vmatpush2.bf16.msra.mxu0 %v877
      %943 = vmatprep.subr.bf16.mxu0 0
      %944 = vmatpush2.bf16.msra.mxu0 %v876
      %945 = vmatprep.subr.bf16.mxu0 0
      %946 = vmatpush2.bf16.msra.mxu0 %v875
      %947 = vmatprep.mubr.bf16.mxu0 %v658
      %948 = vmatmul.mubr.bf16.gmra.mxu0 %v524
      %v949 = vpop.f32.mrf.mxu0
      %v950 = vadd.f32 0.0, %v949
      %v951 = vpop.f32.mrf.mxu0
      %v952 = vpop.f32.mrf.mxu0
      %v953 = vadd.f32 0.0, %v952
      %v954 = vpop.f32.mrf.mxu0
      %955 = vmatprep.mubr.bf16.mxu0 %v659
      %956 = vmatmul.mubr.bf16.gmra.mxu0 %v525
      %v957 = vpop.f32.mrf.mxu0
      %v958 = vadd.f32 0.0, %v957
      %v959 = vpop.f32.mrf.mxu0
      %v960 = vpop.f32.mrf.mxu0
      %v961 = vadd.f32 0.0, %v960
      %v962 = vpop.f32.mrf.mxu0
      %963 = vmatprep.mubr.bf16.mxu0 %v660
      %964 = vmatmul.mubr.bf16.gmra.mxu0 %v526
      %v965 = vpop.f32.mrf.mxu0
      %v966 = vadd.f32 0.0, %v965
      %v967 = vpop.f32.mrf.mxu0
      %v968 = vpop.f32.mrf.mxu0
      %v969 = vadd.f32 0.0, %v968
      %v970 = vpop.f32.mrf.mxu0
      %971 = vmatprep.mubr.bf16.mxu0 %v661
      %972 = vmatmul.mubr.bf16.gmra.mxu0 %v527
      %v973 = vpop.f32.mrf.mxu0
      %v974 = vadd.f32 0.0, %v973
      %v975 = vpop.f32.mrf.mxu0
      %v976 = vpop.f32.mrf.mxu0
      %v977 = vadd.f32 0.0, %v976
      %v978 = vpop.f32.mrf.mxu0
      %979 = vmatprep.mubr.bf16.mxu0 %v662
      %980 = vmatmul.mubr.bf16.gmra.mxu0 %v528
      %v981 = vpop.f32.mrf.mxu0
      %v982 = vadd.f32 0.0, %v981
      %v983 = vpop.f32.mrf.mxu0
      %v984 = vpop.f32.mrf.mxu0
      %v985 = vadd.f32 0.0, %v984
      %v986 = vpop.f32.mrf.mxu0
      %987 = vmatprep.mubr.bf16.mxu0 %v663
      %988 = vmatmul.mubr.bf16.gmra.mxu0 %v529
      %v989 = vpop.f32.mrf.mxu0
      %v990 = vadd.f32 0.0, %v989
      %v991 = vpop.f32.mrf.mxu0
      %v992 = vpop.f32.mrf.mxu0
      %v993 = vadd.f32 0.0, %v992
      %v994 = vpop.f32.mrf.mxu0
      %995 = vmatprep.mubr.bf16.mxu0 %v664
      %996 = vmatmul.mubr.bf16.gmra.mxu0 %v530
      %v997 = vpop.f32.mrf.mxu0
      %v998 = vadd.f32 0.0, %v997
      %v999 = vpop.f32.mrf.mxu0
      %v1000 = vpop.f32.mrf.mxu0
      %v1001 = vadd.f32 0.0, %v1000
      %v1002 = vpop.f32.mrf.mxu0
      %1003 = vmatprep.mubr.bf16.mxu0 %v665
      %1004 = vmatmul.mubr.bf16.gmra.mxu0 %v531
      %v1005 = vpop.f32.mrf.mxu0
      %v1006 = vadd.f32 0.0, %v1005
      %v1007 = vpop.f32.mrf.mxu0
      %v1008 = vpop.f32.mrf.mxu0
      %v1009 = vadd.f32 0.0, %v1008
      %v1010 = vpop.f32.mrf.mxu0
      %1011 = vmatprep.mubr.bf16.mxu0 %v666
      %1012 = vmatmul.mubr.bf16.gmra.mxu0 %v532
      %v1013 = vpop.f32.mrf.mxu0
      %v1014 = vadd.f32 0.0, %v1013
      %v1015 = vpop.f32.mrf.mxu0
      %v1016 = vpop.f32.mrf.mxu0
      %v1017 = vadd.f32 0.0, %v1016
      %v1018 = vpop.f32.mrf.mxu0
      %1019 = vmatprep.mubr.bf16.mxu0 %v667
      %1020 = vmatmul.mubr.bf16.gmra.mxu0 %v533
      %v1021 = vpop.f32.mrf.mxu0
      %v1022 = vadd.f32 0.0, %v1021
      %v1023 = vpop.f32.mrf.mxu0
      %v1024 = vpop.f32.mrf.mxu0
      %v1025 = vadd.f32 0.0, %v1024
      %v1026 = vpop.f32.mrf.mxu0
      %1027 = vmatprep.mubr.bf16.mxu0 %v668
      %1028 = vmatmul.mubr.bf16.gmra.mxu0 %v534
      %v1029 = vpop.f32.mrf.mxu0
      %v1030 = vadd.f32 0.0, %v1029
      %v1031 = vpop.f32.mrf.mxu0
      %v1032 = vpop.f32.mrf.mxu0
      %v1033 = vadd.f32 0.0, %v1032
      %v1034 = vpop.f32.mrf.mxu0
      %1035 = vmatprep.mubr.bf16.mxu0 %v669
      %1036 = vmatmul.mubr.bf16.gmra.mxu0 %v535
      %v1037 = vpop.f32.mrf.mxu0
      %v1038 = vadd.f32 0.0, %v1037
      %v1039 = vpop.f32.mrf.mxu0
      %v1040 = vpop.f32.mrf.mxu0
      %v1041 = vadd.f32 0.0, %v1040
      %v1042 = vpop.f32.mrf.mxu0
      %1043 = vmatprep.mubr.bf16.mxu0 %v670
      %1044 = vmatmul.mubr.bf16.gmra.mxu0 %v536
      %v1045 = vpop.f32.mrf.mxu0
      %v1046 = vadd.f32 0.0, %v1045
      %v1047 = vpop.f32.mrf.mxu0
      %v1048 = vpop.f32.mrf.mxu0
      %v1049 = vadd.f32 0.0, %v1048
      %v1050 = vpop.f32.mrf.mxu0
      %1051 = vmatprep.mubr.bf16.mxu0 %v671
      %1052 = vmatmul.mubr.bf16.gmra.mxu0 %v537
      %v1053 = vpop.f32.mrf.mxu0
      %v1054 = vadd.f32 0.0, %v1053
      %v1055 = vpop.f32.mrf.mxu0
      %v1056 = vpop.f32.mrf.mxu0
      %v1057 = vadd.f32 0.0, %v1056
      %v1058 = vpop.f32.mrf.mxu0
      %1059 = vmatprep.mubr.bf16.mxu0 %v672
      %1060 = vmatmul.mubr.bf16.gmra.mxu0 %v538
      %v1061 = vpop.f32.mrf.mxu0
      %v1062 = vadd.f32 0.0, %v1061
      %v1063 = vpop.f32.mrf.mxu0
      %v1064 = vpop.f32.mrf.mxu0
      %v1065 = vadd.f32 0.0, %v1064
      %v1066 = vpop.f32.mrf.mxu0
      %1067 = vmatprep.mubr.bf16.mxu0 %v673
      %1068 = vmatmul.mubr.bf16.gmra.mxu0 %v539
      %v1069 = vpop.f32.mrf.mxu0
      %v1070 = vadd.f32 0.0, %v1069
      %v1071 = vpop.f32.mrf.mxu0
      %v1072 = vpop.f32.mrf.mxu0
      %v1073 = vadd.f32 0.0, %v1072
      %v1074 = vpop.f32.mrf.mxu0
      %1075 = vdwg.mxu0
      %1076 = vmatprep.subr.bf16.mxu0 0
      %1077 = vmatpush1.bf16.msra.mxu0 %v890
      %1078 = vmatprep.subr.bf16.mxu0 0
      %1079 = vmatpush1.bf16.msra.mxu0 %v889
      %1080 = vmatprep.subr.bf16.mxu0 0
      %1081 = vmatpush1.bf16.msra.mxu0 %v888
      %1082 = vmatprep.subr.bf16.mxu0 0
      %1083 = vmatpush1.bf16.msra.mxu0 %v887
      %1084 = vmatprep.subr.bf16.mxu0 0
      %1085 = vmatpush1.bf16.msra.mxu0 %v886
      %1086 = vmatprep.subr.bf16.mxu0 0
      %1087 = vmatpush1.bf16.msra.mxu0 %v885
      %1088 = vmatprep.subr.bf16.mxu0 0
      %1089 = vmatpush1.bf16.msra.mxu0 %v884
      %1090 = vmatprep.subr.bf16.mxu0 0
      %1091 = vmatpush1.bf16.msra.mxu0 %v883
      %1092 = vmatprep.subr.bf16.mxu0 0
      %1093 = vmatpush2.bf16.msra.mxu0 0
      %1094 = vmatprep.subr.bf16.mxu0 0
      %1095 = vmatpush2.bf16.msra.mxu0 0
      %1096 = vmatprep.subr.bf16.mxu0 0
      %1097 = vmatpush2.bf16.msra.mxu0 0
      %1098 = vmatprep.subr.bf16.mxu0 0
      %1099 = vmatpush2.bf16.msra.mxu0 0
      %1100 = vmatprep.subr.bf16.mxu0 0
      %1101 = vmatpush2.bf16.msra.mxu0 0
      %1102 = vmatprep.subr.bf16.mxu0 0
      %1103 = vmatpush2.bf16.msra.mxu0 0
      %1104 = vmatprep.subr.bf16.mxu0 0
      %1105 = vmatpush2.bf16.msra.mxu0 0
      %1106 = vmatprep.subr.bf16.mxu0 0
      %1107 = vmatpush2.bf16.msra.mxu0 0
      %1108 = vmatprep.mubr.bf16.mxu0 0
      %1109 = vmatmul.mubr.bf16.gmra.mxu0 %v642
      %v1110 = vpop.f32.mrf.mxu0
      %v1111 = vadd.f32 %v950, %v1110
      %v1112 = vpop.f32.mrf.mxu0
      %v1113 = vpop.f32.mrf.mxu0
      %v1114 = vadd.f32 %v953, %v1113
      %v1115 = vpop.f32.mrf.mxu0
      %1116 = vmatprep.mubr.bf16.mxu0 0
      %1117 = vmatmul.mubr.bf16.gmra.mxu0 %v643
      %v1118 = vpop.f32.mrf.mxu0
      %v1119 = vadd.f32 %v958, %v1118
      %v1120 = vpop.f32.mrf.mxu0
      %v1121 = vpop.f32.mrf.mxu0
      %v1122 = vadd.f32 %v961, %v1121
      %v1123 = vpop.f32.mrf.mxu0
      %1124 = vmatprep.mubr.bf16.mxu0 0
      %1125 = vmatmul.mubr.bf16.gmra.mxu0 %v644
      %v1126 = vpop.f32.mrf.mxu0
      %v1127 = vadd.f32 %v966, %v1126
      %v1128 = vpop.f32.mrf.mxu0
      %v1129 = vpop.f32.mrf.mxu0
      %v1130 = vadd.f32 %v969, %v1129
      %v1131 = vpop.f32.mrf.mxu0
      %1132 = vmatprep.mubr.bf16.mxu0 0
      %1133 = vmatmul.mubr.bf16.gmra.mxu0 %v645
      %v1134 = vpop.f32.mrf.mxu0
      %v1135 = vadd.f32 %v974, %v1134
      %v1136 = vpop.f32.mrf.mxu0
      %v1137 = vpop.f32.mrf.mxu0
      %v1138 = vadd.f32 %v977, %v1137
      %v1139 = vpop.f32.mrf.mxu0
      %1140 = vmatprep.mubr.bf16.mxu0 0
      %1141 = vmatmul.mubr.bf16.gmra.mxu0 %v646
      %v1142 = vpop.f32.mrf.mxu0
      %v1143 = vadd.f32 %v982, %v1142
      %v1144 = vpop.f32.mrf.mxu0
      %v1145 = vpop.f32.mrf.mxu0
      %v1146 = vadd.f32 %v985, %v1145
      %v1147 = vpop.f32.mrf.mxu0
      %1148 = vmatprep.mubr.bf16.mxu0 0
      %1149 = vmatmul.mubr.bf16.gmra.mxu0 %v647
      %v1150 = vpop.f32.mrf.mxu0
      %v1151 = vadd.f32 %v990, %v1150
      %v1152 = vpop.f32.mrf.mxu0
      %v1153 = vpop.f32.mrf.mxu0
      %v1154 = vadd.f32 %v993, %v1153
      %v1155 = vpop.f32.mrf.mxu0
      %1156 = vmatprep.mubr.bf16.mxu0 0
      %1157 = vmatmul.mubr.bf16.gmra.mxu0 %v648
      %v1158 = vpop.f32.mrf.mxu0
      %v1159 = vadd.f32 %v998, %v1158
      %v1160 = vpop.f32.mrf.mxu0
      %v1161 = vpop.f32.mrf.mxu0
      %v1162 = vadd.f32 %v1001, %v1161
      %v1163 = vpop.f32.mrf.mxu0
      %1164 = vmatprep.mubr.bf16.mxu0 0
      %1165 = vmatmul.mubr.bf16.gmra.mxu0 %v649
      %v1166 = vpop.f32.mrf.mxu0
      %v1167 = vadd.f32 %v1006, %v1166
      %v1168 = vpop.f32.mrf.mxu0
      %v1169 = vpop.f32.mrf.mxu0
      %v1170 = vadd.f32 %v1009, %v1169
      %v1171 = vpop.f32.mrf.mxu0
      %1172 = vmatprep.mubr.bf16.mxu0 0
      %1173 = vmatmul.mubr.bf16.gmra.mxu0 %v650
      %v1174 = vpop.f32.mrf.mxu0
      %v1175 = vadd.f32 %v1014, %v1174
      %v1176 = vpop.f32.mrf.mxu0
      %v1177 = vpop.f32.mrf.mxu0
      %v1178 = vadd.f32 %v1017, %v1177
      %v1179 = vpop.f32.mrf.mxu0
      %1180 = vmatprep.mubr.bf16.mxu0 0
      %1181 = vmatmul.mubr.bf16.gmra.mxu0 %v651
      %v1182 = vpop.f32.mrf.mxu0
      %v1183 = vadd.f32 %v1022, %v1182
      %v1184 = vpop.f32.mrf.mxu0
      %v1185 = vpop.f32.mrf.mxu0
      %v1186 = vadd.f32 %v1025, %v1185
      %v1187 = vpop.f32.mrf.mxu0
      %1188 = vmatprep.mubr.bf16.mxu0 0
      %1189 = vmatmul.mubr.bf16.gmra.mxu0 %v652
      %v1190 = vpop.f32.mrf.mxu0
      %v1191 = vadd.f32 %v1030, %v1190
      %v1192 = vpop.f32.mrf.mxu0
      %v1193 = vpop.f32.mrf.mxu0
      %v1194 = vadd.f32 %v1033, %v1193
      %v1195 = vpop.f32.mrf.mxu0
      %1196 = vmatprep.mubr.bf16.mxu0 0
      %1197 = vmatmul.mubr.bf16.gmra.mxu0 %v653
      %v1198 = vpop.f32.mrf.mxu0
      %v1199 = vadd.f32 %v1038, %v1198
      %v1200 = vpop.f32.mrf.mxu0
      %v1201 = vpop.f32.mrf.mxu0
      %v1202 = vadd.f32 %v1041, %v1201
      %v1203 = vpop.f32.mrf.mxu0
      %1204 = vmatprep.mubr.bf16.mxu0 0
      %1205 = vmatmul.mubr.bf16.gmra.mxu0 %v654
      %v1206 = vpop.f32.mrf.mxu0
      %v1207 = vadd.f32 %v1046, %v1206
      %v1208 = vpop.f32.mrf.mxu0
      %v1209 = vpop.f32.mrf.mxu0
      %v1210 = vadd.f32 %v1049, %v1209
      %v1211 = vpop.f32.mrf.mxu0
      %1212 = vmatprep.mubr.bf16.mxu0 0
      %1213 = vmatmul.mubr.bf16.gmra.mxu0 %v655
      %v1214 = vpop.f32.mrf.mxu0
      %v1215 = vadd.f32 %v1054, %v1214
      %v1216 = vpop.f32.mrf.mxu0
      %v1217 = vpop.f32.mrf.mxu0
      %v1218 = vadd.f32 %v1057, %v1217
      %v1219 = vpop.f32.mrf.mxu0
      %1220 = vmatprep.mubr.bf16.mxu0 0
      %1221 = vmatmul.mubr.bf16.gmra.mxu0 %v656
      %v1222 = vpop.f32.mrf.mxu0
      %v1223 = vadd.f32 %v1062, %v1222
      %v1224 = vpop.f32.mrf.mxu0
      %v1225 = vpop.f32.mrf.mxu0
      %v1226 = vadd.f32 %v1065, %v1225
      %v1227 = vpop.f32.mrf.mxu0
      %1228 = vmatprep.mubr.bf16.mxu0 0
      %1229 = vmatmul.mubr.bf16.gmra.mxu0 %v657
      %v1230 = vpop.f32.mrf.mxu0
      %v1231 = vadd.f32 %v1070, %v1230
      %v1232 = vpop.f32.mrf.mxu0
      %v1233 = vpop.f32.mrf.mxu0
      %v1234 = vadd.f32 %v1073, %v1233
      %v1235 = vpop.f32.mrf.mxu0
      %1236 = vdwg.mxu0
      %v1285 = vunpack.c.l.b16 %v674
      %v1286 = vunpack.c.l.b16 %v675
      %v1287 = vunpack.c.l.b16 %v676
      %v1288 = vunpack.c.l.b16 %v677
      %v1289 = vunpack.c.l.b16 %v678
      %v1290 = vunpack.c.l.b16 %v679
      %v1291 = vunpack.c.l.b16 %v680
      %v1292 = vunpack.c.l.b16 %v681
      %v1293 = vunpack.c.l.b16 %v682
      %v1294 = vunpack.c.l.b16 %v683
      %v1295 = vunpack.c.l.b16 %v684
      %v1296 = vunpack.c.l.b16 %v685
      %v1297 = vunpack.c.l.b16 %v686
      %v1298 = vunpack.c.l.b16 %v687
      %v1299 = vunpack.c.l.b16 %v688
      %v1300 = vunpack.c.l.b16 %v689
      %v1301 = vunpack.c.l.b16 %v690
      %v1302 = vunpack.c.l.b16 %v691
      %v1303 = vunpack.c.l.b16 %v692
      %v1304 = vunpack.c.l.b16 %v693
      %v1305 = vunpack.c.l.b16 %v694
      %v1306 = vunpack.c.l.b16 %v695
      %v1307 = vunpack.c.l.b16 %v696
      %v1308 = vunpack.c.l.b16 %v697
      %v1309 = vunpack.c.l.b16 %v698
      %v1310 = vunpack.c.l.b16 %v699
      %v1311 = vunpack.c.l.b16 %v700
      %v1312 = vunpack.c.l.b16 %v701
      %v1313 = vunpack.c.l.b16 %v702
      %v1314 = vunpack.c.l.b16 %v703
      %v1315 = vunpack.c.l.b16 %v704
      %v1316 = vunpack.c.l.b16 %v705
      %v1317 = vunpack.c.l.b16 %v706
      %v1318 = vunpack.c.l.b16 %v707
      %v1319 = vunpack.c.l.b16 %v708
      %v1320 = vunpack.c.l.b16 %v709
      %v1321 = vunpack.c.l.b16 %v710
      %v1322 = vunpack.c.l.b16 %v711
      %v1323 = vunpack.c.l.b16 %v712
      %v1324 = vunpack.c.l.b16 %v713
      %v1325 = vunpack.c.l.b16 %v714
      %v1326 = vunpack.c.l.b16 %v715
      %v1327 = vunpack.c.l.b16 %v716
      %v1328 = vunpack.c.l.b16 %v717
      %v1329 = vunpack.c.l.b16 %v718
      %v1330 = vunpack.c.l.b16 %v719
      %v1331 = vunpack.c.l.b16 %v720
      %v1332 = vunpack.c.l.b16 %v721
      %v1333 = vpack.c.b16 %v1286, %v1285
      %v1334 = vpack.c.b16 %v1288, %v1287
      %v1335 = vpack.c.b16 %v1290, %v1289
      %v1336 = vpack.c.b16 %v1292, %v1291
      %v1337 = vpack.c.b16 %v1294, %v1293
      %v1338 = vpack.c.b16 %v1296, %v1295
      %v1339 = vpack.c.b16 %v1298, %v1297
      %v1340 = vpack.c.b16 %v1300, %v1299
      %v1341 = vpack.c.b16 %v1302, %v1301
      %v1342 = vpack.c.b16 %v1304, %v1303
      %v1343 = vpack.c.b16 %v1306, %v1305
      %v1344 = vpack.c.b16 %v1308, %v1307
      %v1345 = vpack.c.b16 %v1310, %v1309
      %v1346 = vpack.c.b16 %v1312, %v1311
      %v1347 = vpack.c.b16 %v1314, %v1313
      %v1348 = vpack.c.b16 %v1316, %v1315
      %v1349 = vpack.c.b16 %v1318, %v1317
      %v1350 = vpack.c.b16 %v1320, %v1319
      %v1351 = vpack.c.b16 %v1322, %v1321
      %v1352 = vpack.c.b16 %v1324, %v1323
      %v1353 = vpack.c.b16 %v1326, %v1325
      %v1354 = vpack.c.b16 %v1328, %v1327
      %v1355 = vpack.c.b16 %v1330, %v1329
      %v1356 = vpack.c.b16 %v1332, %v1331
      %1381 = vmatprep.subr.bf16.mxu0 0
      %1382 = vmatpush1.bf16.msra.mxu0 %v1340
      %1383 = vmatprep.subr.bf16.mxu0 0
      %1384 = vmatpush1.bf16.msra.mxu0 %v1339
      %1385 = vmatprep.subr.bf16.mxu0 0
      %1386 = vmatpush1.bf16.msra.mxu0 %v1338
      %1387 = vmatprep.subr.bf16.mxu0 0
      %1388 = vmatpush1.bf16.msra.mxu0 %v1337
      %1389 = vmatprep.subr.bf16.mxu0 0
      %1390 = vmatpush1.bf16.msra.mxu0 %v1336
      %1391 = vmatprep.subr.bf16.mxu0 0
      %1392 = vmatpush1.bf16.msra.mxu0 %v1335
      %1393 = vmatprep.subr.bf16.mxu0 0
      %1394 = vmatpush1.bf16.msra.mxu0 %v1334
      %1395 = vmatprep.subr.bf16.mxu0 0
      %1396 = vmatpush1.bf16.msra.mxu0 %v1333
      %1397 = vmatprep.subr.bf16.mxu0 0
      %1398 = vmatpush2.bf16.msra.mxu0 %v1348
      %1399 = vmatprep.subr.bf16.mxu0 0
      %1400 = vmatpush2.bf16.msra.mxu0 %v1347
      %1401 = vmatprep.subr.bf16.mxu0 0
      %1402 = vmatpush2.bf16.msra.mxu0 %v1346
      %1403 = vmatprep.subr.bf16.mxu0 0
      %1404 = vmatpush2.bf16.msra.mxu0 %v1345
      %1405 = vmatprep.subr.bf16.mxu0 0
      %1406 = vmatpush2.bf16.msra.mxu0 %v1344
      %1407 = vmatprep.subr.bf16.mxu0 0
      %1408 = vmatpush2.bf16.msra.mxu0 %v1343
      %1409 = vmatprep.subr.bf16.mxu0 0
      %1410 = vmatpush2.bf16.msra.mxu0 %v1342
      %1411 = vmatprep.subr.bf16.mxu0 0
      %1412 = vmatpush2.bf16.msra.mxu0 %v1341
      %1413 = vmatprep.mubr.bf16.mxu0 0
      %1414 = vmatmul.mubr.bf16.gmra.mxu0 0
      %v1415 = vpop.f32.mrf.mxu0
      %v1416 = vadd.f32 %v1111, %v1415
      %v1417 = vpop.f32.mrf.mxu0
      %v1418 = vpop.f32.mrf.mxu0
      %v1419 = vadd.f32 %v1114, %v1418
      %v1420 = vpop.f32.mrf.mxu0
      %1421 = vmatprep.mubr.bf16.mxu0 %v658
      %1422 = vmatmul.mubr.bf16.gmra.mxu0 %v524
      %v1423 = vpop.f32.mrf.mxu0
      %v1424 = vadd.f32 %v1119, %v1423
      %v1425 = vpop.f32.mrf.mxu0
      %v1426 = vpop.f32.mrf.mxu0
      %v1427 = vadd.f32 %v1122, %v1426
      %v1428 = vpop.f32.mrf.mxu0
      %1429 = vmatprep.mubr.bf16.mxu0 %v659
      %1430 = vmatmul.mubr.bf16.gmra.mxu0 %v525
      %v1431 = vpop.f32.mrf.mxu0
      %v1432 = vadd.f32 %v1127, %v1431
      %v1433 = vpop.f32.mrf.mxu0
      %v1434 = vpop.f32.mrf.mxu0
      %v1435 = vadd.f32 %v1130, %v1434
      %v1436 = vpop.f32.mrf.mxu0
      %1437 = vmatprep.mubr.bf16.mxu0 %v660
      %1438 = vmatmul.mubr.bf16.gmra.mxu0 %v526
      %v1439 = vpop.f32.mrf.mxu0
      %v1440 = vadd.f32 %v1135, %v1439
      %v1441 = vpop.f32.mrf.mxu0
      %v1442 = vpop.f32.mrf.mxu0
      %v1443 = vadd.f32 %v1138, %v1442
      %v1444 = vpop.f32.mrf.mxu0
      %1445 = vmatprep.mubr.bf16.mxu0 %v661
      %1446 = vmatmul.mubr.bf16.gmra.mxu0 %v527
      %v1447 = vpop.f32.mrf.mxu0
      %v1448 = vadd.f32 %v1143, %v1447
      %v1449 = vpop.f32.mrf.mxu0
      %v1450 = vpop.f32.mrf.mxu0
      %v1451 = vadd.f32 %v1146, %v1450
      %v1452 = vpop.f32.mrf.mxu0
      %1453 = vmatprep.mubr.bf16.mxu0 %v662
      %1454 = vmatmul.mubr.bf16.gmra.mxu0 %v528
      %v1455 = vpop.f32.mrf.mxu0
      %v1456 = vadd.f32 %v1151, %v1455
      %v1457 = vpop.f32.mrf.mxu0
      %v1458 = vpop.f32.mrf.mxu0
      %v1459 = vadd.f32 %v1154, %v1458
      %v1460 = vpop.f32.mrf.mxu0
      %1461 = vmatprep.mubr.bf16.mxu0 %v663
      %1462 = vmatmul.mubr.bf16.gmra.mxu0 %v529
      %v1463 = vpop.f32.mrf.mxu0
      %v1464 = vadd.f32 %v1159, %v1463
      %v1465 = vpop.f32.mrf.mxu0
      %v1466 = vpop.f32.mrf.mxu0
      %v1467 = vadd.f32 %v1162, %v1466
      %v1468 = vpop.f32.mrf.mxu0
      %1469 = vmatprep.mubr.bf16.mxu0 %v664
      %1470 = vmatmul.mubr.bf16.gmra.mxu0 %v530
      %v1471 = vpop.f32.mrf.mxu0
      %v1472 = vadd.f32 %v1167, %v1471
      %v1473 = vpop.f32.mrf.mxu0
      %v1474 = vpop.f32.mrf.mxu0
      %v1475 = vadd.f32 %v1170, %v1474
      %v1476 = vpop.f32.mrf.mxu0
      %1477 = vmatprep.mubr.bf16.mxu0 %v665
      %1478 = vmatmul.mubr.bf16.gmra.mxu0 %v531
      %v1479 = vpop.f32.mrf.mxu0
      %v1480 = vadd.f32 %v1175, %v1479
      %v1481 = vpop.f32.mrf.mxu0
      %v1482 = vpop.f32.mrf.mxu0
      %v1483 = vadd.f32 %v1178, %v1482
      %v1484 = vpop.f32.mrf.mxu0
      %1485 = vmatprep.mubr.bf16.mxu0 %v666
      %1486 = vmatmul.mubr.bf16.gmra.mxu0 %v532
      %v1487 = vpop.f32.mrf.mxu0
      %v1488 = vadd.f32 %v1183, %v1487
      %v1489 = vpop.f32.mrf.mxu0
      %v1490 = vpop.f32.mrf.mxu0
      %v1491 = vadd.f32 %v1186, %v1490
      %v1492 = vpop.f32.mrf.mxu0
      %1493 = vmatprep.mubr.bf16.mxu0 %v667
      %1494 = vmatmul.mubr.bf16.gmra.mxu0 %v533
      %v1495 = vpop.f32.mrf.mxu0
      %v1496 = vadd.f32 %v1191, %v1495
      %v1497 = vpop.f32.mrf.mxu0
      %v1498 = vpop.f32.mrf.mxu0
      %v1499 = vadd.f32 %v1194, %v1498
      %v1500 = vpop.f32.mrf.mxu0
      %1501 = vmatprep.mubr.bf16.mxu0 %v668
      %1502 = vmatmul.mubr.bf16.gmra.mxu0 %v534
      %v1503 = vpop.f32.mrf.mxu0
      %v1504 = vadd.f32 %v1199, %v1503
      %v1505 = vpop.f32.mrf.mxu0
      %v1506 = vpop.f32.mrf.mxu0
      %v1507 = vadd.f32 %v1202, %v1506
      %v1508 = vpop.f32.mrf.mxu0
      %1509 = vmatprep.mubr.bf16.mxu0 %v669
      %1510 = vmatmul.mubr.bf16.gmra.mxu0 %v535
      %v1511 = vpop.f32.mrf.mxu0
      %v1512 = vadd.f32 %v1207, %v1511
      %v1513 = vpop.f32.mrf.mxu0
      %v1514 = vpop.f32.mrf.mxu0
      %v1515 = vadd.f32 %v1210, %v1514
      %v1516 = vpop.f32.mrf.mxu0
      %1517 = vmatprep.mubr.bf16.mxu0 %v670
      %1518 = vmatmul.mubr.bf16.gmra.mxu0 %v536
      %v1519 = vpop.f32.mrf.mxu0
      %v1520 = vadd.f32 %v1215, %v1519
      %v1521 = vpop.f32.mrf.mxu0
      %v1522 = vpop.f32.mrf.mxu0
      %v1523 = vadd.f32 %v1218, %v1522
      %v1524 = vpop.f32.mrf.mxu0
      %1525 = vmatprep.mubr.bf16.mxu0 %v671
      %1526 = vmatmul.mubr.bf16.gmra.mxu0 %v537
      %v1527 = vpop.f32.mrf.mxu0
      %v1528 = vadd.f32 %v1223, %v1527
      %v1529 = vpop.f32.mrf.mxu0
      %v1530 = vpop.f32.mrf.mxu0
      %v1531 = vadd.f32 %v1226, %v1530
      %v1532 = vpop.f32.mrf.mxu0
      %1533 = vmatprep.mubr.bf16.mxu0 %v672
      %1534 = vmatmul.mubr.bf16.gmra.mxu0 %v538
      %v1535 = vpop.f32.mrf.mxu0
      %v1536 = vadd.f32 %v1231, %v1535
      %v1537 = vpop.f32.mrf.mxu0
      %v1538 = vpop.f32.mrf.mxu0
      %v1539 = vadd.f32 %v1234, %v1538
      %v1540 = vpop.f32.mrf.mxu0
      %1541 = vdwg.mxu0
      %1542 = vmatprep.subr.bf16.mxu0 0
      %1543 = vmatpush1.bf16.msra.mxu0 %v1356
      %1544 = vmatprep.subr.bf16.mxu0 0
      %1545 = vmatpush1.bf16.msra.mxu0 %v1355
      %1546 = vmatprep.subr.bf16.mxu0 0
      %1547 = vmatpush1.bf16.msra.mxu0 %v1354
      %1548 = vmatprep.subr.bf16.mxu0 0
      %1549 = vmatpush1.bf16.msra.mxu0 %v1353
      %1550 = vmatprep.subr.bf16.mxu0 0
      %1551 = vmatpush1.bf16.msra.mxu0 %v1352
      %1552 = vmatprep.subr.bf16.mxu0 0
      %1553 = vmatpush1.bf16.msra.mxu0 %v1351
      %1554 = vmatprep.subr.bf16.mxu0 0
      %1555 = vmatpush1.bf16.msra.mxu0 %v1350
      %1556 = vmatprep.subr.bf16.mxu0 0
      %1557 = vmatpush1.bf16.msra.mxu0 %v1349
      %1558 = vmatprep.subr.bf16.mxu0 0
      %1559 = vmatpush2.bf16.msra.mxu0 0
      %1560 = vmatprep.subr.bf16.mxu0 0
      %1561 = vmatpush2.bf16.msra.mxu0 0
      %1562 = vmatprep.subr.bf16.mxu0 0
      %1563 = vmatpush2.bf16.msra.mxu0 0
      %1564 = vmatprep.subr.bf16.mxu0 0
      %1565 = vmatpush2.bf16.msra.mxu0 0
      %1566 = vmatprep.subr.bf16.mxu0 0
      %1567 = vmatpush2.bf16.msra.mxu0 0
      %1568 = vmatprep.subr.bf16.mxu0 0
      %1569 = vmatpush2.bf16.msra.mxu0 0
      %1570 = vmatprep.subr.bf16.mxu0 0
      %1571 = vmatpush2.bf16.msra.mxu0 0
      %1572 = vmatprep.subr.bf16.mxu0 0
      %1573 = vmatpush2.bf16.msra.mxu0 0
      %1574 = vmatprep.mubr.bf16.mxu0 0
      %1575 = vmatmul.mubr.bf16.gmra.mxu0 0
      %v1576 = vpop.f32.mrf.mxu0
      %v1577 = vadd.f32 %v1416, %v1576
      %v1578 = vpop.f32.mrf.mxu0
      %v1579 = vpop.f32.mrf.mxu0
      %v1580 = vadd.f32 %v1419, %v1579
      %v1581 = vpop.f32.mrf.mxu0
      %1582 = vmatprep.mubr.bf16.mxu0 0
      %1583 = vmatmul.mubr.bf16.gmra.mxu0 %v642
      %v1584 = vpop.f32.mrf.mxu0
      %v1585 = vadd.f32 %v1424, %v1584
      %v1586 = vpop.f32.mrf.mxu0
      %v1587 = vpop.f32.mrf.mxu0
      %v1588 = vadd.f32 %v1427, %v1587
      %v1589 = vpop.f32.mrf.mxu0
      %1590 = vmatprep.mubr.bf16.mxu0 0
      %1591 = vmatmul.mubr.bf16.gmra.mxu0 %v643
      %v1592 = vpop.f32.mrf.mxu0
      %v1593 = vadd.f32 %v1432, %v1592
      %v1594 = vpop.f32.mrf.mxu0
      %v1595 = vpop.f32.mrf.mxu0
      %v1596 = vadd.f32 %v1435, %v1595
      %v1597 = vpop.f32.mrf.mxu0
      %1598 = vmatprep.mubr.bf16.mxu0 0
      %1599 = vmatmul.mubr.bf16.gmra.mxu0 %v644
      %v1600 = vpop.f32.mrf.mxu0
      %v1601 = vadd.f32 %v1440, %v1600
      %v1602 = vpop.f32.mrf.mxu0
      %v1603 = vpop.f32.mrf.mxu0
      %v1604 = vadd.f32 %v1443, %v1603
      %v1605 = vpop.f32.mrf.mxu0
      %1606 = vmatprep.mubr.bf16.mxu0 0
      %1607 = vmatmul.mubr.bf16.gmra.mxu0 %v645
      %v1608 = vpop.f32.mrf.mxu0
      %v1609 = vadd.f32 %v1448, %v1608
      %v1610 = vpop.f32.mrf.mxu0
      %v1611 = vpop.f32.mrf.mxu0
      %v1612 = vadd.f32 %v1451, %v1611
      %v1613 = vpop.f32.mrf.mxu0
      %1614 = vmatprep.mubr.bf16.mxu0 0
      %1615 = vmatmul.mubr.bf16.gmra.mxu0 %v646
      %v1616 = vpop.f32.mrf.mxu0
      %v1617 = vadd.f32 %v1456, %v1616
      %v1618 = vpop.f32.mrf.mxu0
      %v1619 = vpop.f32.mrf.mxu0
      %v1620 = vadd.f32 %v1459, %v1619
      %v1621 = vpop.f32.mrf.mxu0
      %1622 = vmatprep.mubr.bf16.mxu0 0
      %1623 = vmatmul.mubr.bf16.gmra.mxu0 %v647
      %v1624 = vpop.f32.mrf.mxu0
      %v1625 = vadd.f32 %v1464, %v1624
      %v1626 = vpop.f32.mrf.mxu0
      %v1627 = vpop.f32.mrf.mxu0
      %v1628 = vadd.f32 %v1467, %v1627
      %v1629 = vpop.f32.mrf.mxu0
      %1630 = vmatprep.mubr.bf16.mxu0 0
      %1631 = vmatmul.mubr.bf16.gmra.mxu0 %v648
      %v1632 = vpop.f32.mrf.mxu0
      %v1633 = vadd.f32 %v1472, %v1632
      %v1634 = vpop.f32.mrf.mxu0
      %v1635 = vpop.f32.mrf.mxu0
      %v1636 = vadd.f32 %v1475, %v1635
      %v1637 = vpop.f32.mrf.mxu0
      %1638 = vmatprep.mubr.bf16.mxu0 0
      %1639 = vmatmul.mubr.bf16.gmra.mxu0 %v649
      %v1640 = vpop.f32.mrf.mxu0
      %v1641 = vadd.f32 %v1480, %v1640
      %v1642 = vpop.f32.mrf.mxu0
      %v1643 = vpop.f32.mrf.mxu0
      %v1644 = vadd.f32 %v1483, %v1643
      %v1645 = vpop.f32.mrf.mxu0
      %1646 = vmatprep.mubr.bf16.mxu0 0
      %1647 = vmatmul.mubr.bf16.gmra.mxu0 %v650
      %v1648 = vpop.f32.mrf.mxu0
      %v1649 = vadd.f32 %v1488, %v1648
      %v1650 = vpop.f32.mrf.mxu0
      %v1651 = vpop.f32.mrf.mxu0
      %v1652 = vadd.f32 %v1491, %v1651
      %v1653 = vpop.f32.mrf.mxu0
      %1654 = vmatprep.mubr.bf16.mxu0 0
      %1655 = vmatmul.mubr.bf16.gmra.mxu0 %v651
      %v1656 = vpop.f32.mrf.mxu0
      %v1657 = vadd.f32 %v1496, %v1656
      %v1658 = vpop.f32.mrf.mxu0
      %v1659 = vpop.f32.mrf.mxu0
      %v1660 = vadd.f32 %v1499, %v1659
      %v1661 = vpop.f32.mrf.mxu0
      %1662 = vmatprep.mubr.bf16.mxu0 0
      %1663 = vmatmul.mubr.bf16.gmra.mxu0 %v652
      %v1664 = vpop.f32.mrf.mxu0
      %v1665 = vadd.f32 %v1504, %v1664
      %v1666 = vpop.f32.mrf.mxu0
      %v1667 = vpop.f32.mrf.mxu0
      %v1668 = vadd.f32 %v1507, %v1667
      %v1669 = vpop.f32.mrf.mxu0
      %1670 = vmatprep.mubr.bf16.mxu0 0
      %1671 = vmatmul.mubr.bf16.gmra.mxu0 %v653
      %v1672 = vpop.f32.mrf.mxu0
      %v1673 = vadd.f32 %v1512, %v1672
      %v1674 = vpop.f32.mrf.mxu0
      %v1675 = vpop.f32.mrf.mxu0
      %v1676 = vadd.f32 %v1515, %v1675
      %v1677 = vpop.f32.mrf.mxu0
      %1678 = vmatprep.mubr.bf16.mxu0 0
      %1679 = vmatmul.mubr.bf16.gmra.mxu0 %v654
      %v1680 = vpop.f32.mrf.mxu0
      %v1681 = vadd.f32 %v1520, %v1680
      %v1682 = vpop.f32.mrf.mxu0
      %v1683 = vpop.f32.mrf.mxu0
      %v1684 = vadd.f32 %v1523, %v1683
      %v1685 = vpop.f32.mrf.mxu0
      %1686 = vmatprep.mubr.bf16.mxu0 0
      %1687 = vmatmul.mubr.bf16.gmra.mxu0 %v655
      %v1688 = vpop.f32.mrf.mxu0
      %v1689 = vadd.f32 %v1528, %v1688
      %v1690 = vpop.f32.mrf.mxu0
      %v1691 = vpop.f32.mrf.mxu0
      %v1692 = vadd.f32 %v1531, %v1691
      %v1693 = vpop.f32.mrf.mxu0
      %1694 = vmatprep.mubr.bf16.mxu0 0
      %1695 = vmatmul.mubr.bf16.gmra.mxu0 %v656
      %v1696 = vpop.f32.mrf.mxu0
      %v1697 = vadd.f32 %v1536, %v1696
      %v1698 = vpop.f32.mrf.mxu0
      %v1699 = vpop.f32.mrf.mxu0
      %v1700 = vadd.f32 %v1539, %v1699
      %v1701 = vpop.f32.mrf.mxu0
      %1702 = vdwg.mxu0
      %s1703 = scalar_lea.vmem %s3, 384
      %v1704 = vld [vmem:[%s1703] sm:$0xf]
      %v1705 = vld [vmem:[%s1703 + $0x4] sm:$0xf]
      %v1706 = vld [vmem:[%s1703 + $0x8] sm:$0xf]
      %v1707 = vld [vmem:[%s1703 + $0xc] sm:$0xf]
      %v1708 = vld [vmem:[%s1703 + $0x10] sm:$0xf]
      %v1709 = vld [vmem:[%s1703 + $0x14] sm:$0xf]
      %v1710 = vld [vmem:[%s1703 + $0x18] sm:$0xf]
      %v1711 = vld [vmem:[%s1703 + $0x1c] sm:$0xf]
      %v1712 = vld [vmem:[%s1703 + $0x20] sm:$0xf]
      %v1713 = vld [vmem:[%s1703 + $0x24] sm:$0xf]
      %v1714 = vld [vmem:[%s1703 + $0x28] sm:$0xf]
      %v1715 = vld [vmem:[%s1703 + $0x2c] sm:$0xf]
      %v1716 = vld [vmem:[%s1703 + $0x30] sm:$0xf]
      %v1717 = vld [vmem:[%s1703 + $0x34] sm:$0xf]
      %v1718 = vld [vmem:[%s1703 + $0x38] sm:$0xf]
      %v1719 = vld [vmem:[%s1703 + $0x3c] sm:$0xf]
      %v1720 = vld [vmem:[%s1703 + $0x40] sm:$0xf]
      %v1721 = vld [vmem:[%s1703 + $0x44] sm:$0xf]
      %v1722 = vld [vmem:[%s1703 + $0x48] sm:$0xf]
      %v1723 = vld [vmem:[%s1703 + $0x4c] sm:$0xf]
      %v1724 = vld [vmem:[%s1703 + $0x50] sm:$0xf]
      %v1725 = vld [vmem:[%s1703 + $0x54] sm:$0xf]
      %v1726 = vld [vmem:[%s1703 + $0x58] sm:$0xf]
      %v1727 = vld [vmem:[%s1703 + $0x5c] sm:$0xf]
      %v1728 = vld [vmem:[%s1703 + $0x60] sm:$0xf]
      %v1729 = vld [vmem:[%s1703 + $0x64] sm:$0xf]
      %v1730 = vld [vmem:[%s1703 + $0x68] sm:$0xf]
      %v1731 = vld [vmem:[%s1703 + $0x6c] sm:$0xf]
      %v1732 = vld [vmem:[%s1703 + $0x70] sm:$0xf]
      %v1733 = vld [vmem:[%s1703 + $0x74] sm:$0xf]
      %v1734 = vld [vmem:[%s1703 + $0x78] sm:$0xf]
      %v1735 = vld [vmem:[%s1703 + $0x7c] sm:$0xf]
      %v1736 = vld [vmem:[%s1703 + $0x80] sm:$0xf]
      %v1737 = vld [vmem:[%s1703 + $0x84] sm:$0xf]
      %v1738 = vld [vmem:[%s1703 + $0x88] sm:$0xf]
      %v1739 = vld [vmem:[%s1703 + $0x8c] sm:$0xf]
      %v1740 = vld [vmem:[%s1703 + $0x90] sm:$0xf]
      %v1741 = vld [vmem:[%s1703 + $0x94] sm:$0xf]
      %v1742 = vld [vmem:[%s1703 + $0x98] sm:$0xf]
      %v1743 = vld [vmem:[%s1703 + $0x9c] sm:$0xf]
      %v1744 = vld [vmem:[%s1703 + $0xa0] sm:$0xf]
      %v1745 = vld [vmem:[%s1703 + $0xa4] sm:$0xf]
      %v1746 = vld [vmem:[%s1703 + $0xa8] sm:$0xf]
      %v1747 = vld [vmem:[%s1703 + $0xac] sm:$0xf]
      %v1748 = vld [vmem:[%s1703 + $0xb0] sm:$0xf]
      %v1749 = vld [vmem:[%s1703 + $0xb4] sm:$0xf]
      %v1750 = vld [vmem:[%s1703 + $0xb8] sm:$0xf]
      %v1751 = vld [vmem:[%s1703 + $0xbc] sm:$0xf]
      %v1800 = vunpack.c.l.b16 %v1704
      %v1801 = vunpack.c.l.b16 %v1705
      %v1802 = vunpack.c.l.b16 %v1706
      %v1803 = vunpack.c.l.b16 %v1707
      %v1804 = vunpack.c.l.b16 %v1708
      %v1805 = vunpack.c.l.b16 %v1709
      %v1806 = vunpack.c.l.b16 %v1710
      %v1807 = vunpack.c.l.b16 %v1711
      %v1808 = vunpack.c.l.b16 %v1712
      %v1809 = vunpack.c.l.b16 %v1713
      %v1810 = vunpack.c.l.b16 %v1714
      %v1811 = vunpack.c.l.b16 %v1715
      %v1812 = vunpack.c.l.b16 %v1716
      %v1813 = vunpack.c.l.b16 %v1717
      %v1814 = vunpack.c.l.b16 %v1718
      %v1815 = vunpack.c.l.b16 %v1719
      %v1816 = vunpack.c.l.b16 %v1720
      %v1817 = vunpack.c.l.b16 %v1721
      %v1818 = vunpack.c.l.b16 %v1722
      %v1819 = vunpack.c.l.b16 %v1723
      %v1820 = vunpack.c.l.b16 %v1724
      %v1821 = vunpack.c.l.b16 %v1725
      %v1822 = vunpack.c.l.b16 %v1726
      %v1823 = vunpack.c.l.b16 %v1727
      %v1824 = vunpack.c.l.b16 %v1728
      %v1825 = vunpack.c.l.b16 %v1729
      %v1826 = vunpack.c.l.b16 %v1730
      %v1827 = vunpack.c.l.b16 %v1731
      %v1828 = vunpack.c.l.b16 %v1732
      %v1829 = vunpack.c.l.b16 %v1733
      %v1830 = vunpack.c.l.b16 %v1734
      %v1831 = vunpack.c.l.b16 %v1735
      %v1832 = vunpack.c.l.b16 %v1736
      %v1833 = vunpack.c.l.b16 %v1737
      %v1834 = vunpack.c.l.b16 %v1738
      %v1835 = vunpack.c.l.b16 %v1739
      %v1836 = vunpack.c.l.b16 %v1740
      %v1837 = vunpack.c.l.b16 %v1741
      %v1838 = vunpack.c.l.b16 %v1742
      %v1839 = vunpack.c.l.b16 %v1743
      %v1840 = vunpack.c.l.b16 %v1744
      %v1841 = vunpack.c.l.b16 %v1745
      %v1842 = vunpack.c.l.b16 %v1746
      %v1843 = vunpack.c.l.b16 %v1747
      %v1844 = vunpack.c.l.b16 %v1748
      %v1845 = vunpack.c.l.b16 %v1749
      %v1846 = vunpack.c.l.b16 %v1750
      %v1847 = vunpack.c.l.b16 %v1751
      %v1848 = vpack.c.b16 %v1801, %v1800
      %v1849 = vpack.c.b16 %v1803, %v1802
      %v1850 = vpack.c.b16 %v1805, %v1804
      %v1851 = vpack.c.b16 %v1807, %v1806
      %v1852 = vpack.c.b16 %v1809, %v1808
      %v1853 = vpack.c.b16 %v1811, %v1810
      %v1854 = vpack.c.b16 %v1813, %v1812
      %v1855 = vpack.c.b16 %v1815, %v1814
      %v1856 = vpack.c.b16 %v1817, %v1816
      %v1857 = vpack.c.b16 %v1819, %v1818
      %v1858 = vpack.c.b16 %v1821, %v1820
      %v1859 = vpack.c.b16 %v1823, %v1822
      %v1860 = vpack.c.b16 %v1825, %v1824
      %v1861 = vpack.c.b16 %v1827, %v1826
      %v1862 = vpack.c.b16 %v1829, %v1828
      %v1863 = vpack.c.b16 %v1831, %v1830
      %v1864 = vpack.c.b16 %v1833, %v1832
      %v1865 = vpack.c.b16 %v1835, %v1834
      %v1866 = vpack.c.b16 %v1837, %v1836
      %v1867 = vpack.c.b16 %v1839, %v1838
      %v1868 = vpack.c.b16 %v1841, %v1840
      %v1869 = vpack.c.b16 %v1843, %v1842
      %v1870 = vpack.c.b16 %v1845, %v1844
      %v1871 = vpack.c.b16 %v1847, %v1846
      %1896 = vmatprep.subr.bf16.mxu0 0
      %1897 = vmatpush1.bf16.msra.mxu0 %v1855
      %1898 = vmatprep.subr.bf16.mxu0 0
      %1899 = vmatpush1.bf16.msra.mxu0 %v1854
      %1900 = vmatprep.subr.bf16.mxu0 0
      %1901 = vmatpush1.bf16.msra.mxu0 %v1853
      %1902 = vmatprep.subr.bf16.mxu0 0
      %1903 = vmatpush1.bf16.msra.mxu0 %v1852
      %1904 = vmatprep.subr.bf16.mxu0 0
      %1905 = vmatpush1.bf16.msra.mxu0 %v1851
      %1906 = vmatprep.subr.bf16.mxu0 0
      %1907 = vmatpush1.bf16.msra.mxu0 %v1850
      %1908 = vmatprep.subr.bf16.mxu0 0
      %1909 = vmatpush1.bf16.msra.mxu0 %v1849
      %1910 = vmatprep.subr.bf16.mxu0 0
      %1911 = vmatpush1.bf16.msra.mxu0 %v1848
      %1912 = vmatprep.subr.bf16.mxu0 0
      %1913 = vmatpush2.bf16.msra.mxu0 %v1863
      %1914 = vmatprep.subr.bf16.mxu0 0
      %1915 = vmatpush2.bf16.msra.mxu0 %v1862
      %1916 = vmatprep.subr.bf16.mxu0 0
      %1917 = vmatpush2.bf16.msra.mxu0 %v1861
      %1918 = vmatprep.subr.bf16.mxu0 0
      %1919 = vmatpush2.bf16.msra.mxu0 %v1860
      %1920 = vmatprep.subr.bf16.mxu0 0
      %1921 = vmatpush2.bf16.msra.mxu0 %v1859
      %1922 = vmatprep.subr.bf16.mxu0 0
      %1923 = vmatpush2.bf16.msra.mxu0 %v1858
      %1924 = vmatprep.subr.bf16.mxu0 0
      %1925 = vmatpush2.bf16.msra.mxu0 %v1857
      %1926 = vmatprep.subr.bf16.mxu0 0
      %1927 = vmatpush2.bf16.msra.mxu0 %v1856
      %1928 = vmatprep.mubr.bf16.mxu0 %v659
      %1929 = vmatmul.mubr.bf16.gmra.mxu0 %v525
      %v1930 = vpop.f32.mrf.mxu0
      %v1931 = vadd.f32 0.0, %v1930
      %v1932 = vpop.f32.mrf.mxu0
      %v1933 = vpop.f32.mrf.mxu0
      %v1934 = vadd.f32 0.0, %v1933
      %v1935 = vpop.f32.mrf.mxu0
      %1936 = vmatprep.mubr.bf16.mxu0 %v660
      %1937 = vmatmul.mubr.bf16.gmra.mxu0 %v526
      %v1938 = vpop.f32.mrf.mxu0
      %v1939 = vadd.f32 0.0, %v1938
      %v1940 = vpop.f32.mrf.mxu0
      %v1941 = vpop.f32.mrf.mxu0
      %v1942 = vadd.f32 0.0, %v1941
      %v1943 = vpop.f32.mrf.mxu0
      %1944 = vmatprep.mubr.bf16.mxu0 %v661
      %1945 = vmatmul.mubr.bf16.gmra.mxu0 %v527
      %v1946 = vpop.f32.mrf.mxu0
      %v1947 = vadd.f32 0.0, %v1946
      %v1948 = vpop.f32.mrf.mxu0
      %v1949 = vpop.f32.mrf.mxu0
      %v1950 = vadd.f32 0.0, %v1949
      %v1951 = vpop.f32.mrf.mxu0
      %1952 = vmatprep.mubr.bf16.mxu0 %v662
      %1953 = vmatmul.mubr.bf16.gmra.mxu0 %v528
      %v1954 = vpop.f32.mrf.mxu0
      %v1955 = vadd.f32 0.0, %v1954
      %v1956 = vpop.f32.mrf.mxu0
      %v1957 = vpop.f32.mrf.mxu0
      %v1958 = vadd.f32 0.0, %v1957
      %v1959 = vpop.f32.mrf.mxu0
      %1960 = vmatprep.mubr.bf16.mxu0 %v663
      %1961 = vmatmul.mubr.bf16.gmra.mxu0 %v529
      %v1962 = vpop.f32.mrf.mxu0
      %v1963 = vadd.f32 0.0, %v1962
      %v1964 = vpop.f32.mrf.mxu0
      %v1965 = vpop.f32.mrf.mxu0
      %v1966 = vadd.f32 0.0, %v1965
      %v1967 = vpop.f32.mrf.mxu0
      %1968 = vmatprep.mubr.bf16.mxu0 %v664
      %1969 = vmatmul.mubr.bf16.gmra.mxu0 %v530
      %v1970 = vpop.f32.mrf.mxu0
      %v1971 = vadd.f32 0.0, %v1970
      %v1972 = vpop.f32.mrf.mxu0
      %v1973 = vpop.f32.mrf.mxu0
      %v1974 = vadd.f32 0.0, %v1973
      %v1975 = vpop.f32.mrf.mxu0
      %1976 = vmatprep.mubr.bf16.mxu0 %v665
      %1977 = vmatmul.mubr.bf16.gmra.mxu0 %v531
      %v1978 = vpop.f32.mrf.mxu0
      %v1979 = vadd.f32 0.0, %v1978
      %v1980 = vpop.f32.mrf.mxu0
      %v1981 = vpop.f32.mrf.mxu0
      %v1982 = vadd.f32 0.0, %v1981
      %v1983 = vpop.f32.mrf.mxu0
      %1984 = vmatprep.mubr.bf16.mxu0 %v666
      %1985 = vmatmul.mubr.bf16.gmra.mxu0 %v532
      %v1986 = vpop.f32.mrf.mxu0
      %v1987 = vadd.f32 0.0, %v1986
      %v1988 = vpop.f32.mrf.mxu0
      %v1989 = vpop.f32.mrf.mxu0
      %v1990 = vadd.f32 0.0, %v1989
      %v1991 = vpop.f32.mrf.mxu0
      %1992 = vmatprep.mubr.bf16.mxu0 %v667
      %1993 = vmatmul.mubr.bf16.gmra.mxu0 %v533
      %v1994 = vpop.f32.mrf.mxu0
      %v1995 = vadd.f32 0.0, %v1994
      %v1996 = vpop.f32.mrf.mxu0
      %v1997 = vpop.f32.mrf.mxu0
      %v1998 = vadd.f32 0.0, %v1997
      %v1999 = vpop.f32.mrf.mxu0
      %2000 = vmatprep.mubr.bf16.mxu0 %v668
      %2001 = vmatmul.mubr.bf16.gmra.mxu0 %v534
      %v2002 = vpop.f32.mrf.mxu0
      %v2003 = vadd.f32 0.0, %v2002
      %v2004 = vpop.f32.mrf.mxu0
      %v2005 = vpop.f32.mrf.mxu0
      %v2006 = vadd.f32 0.0, %v2005
      %v2007 = vpop.f32.mrf.mxu0
      %2008 = vmatprep.mubr.bf16.mxu0 %v669
      %2009 = vmatmul.mubr.bf16.gmra.mxu0 %v535
      %v2010 = vpop.f32.mrf.mxu0
      %v2011 = vadd.f32 0.0, %v2010
      %v2012 = vpop.f32.mrf.mxu0
      %v2013 = vpop.f32.mrf.mxu0
      %v2014 = vadd.f32 0.0, %v2013
      %v2015 = vpop.f32.mrf.mxu0
      %2016 = vmatprep.mubr.bf16.mxu0 %v670
      %2017 = vmatmul.mubr.bf16.gmra.mxu0 %v536
      %v2018 = vpop.f32.mrf.mxu0
      %v2019 = vadd.f32 0.0, %v2018
      %v2020 = vpop.f32.mrf.mxu0
      %v2021 = vpop.f32.mrf.mxu0
      %v2022 = vadd.f32 0.0, %v2021
      %v2023 = vpop.f32.mrf.mxu0
      %2024 = vmatprep.mubr.bf16.mxu0 %v671
      %2025 = vmatmul.mubr.bf16.gmra.mxu0 %v537
      %v2026 = vpop.f32.mrf.mxu0
      %v2027 = vadd.f32 0.0, %v2026
      %v2028 = vpop.f32.mrf.mxu0
      %v2029 = vpop.f32.mrf.mxu0
      %v2030 = vadd.f32 0.0, %v2029
      %v2031 = vpop.f32.mrf.mxu0
      %2032 = vmatprep.mubr.bf16.mxu0 %v672
      %2033 = vmatmul.mubr.bf16.gmra.mxu0 %v538
      %v2034 = vpop.f32.mrf.mxu0
      %v2035 = vadd.f32 0.0, %v2034
      %v2036 = vpop.f32.mrf.mxu0
      %v2037 = vpop.f32.mrf.mxu0
      %v2038 = vadd.f32 0.0, %v2037
      %v2039 = vpop.f32.mrf.mxu0
      %2040 = vmatprep.mubr.bf16.mxu0 %v673
      %2041 = vmatmul.mubr.bf16.gmra.mxu0 %v539
      %v2042 = vpop.f32.mrf.mxu0
      %v2043 = vadd.f32 0.0, %v2042
      %v2044 = vpop.f32.mrf.mxu0
      %v2045 = vpop.f32.mrf.mxu0
      %v2046 = vadd.f32 0.0, %v2045
      %v2047 = vpop.f32.mrf.mxu0
      %2048 = vmatprep.mubr.bf16.mxu0 0
      %2049 = vmatmul.mubr.bf16.gmra.mxu0 0
      %v2050 = vpop.f32.mrf.mxu0
      %v2051 = vadd.f32 0.0, %v2050
      %v2052 = vpop.f32.mrf.mxu0
      %v2053 = vpop.f32.mrf.mxu0
      %v2054 = vadd.f32 0.0, %v2053
      %v2055 = vpop.f32.mrf.mxu0
      %2056 = vdwg.mxu0
      %2057 = vmatprep.subr.bf16.mxu0 0
      %2058 = vmatpush1.bf16.msra.mxu0 %v1871
      %2059 = vmatprep.subr.bf16.mxu0 0
      %2060 = vmatpush1.bf16.msra.mxu0 %v1870
      %2061 = vmatprep.subr.bf16.mxu0 0
      %2062 = vmatpush1.bf16.msra.mxu0 %v1869
      %2063 = vmatprep.subr.bf16.mxu0 0
      %2064 = vmatpush1.bf16.msra.mxu0 %v1868
      %2065 = vmatprep.subr.bf16.mxu0 0
      %2066 = vmatpush1.bf16.msra.mxu0 %v1867
      %2067 = vmatprep.subr.bf16.mxu0 0
      %2068 = vmatpush1.bf16.msra.mxu0 %v1866
      %2069 = vmatprep.subr.bf16.mxu0 0
      %2070 = vmatpush1.bf16.msra.mxu0 %v1865
      %2071 = vmatprep.subr.bf16.mxu0 0
      %2072 = vmatpush1.bf16.msra.mxu0 %v1864
      %2073 = vmatprep.subr.bf16.mxu0 0
      %2074 = vmatpush2.bf16.msra.mxu0 0
      %2075 = vmatprep.subr.bf16.mxu0 0
      %2076 = vmatpush2.bf16.msra.mxu0 0
      %2077 = vmatprep.subr.bf16.mxu0 0
      %2078 = vmatpush2.bf16.msra.mxu0 0
      %2079 = vmatprep.subr.bf16.mxu0 0
      %2080 = vmatpush2.bf16.msra.mxu0 0
      %2081 = vmatprep.subr.bf16.mxu0 0
      %2082 = vmatpush2.bf16.msra.mxu0 0
      %2083 = vmatprep.subr.bf16.mxu0 0
      %2084 = vmatpush2.bf16.msra.mxu0 0
      %2085 = vmatprep.subr.bf16.mxu0 0
      %2086 = vmatpush2.bf16.msra.mxu0 0
      %2087 = vmatprep.subr.bf16.mxu0 0
      %2088 = vmatpush2.bf16.msra.mxu0 0
      %2089 = vmatprep.mubr.bf16.mxu0 0
      %2090 = vmatmul.mubr.bf16.gmra.mxu0 %v643
      %v2091 = vpop.f32.mrf.mxu0
      %v2092 = vadd.f32 %v1931, %v2091
      %v2093 = vpop.f32.mrf.mxu0
      %v2094 = vpop.f32.mrf.mxu0
      %v2095 = vadd.f32 %v1934, %v2094
      %v2096 = vpop.f32.mrf.mxu0
      %2097 = vmatprep.mubr.bf16.mxu0 0
      %2098 = vmatmul.mubr.bf16.gmra.mxu0 %v644
      %v2099 = vpop.f32.mrf.mxu0
      %v2100 = vadd.f32 %v1939, %v2099
      %v2101 = vpop.f32.mrf.mxu0
      %v2102 = vpop.f32.mrf.mxu0
      %v2103 = vadd.f32 %v1942, %v2102
      %v2104 = vpop.f32.mrf.mxu0
      %2105 = vmatprep.mubr.bf16.mxu0 0
      %2106 = vmatmul.mubr.bf16.gmra.mxu0 %v645
      %v2107 = vpop.f32.mrf.mxu0
      %v2108 = vadd.f32 %v1947, %v2107
      %v2109 = vpop.f32.mrf.mxu0
      %v2110 = vpop.f32.mrf.mxu0
      %v2111 = vadd.f32 %v1950, %v2110
      %v2112 = vpop.f32.mrf.mxu0
      %2113 = vmatprep.mubr.bf16.mxu0 0
      %2114 = vmatmul.mubr.bf16.gmra.mxu0 %v646
      %v2115 = vpop.f32.mrf.mxu0
      %v2116 = vadd.f32 %v1955, %v2115
      %v2117 = vpop.f32.mrf.mxu0
      %v2118 = vpop.f32.mrf.mxu0
      %v2119 = vadd.f32 %v1958, %v2118
      %v2120 = vpop.f32.mrf.mxu0
      %2121 = vmatprep.mubr.bf16.mxu0 0
      %2122 = vmatmul.mubr.bf16.gmra.mxu0 %v647
      %v2123 = vpop.f32.mrf.mxu0
      %v2124 = vadd.f32 %v1963, %v2123
      %v2125 = vpop.f32.mrf.mxu0
      %v2126 = vpop.f32.mrf.mxu0
      %v2127 = vadd.f32 %v1966, %v2126
      %v2128 = vpop.f32.mrf.mxu0
      %2129 = vmatprep.mubr.bf16.mxu0 0
      %2130 = vmatmul.mubr.bf16.gmra.mxu0 %v648
      %v2131 = vpop.f32.mrf.mxu0
      %v2132 = vadd.f32 %v1971, %v2131
      %v2133 = vpop.f32.mrf.mxu0
      %v2134 = vpop.f32.mrf.mxu0
      %v2135 = vadd.f32 %v1974, %v2134
      %v2136 = vpop.f32.mrf.mxu0
      %2137 = vmatprep.mubr.bf16.mxu0 0
      %2138 = vmatmul.mubr.bf16.gmra.mxu0 %v649
      %v2139 = vpop.f32.mrf.mxu0
      %v2140 = vadd.f32 %v1979, %v2139
      %v2141 = vpop.f32.mrf.mxu0
      %v2142 = vpop.f32.mrf.mxu0
      %v2143 = vadd.f32 %v1982, %v2142
      %v2144 = vpop.f32.mrf.mxu0
      %2145 = vmatprep.mubr.bf16.mxu0 0
      %2146 = vmatmul.mubr.bf16.gmra.mxu0 %v650
      %v2147 = vpop.f32.mrf.mxu0
      %v2148 = vadd.f32 %v1987, %v2147
      %v2149 = vpop.f32.mrf.mxu0
      %v2150 = vpop.f32.mrf.mxu0
      %v2151 = vadd.f32 %v1990, %v2150
      %v2152 = vpop.f32.mrf.mxu0
      %2153 = vmatprep.mubr.bf16.mxu0 0
      %2154 = vmatmul.mubr.bf16.gmra.mxu0 %v651
      %v2155 = vpop.f32.mrf.mxu0
      %v2156 = vadd.f32 %v1995, %v2155
      %v2157 = vpop.f32.mrf.mxu0
      %v2158 = vpop.f32.mrf.mxu0
      %v2159 = vadd.f32 %v1998, %v2158
      %v2160 = vpop.f32.mrf.mxu0
      %2161 = vmatprep.mubr.bf16.mxu0 0
      %2162 = vmatmul.mubr.bf16.gmra.mxu0 %v652
      %v2163 = vpop.f32.mrf.mxu0
      %v2164 = vadd.f32 %v2003, %v2163
      %v2165 = vpop.f32.mrf.mxu0
      %v2166 = vpop.f32.mrf.mxu0
      %v2167 = vadd.f32 %v2006, %v2166
      %v2168 = vpop.f32.mrf.mxu0
      %2169 = vmatprep.mubr.bf16.mxu0 0
      %2170 = vmatmul.mubr.bf16.gmra.mxu0 %v653
      %v2171 = vpop.f32.mrf.mxu0
      %v2172 = vadd.f32 %v2011, %v2171
      %v2173 = vpop.f32.mrf.mxu0
      %v2174 = vpop.f32.mrf.mxu0
      %v2175 = vadd.f32 %v2014, %v2174
      %v2176 = vpop.f32.mrf.mxu0
      %2177 = vmatprep.mubr.bf16.mxu0 0
      %2178 = vmatmul.mubr.bf16.gmra.mxu0 %v654
      %v2179 = vpop.f32.mrf.mxu0
      %v2180 = vadd.f32 %v2019, %v2179
      %v2181 = vpop.f32.mrf.mxu0
      %v2182 = vpop.f32.mrf.mxu0
      %v2183 = vadd.f32 %v2022, %v2182
      %v2184 = vpop.f32.mrf.mxu0
      %2185 = vmatprep.mubr.bf16.mxu0 0
      %2186 = vmatmul.mubr.bf16.gmra.mxu0 %v655
      %v2187 = vpop.f32.mrf.mxu0
      %v2188 = vadd.f32 %v2027, %v2187
      %v2189 = vpop.f32.mrf.mxu0
      %v2190 = vpop.f32.mrf.mxu0
      %v2191 = vadd.f32 %v2030, %v2190
      %v2192 = vpop.f32.mrf.mxu0
      %2193 = vmatprep.mubr.bf16.mxu0 0
      %2194 = vmatmul.mubr.bf16.gmra.mxu0 %v656
      %v2195 = vpop.f32.mrf.mxu0
      %v2196 = vadd.f32 %v2035, %v2195
      %v2197 = vpop.f32.mrf.mxu0
      %v2198 = vpop.f32.mrf.mxu0
      %v2199 = vadd.f32 %v2038, %v2198
      %v2200 = vpop.f32.mrf.mxu0
      %2201 = vmatprep.mubr.bf16.mxu0 0
      %2202 = vmatmul.mubr.bf16.gmra.mxu0 %v657
      %v2203 = vpop.f32.mrf.mxu0
      %v2204 = vadd.f32 %v2043, %v2203
      %v2205 = vpop.f32.mrf.mxu0
      %v2206 = vpop.f32.mrf.mxu0
      %v2207 = vadd.f32 %v2046, %v2206
      %v2208 = vpop.f32.mrf.mxu0
      %2209 = vmatprep.mubr.bf16.mxu0 0
      %2210 = vmatmul.mubr.bf16.gmra.mxu0 0
      %v2211 = vpop.f32.mrf.mxu0
      %v2212 = vadd.f32 %v2051, %v2211
      %v2213 = vpop.f32.mrf.mxu0
      %v2214 = vpop.f32.mrf.mxu0
      %v2215 = vadd.f32 %v2054, %v2214
      %v2216 = vpop.f32.mrf.mxu0
      %2217 = vdwg.mxu0
      %v2218 = vadd.f32 %v1577, %v2092
      %v2219 = vadd.f32 %v1580, %v2095
      %v2220 = vadd.f32 %v1585, %v2100
      %v2221 = vadd.f32 %v1588, %v2103
      %v2222 = vadd.f32 %v1593, %v2108
      %v2223 = vadd.f32 %v1596, %v2111
      %v2224 = vadd.f32 %v1601, %v2116
      %v2225 = vadd.f32 %v1604, %v2119
      %v2226 = vadd.f32 %v1609, %v2124
      %v2227 = vadd.f32 %v1612, %v2127
      %v2228 = vadd.f32 %v1617, %v2132
      %v2229 = vadd.f32 %v1620, %v2135
      %v2230 = vadd.f32 %v1625, %v2140
      %v2231 = vadd.f32 %v1628, %v2143
      %v2232 = vadd.f32 %v1633, %v2148
      %v2233 = vadd.f32 %v1636, %v2151
      %v2234 = vadd.f32 %v1641, %v2156
      %v2235 = vadd.f32 %v1644, %v2159
      %v2236 = vadd.f32 %v1649, %v2164
      %v2237 = vadd.f32 %v1652, %v2167
      %v2238 = vadd.f32 %v1657, %v2172
      %v2239 = vadd.f32 %v1660, %v2175
      %v2240 = vadd.f32 %v1665, %v2180
      %v2241 = vadd.f32 %v1668, %v2183
      %v2242 = vadd.f32 %v1673, %v2188
      %v2243 = vadd.f32 %v1676, %v2191
      %v2244 = vadd.f32 %v1681, %v2196
      %v2245 = vadd.f32 %v1684, %v2199
      %v2246 = vadd.f32 %v1689, %v2204
      %v2247 = vadd.f32 %v1692, %v2207
      %v2248 = vadd.f32 %v1697, %v2212
      %v2249 = vadd.f32 %v1700, %v2215
      %v2250 = vpack.c.bf16 %v2219, %v2218
      %v2251 = vpack.c.bf16 %v2221, %v2220
      %v2252 = vpack.c.bf16 %v2223, %v2222
      %v2253 = vpack.c.bf16 %v2225, %v2224
      %v2254 = vpack.c.bf16 %v2227, %v2226
      %v2255 = vpack.c.bf16 %v2229, %v2228
      %v2256 = vpack.c.bf16 %v2231, %v2230
      %v2257 = vpack.c.bf16 %v2233, %v2232
      %v2258 = vpack.c.bf16 %v2235, %v2234
      %v2259 = vpack.c.bf16 %v2237, %v2236
      %v2260 = vpack.c.bf16 %v2239, %v2238
      %v2261 = vpack.c.bf16 %v2241, %v2240
      %v2262 = vpack.c.bf16 %v2243, %v2242
      %v2263 = vpack.c.bf16 %v2245, %v2244
      %v2264 = vpack.c.bf16 %v2247, %v2246
      %v2265 = vpack.c.bf16 %v2249, %v2248
      %v2282 = vunpack.c.l.b16 %v2250
      %v2283 = vunpack.c.h.b16 %v2250
      %v2284 = vunpack.c.l.b16 %v2251
      %v2285 = vunpack.c.h.b16 %v2251
      %v2286 = vunpack.c.l.b16 %v2252
      %v2287 = vunpack.c.h.b16 %v2252
      %v2288 = vunpack.c.l.b16 %v2253
      %v2289 = vunpack.c.h.b16 %v2253
      %v2290 = vunpack.c.l.b16 %v2254
      %v2291 = vunpack.c.h.b16 %v2254
      %v2292 = vunpack.c.l.b16 %v2255
      %v2293 = vunpack.c.h.b16 %v2255
      %v2294 = vunpack.c.l.b16 %v2256
      %v2295 = vunpack.c.h.b16 %v2256
      %v2296 = vunpack.c.l.b16 %v2257
      %v2297 = vunpack.c.h.b16 %v2257
      %v2298 = vunpack.c.l.b16 %v2258
      %v2299 = vunpack.c.h.b16 %v2258
      %v2300 = vunpack.c.l.b16 %v2259
      %v2301 = vunpack.c.h.b16 %v2259
      %v2302 = vunpack.c.l.b16 %v2260
      %v2303 = vunpack.c.h.b16 %v2260
      %v2304 = vunpack.c.l.b16 %v2261
      %v2305 = vunpack.c.h.b16 %v2261
      %v2306 = vunpack.c.l.b16 %v2262
      %v2307 = vunpack.c.h.b16 %v2262
      %v2308 = vunpack.c.l.b16 %v2263
      %v2309 = vunpack.c.h.b16 %v2263
      %v2310 = vunpack.c.l.b16 %v2264
      %v2311 = vunpack.c.h.b16 %v2264
      %v2312 = vunpack.c.l.b16 %v2265
      %v2313 = vunpack.c.h.b16 %v2265
      %v2314 = vpack.c.b16 %v2282, %v2282
      %v2315 = vpack.c.b16 %v2283, %v2283
      %v2316 = vpack.c.b16 %v2284, %v2284
      %v2317 = vpack.c.b16 %v2285, %v2285
      %v2318 = vpack.c.b16 %v2286, %v2286
      %v2319 = vpack.c.b16 %v2287, %v2287
      %v2320 = vpack.c.b16 %v2288, %v2288
      %v2321 = vpack.c.b16 %v2289, %v2289
      %v2322 = vpack.c.b16 %v2290, %v2290
      %v2323 = vpack.c.b16 %v2291, %v2291
      %v2324 = vpack.c.b16 %v2292, %v2292
      %v2325 = vpack.c.b16 %v2293, %v2293
      %v2326 = vpack.c.b16 %v2294, %v2294
      %v2327 = vpack.c.b16 %v2295, %v2295
      %v2328 = vpack.c.b16 %v2296, %v2296
      %v2329 = vpack.c.b16 %v2297, %v2297
      %v2330 = vpack.c.b16 %v2298, %v2298
      %v2331 = vpack.c.b16 %v2299, %v2299
      %v2332 = vpack.c.b16 %v2300, %v2300
      %v2333 = vpack.c.b16 %v2301, %v2301
      %v2334 = vpack.c.b16 %v2302, %v2302
      %v2335 = vpack.c.b16 %v2303, %v2303
      %v2336 = vpack.c.b16 %v2304, %v2304
      %v2337 = vpack.c.b16 %v2305, %v2305
      %v2338 = vpack.c.b16 %v2306, %v2306
      %v2339 = vpack.c.b16 %v2307, %v2307
      %v2340 = vpack.c.b16 %v2308, %v2308
      %v2341 = vpack.c.b16 %v2309, %v2309
      %v2342 = vpack.c.b16 %v2310, %v2310
      %v2343 = vpack.c.b16 %v2311, %v2311
      %v2344 = vpack.c.b16 %v2312, %v2312
      %v2345 = vpack.c.b16 %v2313, %v2313
      %2378 = vst [vmem:[%s231] sm:$0xf] %v2314
      %2379 = vst [vmem:[%s231 + $0x4] sm:$0xf] %v2315
      %2380 = vst [vmem:[%s231 + $0x8] sm:$0xf] %v2316
      %2381 = vst [vmem:[%s231 + $0xc] sm:$0xf] %v2317
      %2382 = vst [vmem:[%s231 + $0x10] sm:$0xf] %v2318
      %2383 = vst [vmem:[%s231 + $0x14] sm:$0xf] %v2319
      %2384 = vst [vmem:[%s231 + $0x18] sm:$0xf] %v2320
      %2385 = vst [vmem:[%s231 + $0x1c] sm:$0xf] %v2321
      %2386 = vst [vmem:[%s231 + $0x20] sm:$0xf] %v2322
      %2387 = vst [vmem:[%s231 + $0x24] sm:$0xf] %v2323
      %2388 = vst [vmem:[%s231 + $0x28] sm:$0xf] %v2324
      %2389 = vst [vmem:[%s231 + $0x2c] sm:$0xf] %v2325
      %2390 = vst [vmem:[%s231 + $0x30] sm:$0xf] %v2326
      %2391 = vst [vmem:[%s231 + $0x34] sm:$0xf] %v2327
      %2392 = vst [vmem:[%s231 + $0x38] sm:$0xf] %v2328
      %2393 = vst [vmem:[%s231 + $0x3c] sm:$0xf] %v2329
      %2394 = vst [vmem:[%s231 + $0x40] sm:$0xf] %v2330
      %2395 = vst [vmem:[%s231 + $0x44] sm:$0xf] %v2331
      %2396 = vst [vmem:[%s231 + $0x48] sm:$0xf] %v2332
      %2397 = vst [vmem:[%s231 + $0x4c] sm:$0xf] %v2333
      %2398 = vst [vmem:[%s231 + $0x50] sm:$0xf] %v2334
      %2399 = vst [vmem:[%s231 + $0x54] sm:$0xf] %v2335
      %2400 = vst [vmem:[%s231 + $0x58] sm:$0xf] %v2336
      %2401 = vst [vmem:[%s231 + $0x5c] sm:$0xf] %v2337
      %2402 = vst [vmem:[%s231 + $0x60] sm:$0xf] %v2338
      %2403 = vst [vmem:[%s231 + $0x64] sm:$0xf] %v2339
      %2404 = vst [vmem:[%s231 + $0x68] sm:$0xf] %v2340
      %2405 = vst [vmem:[%s231 + $0x6c] sm:$0xf] %v2341
      %2406 = vst [vmem:[%s231 + $0x70] sm:$0xf] %v2342
      %2407 = vst [vmem:[%s231 + $0x74] sm:$0xf] %v2343
      %2408 = vst [vmem:[%s231 + $0x78] sm:$0xf] %v2344
      %2409 = vst [vmem:[%s231 + $0x7c] sm:$0xf] %v2345
      %v2410 = vadd.f32 %v2218, %v2219
      %v2411 = vadd.f32 %v2410, %v2220
      %v2412 = vadd.f32 %v2411, %v2221
      %v2413 = vadd.f32 %v2412, %v2222
      %v2414 = vadd.f32 %v2413, %v2223
      %v2415 = vadd.f32 %v2414, %v2224
      %v2416 = vadd.f32 %v2415, %v2225
      %v2417 = vadd.f32 %v2416, %v2226
      %v2418 = vadd.f32 %v2417, %v2227
      %v2419 = vadd.f32 %v2418, %v2228
      %v2420 = vadd.f32 %v2419, %v2229
      %v2421 = vadd.f32 %v2420, %v2230
      %v2422 = vadd.f32 %v2421, %v2231
      %v2423 = vadd.f32 %v2422, %v2232
      %v2424 = vadd.f32 %v2423, %v2233
      %v2425 = vadd.f32 %v2424, %v2234
      %v2426 = vadd.f32 %v2425, %v2235
      %v2427 = vadd.f32 %v2426, %v2236
      %v2428 = vadd.f32 %v2427, %v2237
      %v2429 = vadd.f32 %v2428, %v2238
      %v2430 = vadd.f32 %v2429, %v2239
      %v2431 = vadd.f32 %v2430, %v2240
      %v2432 = vadd.f32 %v2431, %v2241
      %v2433 = vadd.f32 %v2432, %v2242
      %v2434 = vadd.f32 %v2433, %v2243
      %v2435 = vadd.f32 %v2434, %v2244
      %v2436 = vadd.f32 %v2435, %v2245
      %v2437 = vadd.f32 %v2436, %v2246
      %v2438 = vadd.f32 %v2437, %v2247
      %v2439 = vadd.f32 %v2438, %v2248
      %v2440 = vadd.f32 %v2439, %v2249
      %v2441 = vrot.slane %v2440, 4
      %v2442 = vadd.f32 %v2440, %v2441
      %v2443 = vrot.slane %v2442, 2
      %v2444 = vadd.f32 %v2442, %v2443
      %v2445 = vrot.slane %v2444, 1
      %v2446 = vadd.f32 %v2444, %v2445
      %v2447 = vmul.f32 %v2218, %v2218
      %v2448 = vmul.f32 %v2219, %v2219
      %v2449 = vmul.f32 %v2220, %v2220
      %v2450 = vmul.f32 %v2221, %v2221
      %v2451 = vmul.f32 %v2222, %v2222
      %v2452 = vmul.f32 %v2223, %v2223
      %v2453 = vmul.f32 %v2224, %v2224
      %v2454 = vmul.f32 %v2225, %v2225
      %v2455 = vmul.f32 %v2226, %v2226
      %v2456 = vmul.f32 %v2227, %v2227
      %v2457 = vmul.f32 %v2228, %v2228
      %v2458 = vmul.f32 %v2229, %v2229
      %v2459 = vmul.f32 %v2230, %v2230
      %v2460 = vmul.f32 %v2231, %v2231
      %v2461 = vmul.f32 %v2232, %v2232
      %v2462 = vmul.f32 %v2233, %v2233
      %v2463 = vmul.f32 %v2234, %v2234
      %v2464 = vmul.f32 %v2235, %v2235
      %v2465 = vmul.f32 %v2236, %v2236
      %v2466 = vmul.f32 %v2237, %v2237
      %v2467 = vmul.f32 %v2238, %v2238
      %v2468 = vmul.f32 %v2239, %v2239
      %v2469 = vmul.f32 %v2240, %v2240
      %v2470 = vmul.f32 %v2241, %v2241
      %v2471 = vmul.f32 %v2242, %v2242
      %v2472 = vmul.f32 %v2243, %v2243
      %v2473 = vmul.f32 %v2244, %v2244
      %v2474 = vmul.f32 %v2245, %v2245
      %v2475 = vmul.f32 %v2246, %v2246
      %v2476 = vmul.f32 %v2247, %v2247
      %v2477 = vmul.f32 %v2248, %v2248
      %v2478 = vmul.f32 %v2249, %v2249
      %v2479 = vadd.f32 %v2447, %v2448
      %v2480 = vadd.f32 %v2479, %v2449
      %v2481 = vadd.f32 %v2480, %v2450
      %v2482 = vadd.f32 %v2481, %v2451
      %v2483 = vadd.f32 %v2482, %v2452
      %v2484 = vadd.f32 %v2483, %v2453
      %v2485 = vadd.f32 %v2484, %v2454
      %v2486 = vadd.f32 %v2485, %v2455
      %v2487 = vadd.f32 %v2486, %v2456
      %v2488 = vadd.f32 %v2487, %v2457
      %v2489 = vadd.f32 %v2488, %v2458
      %v2490 = vadd.f32 %v2489, %v2459
      %v2491 = vadd.f32 %v2490, %v2460
      %v2492 = vadd.f32 %v2491, %v2461
      %v2493 = vadd.f32 %v2492, %v2462
      %v2494 = vadd.f32 %v2493, %v2463
      %v2495 = vadd.f32 %v2494, %v2464
      %v2496 = vadd.f32 %v2495, %v2465
      %v2497 = vadd.f32 %v2496, %v2466
      %v2498 = vadd.f32 %v2497, %v2467
      %v2499 = vadd.f32 %v2498, %v2468
      %v2500 = vadd.f32 %v2499, %v2469
      %v2501 = vadd.f32 %v2500, %v2470
      %v2502 = vadd.f32 %v2501, %v2471
      %v2503 = vadd.f32 %v2502, %v2472
      %v2504 = vadd.f32 %v2503, %v2473
      %v2505 = vadd.f32 %v2504, %v2474
      %v2506 = vadd.f32 %v2505, %v2475
      %v2507 = vadd.f32 %v2506, %v2476
      %v2508 = vadd.f32 %v2507, %v2477
      %v2509 = vadd.f32 %v2508, %v2478
      %v2510 = vrot.slane %v2509, 4
      %v2511 = vadd.f32 %v2509, %v2510
      %v2512 = vrot.slane %v2511, 2
      %v2513 = vadd.f32 %v2511, %v2512
      %v2514 = vrot.slane %v2513, 1
      %v2515 = vadd.f32 %v2513, %v2514
      %v2516 = vsel %vm411, %v2446, %v2515
      %2517 = vst [vmem:[%s235] sm:$0x3] %v2516
      %p2518 = scmp.lt.s32.totalorder %s17, 1
      %s2519 = scalar_select %p2518, %s17, 1
      %s2520 = smul.addr %s2519, 32
      %s2521 = smul.addr %s2520, 4
      %s2522 = scalar_lea.vmem %s4, %s2521
      %p2523 = scmp.lt.s32.totalorder %s17, 1
      %s2524 = scalar_select %p2523, %s17, 1
      %s2525 = smul.addr %s2524, 2
      %s2526 = scalar_lea.vmem %s5, %s2525
      // Predicated region
      $region37: #{bottleneck_forward_nchw.5} parent=35 // pred_check
        %p2527 = pneg %p124
      $region38: #{bottleneck_forward_nchw.5} parent=35 // pred_check_branch
        %2529 = sbr.rel (%p2527) target = $region40
      $region39: #{bottleneck_forward_nchw.5} parent=35 // pred_region
        _
      $region40: #{bottleneck_forward_nchw.5} parent=35 // pred_fallthru
        _
      // Predicated region
      $region41: #{bottleneck_forward_nchw.5} parent=35 // pred_check
        %p2530 = pneg %p150
      $region42: #{bottleneck_forward_nchw.5} parent=35 // pred_check_branch
        %2532 = sbr.rel (%p2530) target = $region44
      $region43: #{bottleneck_forward_nchw.5} parent=35 // pred_region
        _
      $region44: #{bottleneck_forward_nchw.5} parent=35 // pred_fallthru
        _
    $region36: #{bottleneck_forward_nchw.5} parent=5 // pred_fallthru
      _
    %p2533 = scmp.le.s32.totalorder 2, %s12
    // Predicated region
    $region45: #{bottleneck_forward_nchw.5} parent=5 // pred_check
      %p2534 = pneg %p2533
    $region46: #{bottleneck_forward_nchw.5} parent=5 // pred_check_branch
      %2536 = sbr.rel (%p2534) target = $region48
    $region47: #{bottleneck_forward_nchw.5} parent=5 // pred_region
      %s2537 = ssub.s32 %s12, 2
      // Predicated region
      $region49: #{bottleneck_forward_nchw.5} parent=47 // pred_check
        %p2538 = pneg %p130
      $region50: #{bottleneck_forward_nchw.5} parent=47 // pred_check_branch
        %2540 = sbr.rel (%p2538) target = $region52
      $region51: #{bottleneck_forward_nchw.5} parent=47 // pred_region
        %p2541 = scmp.lt.s32.totalorder %s18, 1
        %s2542 = scalar_select %p2541, %s18, 1
        %s2543 = smul.addr %s2542, 32
        %s2544 = smul.addr %s2543, 4
        %s2545 = scalar_lea.vmem %s4, %s2544
      $region52: #{bottleneck_forward_nchw.5} parent=47 // pred_fallthru
        _
      // Predicated region
      $region53: #{bottleneck_forward_nchw.5} parent=47 // pred_check
        %p2546 = pneg %p156
      $region54: #{bottleneck_forward_nchw.5} parent=47 // pred_check_branch
        %2548 = sbr.rel (%p2546) target = $region56
      $region55: #{bottleneck_forward_nchw.5} parent=47 // pred_region
        %p2549 = scmp.lt.s32.totalorder %s18, 1
        %s2550 = scalar_select %p2549, %s18, 1
        %s2551 = smul.addr %s2550, 2
        %s2552 = scalar_lea.vmem %s5, %s2551
      $region56: #{bottleneck_forward_nchw.5} parent=47 // pred_fallthru
        _
    $region48: #{bottleneck_forward_nchw.5} parent=5 // pred_fallthru
      _
  $region6: #{bottleneck_forward_nchw.5} parent=0 // loop_footer
    %s16 = sadd.s32 1, %s12
  $region7: #{bottleneck_forward_nchw.5} parent=0 // loop_footer_branch
    %11 = sbr.rel target = $region3
  $region8: #{bottleneck_forward_nchw.5} parent=0 // loop_exit
    _

</llo_original>
